<compile_context>
chip_gen: v7x
topology: tpu7x:2x2x1
jax: 0.10.0
libtpu: 0.0.40
codegen_flags: <defaults>
</compile_context>

<pallas_src>
import math
from functools import partial

import jax
import jax.numpy as jnp
from jax.experimental import pallas as pl
from jax.experimental.pallas import tpu as pltpu

CELL = 16            # cellSize
BLOCK = 2            # blockSize
NBINS = 9            # nPhaseBins
PHASE_GAIN = NBINS / math.pi
BIN_WIDTH = math.pi / NBINS


def _round_up(x, m):
    return ((x + m - 1) // m) * m


def _vmem_capacity_bytes():
    """Per-generation physical VMEM; conservative fallback = v7x per-TC (64 MiB)."""
    try:
        info = pltpu.get_tpu_info()
        cap = getattr(info, "vmem_capacity_bytes", None)
        if cap:
            return int(cap)
    except Exception:
        pass
    return 64 * 1024 * 1024


def _pick_band_cells(nCH, C, W_pad, in_itemsize):
    """Cell-rows per band so one band's blocks + temporaries fit ~24 MiB."""
    budget = 24 * 1024 * 1024
    bc = min(nCH, 8)                       # 8 cell rows == 128 image rows per band
    while bc > 1:
        band_rows = bc * CELL
        bh_pad = _round_up(band_rows + 2, 8)
        est = 2 * C * bh_pad * W_pad * in_itemsize + 20 * band_rows * W_pad * 4
        if est <= budget:
            break
        bc = max(1, bc // 2)
    return bc


def _hog_cells_kernel(pad_ref, prow_ref, pcol_ref, out_ref, *, C, band_rows, W, W_pad):
    """One (batch, cell-row band) per grid step.

    pad_ref : (1, C, BH_pad, W_pad)  reflect-padded band (with its own halo rows),
              original input dtype, zero-padded to (8,128) alignment
    prow_ref: (band_cells, band_rows) cell row-pooling matrix, pre-scaled by 1/256
    pcol_ref: (W, nCW)               0/1 cell col-pooling matrix
    out_ref : (1, band_cells, NBINS*nCW)  per-cell histograms, one lane-dense store
    """
    best_sq = None   # squared magnitude: sqrt deferred out of the channel loop
    best_gx = None
    best_gy = None
    for c in range(C):
        plane = pad_ref[0, c, :, :].astype(jnp.float32)    # (BH_pad, W_pad)
        top = plane[0:band_rows, :]
        mid = plane[1:band_rows + 1, :]
        bot = plane[2:band_rows + 2, :]
        # separable Sobel (cross-correlation, matches F.conv2d with the complex kernel)
        v_s = top + 2.0 * mid + bot                        # vertical smooth [1,2,1]^T
        v_d = bot - top                                    # vertical diff   [-1,0,1]^T
        # horizontal +1 / +2 column offsets via XLU lane rolls (roll-left k == W_pad-k)
        v_s_p2 = pltpu.roll(v_s, shift=W_pad - 2, axis=1)
        v_d_p1 = pltpu.roll(v_d, shift=W_pad - 1, axis=1)
        v_d_p2 = pltpu.roll(v_d, shift=W_pad - 2, axis=1)
        gx = (v_s_p2 - v_s)[:, 0:W]                        # horizontal [-1,0,1]
        gy = (v_d + 2.0 * v_d_p1 + v_d_p2)[:, 0:W]         # horizontal [1,2,1]
        sq = gx * gx + gy * gy
        if best_sq is None:
            best_sq, best_gx, best_gy = sq, gx, gy
        else:
            take = sq > best_sq                            # strict > == first-channel ties
            best_sq = jnp.where(take, sq, best_sq)
            best_gx = jnp.where(take, gx, best_gx)
            best_gy = jnp.where(take, gy, best_gy)

    mag = jnp.sqrt(best_sq)                                # single EUP sqrt pass

    # phase = angle(gx + i*gy) mod pi, in [0, pi]
    phase = jnp.arctan2(best_gy, best_gx)
    phase = jnp.where(phase < 0.0, phase + math.pi, phase)
    left_raw = jnp.floor(PHASE_GAIN * phase)               # raw left-edge index (float)
    left_i = left_raw.astype(jnp.int32)
    frac = PHASE_GAIN * (phase - left_raw * BIN_WIDTH)     # bilinear split
    w_left = (1.0 - frac) * mag
    w_right = frac * mag
    # phase can round to exactly pi -> left_i == NBINS; keep the wrap guard
    lbin = jnp.where(left_i >= NBINS, left_i - NBINS, left_i)

    prow = prow_ref[...]                                   # (band_cells, band_rows)
    pcol = pcol_ref[...]                                   # (W, nCW)
    pooled = []
    for b in range(NBINS):
        m_l = lbin == b                                    # left-bin mask of bin b
        m_r = lbin == ((b - 1) % NBINS)                    # right-bin mask of bin b
        contrib = jnp.where(m_l, w_left, 0.0) + jnp.where(m_r, w_right, 0.0)
        pooled.append(jnp.dot(jnp.dot(prow, contrib, preferred_element_type=jnp.float32),
                              pcol, preferred_element_type=jnp.float32))
    # columns ordered (bin, cell-col); single lane-dense store
    out_ref[0] = jnp.concatenate(pooled, axis=1)           # (band_cells, NBINS*nCW)


def _block_l2hys_kernel(x_ref, o_ref):
    """L2-Hys normalization. Layout: (D, TR) = 36 block features on sublanes, blocks on lanes."""
    x = x_ref[...]
    inv1 = 1.0 / (jnp.sqrt(jnp.sum(x * x, axis=0, keepdims=True)) + 1e-10)   # (1, TR)
    t = jnp.minimum(x * inv1, 0.2)                                           # clamp(max=0.2)
    inv2 = 1.0 / (jnp.sqrt(jnp.sum(t * t, axis=0, keepdims=True)) + 1e-10)
    o_ref[...] = t * inv2


def hog_forward(im):
    B, C, H, W = im.shape
    assert H % CELL == 0 and W % CELL == 0
    nCH, nCW = H // CELL, W // CELL
    assert nCH >= BLOCK and nCW >= BLOCK

    # reflect padding (torch F.pad mode='reflect', pad=1); keep the original dtype
    # across the pallas_call boundary (cast to f32 inside the kernel).
    pad = jnp.pad(im, ((0, 0), (0, 0), (1, 1), (1, 1)), mode="reflect")
    W_pad = _round_up(W + 2, 128)
    pad = jnp.pad(pad, ((0, 0), (0, 0), (0, 0), (0, W_pad - (W + 2))))

    in_item = pad.dtype.itemsize
    band_cells = _pick_band_cells(nCH, C, W_pad, in_item)
    band_rows = band_cells * CELL
    n_bands = -(-nCH // band_cells)
    BH_pad = _round_up(band_rows + 2, 8)

    # restructure into per-band slabs (each band carries its own duplicated 1-row halo)
    # so BlockSpec tiling stays non-overlapping and auto-pipelined.
    total_rows = (n_bands - 1) * band_rows + BH_pad
    pad = jnp.pad(pad, ((0, 0), (0, 0), (0, total_rows - (H + 2)), (0, 0)))
    bands = jnp.stack([pad[:, :, k * band_rows:k * band_rows + BH_pad, :]
                       for k in range(n_bands)], axis=1)
    bands = bands.reshape(B * n_bands, C, BH_pad, W_pad)

    # cell pooling matrices; 1/(cellSize^2) folded into prow
    prow = ((jnp.arange(band_rows)[None, :] // CELL
             == jnp.arange(band_cells)[:, None]).astype(jnp.float32)
            * (1.0 / float(CELL * CELL)))
    pcol = (jnp.arange(W)[:, None] // CELL
            == jnp.arange(nCW)[None, :]).astype(jnp.float32)

    # explicit, per-generation scoped-VMEM limit: generous estimate of blocks +
    # live temporaries, capped at physical capacity minus headroom (v7x = 64 MiB;
    # v5e default scoped is only 16 MiB so always set it).
    block_bytes = (2 * C * BH_pad * W_pad * in_item      # double-buffered input band
                   + 2 * band_cells * band_rows * 4      # prow
                   + 2 * W * nCW * 4                     # pcol
                   + 2 * band_cells * NBINS * nCW * 4)   # output block
    temp_bytes = 20 * band_rows * W_pad * 4              # peak live (band_rows, W_pad) planes
    need = block_bytes + temp_bytes
    cap = _vmem_capacity_bytes()
    vmem_limit = int(min(cap - 8 * 1024 * 1024, max(2 * need, 32 * 1024 * 1024)))

    hist_flat = pl.pallas_call(
        partial(_hog_cells_kernel, C=C, band_rows=band_rows, W=W, W_pad=W_pad),
        out_shape=jax.ShapeDtypeStruct((B * n_bands, band_cells, NBINS * nCW), jnp.float32),
        grid=(B * n_bands,),
        in_specs=[
            pl.BlockSpec((1, C, BH_pad, W_pad), lambda g: (g, 0, 0, 0)),
            pl.BlockSpec((band_cells, band_rows), lambda g: (0, 0)),
            pl.BlockSpec((W, nCW), lambda g: (0, 0)),
        ],
        out_specs=pl.BlockSpec((1, band_cells, NBINS * nCW), lambda g: (g, 0, 0)),
        compiler_params=pltpu.CompilerParams(
            dimension_semantics=("parallel",),
            vmem_limit_bytes=vmem_limit,
        ),
    )(bands, prow, pcol)

    # (B, nCH, nCW, NBINS): kernel-1 output columns are ordered (bin, cell-col);
    # drop the padded cell rows of a ragged last band.
    hist = (hist_flat.reshape(B, n_bands * band_cells, NBINS, nCW)[:, :nCH]
            .transpose(0, 1, 3, 2))

    # unfold into overlapping blocks: blocks[b,i,j,u,v,p] = hist[b, i*s+u, j*s+v, p]
    stride = BLOCK // 2
    nBH = (nCH - BLOCK) // stride + 1
    nBW = (nCW - BLOCK) // stride + 1
    blocks = jnp.stack(
        [jnp.stack(
            [hist[:, u:u + stride * (nBH - 1) + 1:stride,
                     v:v + stride * (nBW - 1) + 1:stride, :]
             for v in range(BLOCK)], axis=3)
         for u in range(BLOCK)], axis=3)                   # (B, nBH, nBW, BLOCK, BLOCK, NBINS)

    R = B * nBH * nBW
    D = BLOCK * BLOCK * NBINS
    # transpose so the D=36 reduction sits on sublanes and blocks sit on lanes
    xT = blocks.reshape(R, D).T                            # (D, R)
    TR = min(4096, _round_up(R, 128))
    R_pad = _round_up(R, TR)
    xT = jnp.pad(xT, ((0, 0), (0, R_pad - R)))             # zero cols normalize to zero

    normedT = pl.pallas_call(
        _block_l2hys_kernel,
        out_shape=jax.ShapeDtypeStruct((D, R_pad), jnp.float32),
        grid=(R_pad // TR,),
        in_specs=[pl.BlockSpec((D, TR), lambda i: (0, i))],
        out_specs=pl.BlockSpec((D, TR), lambda i: (0, i)),
        compiler_params=pltpu.CompilerParams(dimension_semantics=("parallel",)),
    )(xT)

    out = normedT[:, :R].T.reshape(B, nBH, nBW, BLOCK, BLOCK, NBINS)[:, None]
    return out  # (B, 1, nBH, nBW, BLOCK, BLOCK, NBINS)


if __name__ == "__main__":
    key = jax.random.PRNGKey(0)
    # B=2, C=4, H=W=64  ->  4x4 cells of 16px, 3x3 overlapping 2x2 blocks
    x = jax.random.normal(key, (2, 4, 64, 64), dtype=jnp.float32)
    fn = jax.jit(hog_forward)
    out = jax.block_until_ready(fn(x))
    assert out.shape == (2, 1, 3, 3, 2, 2, 9), out.shape
    assert out.dtype == jnp.float32
    assert bool(jnp.isfinite(out).all())
    print("KERNEL_OK")
</pallas_src>

<mosaic_0001>
module attributes {stable_mosaic.version = 11 : i64} {
  func.func @_hog_cells_kernel(%arg0: i32, %arg1: memref<1x4x72x128xf32, #tpu.memory_space<vmem>>, %arg2: memref<4x64xf32, #tpu.memory_space<vmem>>, %arg3: memref<64x4xf32, #tpu.memory_space<vmem>>, %arg4: memref<1x4x36xf32, #tpu.memory_space<vmem>>) attributes {dimension_semantics = [#tpu.dimension_semantics<parallel>], iteration_bounds = array<i64: 2>, scalar_prefetch = 0 : i64, scratch_operands = 0 : i64, tpu.core_type = #tpu.core_type<tc>, window_params = [{transform_indices = @transform_0, window_bounds = array<i64: 1, 4, 72, 128>}, {pipeline_mode = #tpu.pipeline_mode<synchronous>, transform_indices = @transform_1, window_bounds = array<i64: 4, 64>}, {pipeline_mode = #tpu.pipeline_mode<synchronous>, transform_indices = @transform_2, window_bounds = array<i64: 64, 4>}, {transform_indices = @transform_3, window_bounds = array<i64: 1, 4, 36>}]} {
    %c0 = arith.constant 0 : index
    %c0_0 = arith.constant 0 : index
    %c0_1 = arith.constant 0 : index
    %c0_2 = arith.constant 0 : index
    %0 = vector.load %arg1[%c0, %c0_0, %c0_1, %c0_2] : memref<1x4x72x128xf32, #tpu.memory_space<vmem>>, vector<1x1x72x128xf32>
    %1 = vector.shape_cast %0 : vector<1x1x72x128xf32> to vector<72x128xf32>
    %2 = vector.extract_strided_slice %1 {offsets = [0, 0], sizes = [64, 128], strides = [1, 1]} : vector<72x128xf32> to vector<64x128xf32>
    %3 = vector.extract_strided_slice %1 {offsets = [1, 0], sizes = [64, 128], strides = [1, 1]} : vector<72x128xf32> to vector<64x128xf32>
    %4 = vector.extract_strided_slice %1 {offsets = [2, 0], sizes = [64, 128], strides = [1, 1]} : vector<72x128xf32> to vector<64x128xf32>
    %cst = arith.constant 2.000000e+00 : f32
    %5 = vector.broadcast %cst : f32 to vector<64x128xf32>
    %6 = arith.mulf %5, %3 : vector<64x128xf32>
    %7 = arith.addf %2, %6 : vector<64x128xf32>
    %8 = arith.addf %7, %4 : vector<64x128xf32>
    %9 = arith.subf %4, %2 : vector<64x128xf32>
    %c126_i32 = arith.constant 126 : i32
    %10 = tpu.dynamic_rotate %8 by %c126_i32 dim 1 : vector<64x128xf32>, i32 -> vector<64x128xf32>
    %c127_i32 = arith.constant 127 : i32
    %11 = tpu.dynamic_rotate %9 by %c127_i32 dim 1 : vector<64x128xf32>, i32 -> vector<64x128xf32>
    %c126_i32_3 = arith.constant 126 : i32
    %12 = tpu.dynamic_rotate %9 by %c126_i32_3 dim 1 : vector<64x128xf32>, i32 -> vector<64x128xf32>
    %13 = arith.subf %10, %8 : vector<64x128xf32>
    %14 = vector.extract_strided_slice %13 {offsets = [0, 0], sizes = [64, 64], strides = [1, 1]} : vector<64x128xf32> to vector<64x64xf32>
    %cst_4 = arith.constant 2.000000e+00 : f32
    %15 = vector.broadcast %cst_4 : f32 to vector<64x128xf32>
    %16 = arith.mulf %15, %11 : vector<64x128xf32>
    %17 = arith.addf %9, %16 : vector<64x128xf32>
    %18 = arith.addf %17, %12 : vector<64x128xf32>
    %19 = vector.extract_strided_slice %18 {offsets = [0, 0], sizes = [64, 64], strides = [1, 1]} : vector<64x128xf32> to vector<64x64xf32>
    %20 = arith.mulf %14, %14 : vector<64x64xf32>
    %21 = arith.mulf %19, %19 : vector<64x64xf32>
    %22 = arith.addf %20, %21 : vector<64x64xf32>
    %c0_5 = arith.constant 0 : index
    %c1 = arith.constant 1 : index
    %c0_6 = arith.constant 0 : index
    %c0_7 = arith.constant 0 : index
    %23 = vector.load %arg1[%c0_5, %c1, %c0_6, %c0_7] : memref<1x4x72x128xf32, #tpu.memory_space<vmem>>, vector<1x1x72x128xf32>
    %24 = vector.shape_cast %23 : vector<1x1x72x128xf32> to vector<72x128xf32>
    %25 = vector.extract_strided_slice %24 {offsets = [0, 0], sizes = [64, 128], strides = [1, 1]} : vector<72x128xf32> to vector<64x128xf32>
    %26 = vector.extract_strided_slice %24 {offsets = [1, 0], sizes = [64, 128], strides = [1, 1]} : vector<72x128xf32> to vector<64x128xf32>
    %27 = vector.extract_strided_slice %24 {offsets = [2, 0], sizes = [64, 128], strides = [1, 1]} : vector<72x128xf32> to vector<64x128xf32>
    %cst_8 = arith.constant 2.000000e+00 : f32
    %28 = vector.broadcast %cst_8 : f32 to vector<64x128xf32>
    %29 = arith.mulf %28, %26 : vector<64x128xf32>
    %30 = arith.addf %25, %29 : vector<64x128xf32>
    %31 = arith.addf %30, %27 : vector<64x128xf32>
    %32 = arith.subf %27, %25 : vector<64x128xf32>
    %c126_i32_9 = arith.constant 126 : i32
    %33 = tpu.dynamic_rotate %31 by %c126_i32_9 dim 1 : vector<64x128xf32>, i32 -> vector<64x128xf32>
    %c127_i32_10 = arith.constant 127 : i32
    %34 = tpu.dynamic_rotate %32 by %c127_i32_10 dim 1 : vector<64x128xf32>, i32 -> vector<64x128xf32>
    %c126_i32_11 = arith.constant 126 : i32
    %35 = tpu.dynamic_rotate %32 by %c126_i32_11 dim 1 : vector<64x128xf32>, i32 -> vector<64x128xf32>
    %36 = arith.subf %33, %31 : vector<64x128xf32>
    %37 = vector.extract_strided_slice %36 {offsets = [0, 0], sizes = [64, 64], strides = [1, 1]} : vector<64x128xf32> to vector<64x64xf32>
    %cst_12 = arith.constant 2.000000e+00 : f32
    %38 = vector.broadcast %cst_12 : f32 to vector<64x128xf32>
    %39 = arith.mulf %38, %34 : vector<64x128xf32>
    %40 = arith.addf %32, %39 : vector<64x128xf32>
    %41 = arith.addf %40, %35 : vector<64x128xf32>
    %42 = vector.extract_strided_slice %41 {offsets = [0, 0], sizes = [64, 64], strides = [1, 1]} : vector<64x128xf32> to vector<64x64xf32>
    %43 = arith.mulf %37, %37 : vector<64x64xf32>
    %44 = arith.mulf %42, %42 : vector<64x64xf32>
    %45 = arith.addf %43, %44 : vector<64x64xf32>
    %46 = arith.cmpf ogt, %45, %22 : vector<64x64xf32>
    %47 = arith.select %46, %45, %22 : vector<64x64xi1>, vector<64x64xf32>
    %48 = arith.select %46, %37, %14 : vector<64x64xi1>, vector<64x64xf32>
    %49 = arith.select %46, %42, %19 : vector<64x64xi1>, vector<64x64xf32>
    %c0_13 = arith.constant 0 : index
    %c2 = arith.constant 2 : index
    %c0_14 = arith.constant 0 : index
    %c0_15 = arith.constant 0 : index
    %50 = vector.load %arg1[%c0_13, %c2, %c0_14, %c0_15] : memref<1x4x72x128xf32, #tpu.memory_space<vmem>>, vector<1x1x72x128xf32>
    %51 = vector.shape_cast %50 : vector<1x1x72x128xf32> to vector<72x128xf32>
    %52 = vector.extract_strided_slice %51 {offsets = [0, 0], sizes = [64, 128], strides = [1, 1]} : vector<72x128xf32> to vector<64x128xf32>
    %53 = vector.extract_strided_slice %51 {offsets = [1, 0], sizes = [64, 128], strides = [1, 1]} : vector<72x128xf32> to vector<64x128xf32>
    %54 = vector.extract_strided_slice %51 {offsets = [2, 0], sizes = [64, 128], strides = [1, 1]} : vector<72x128xf32> to vector<64x128xf32>
    %cst_16 = arith.constant 2.000000e+00 : f32
    %55 = vector.broadcast %cst_16 : f32 to vector<64x128xf32>
    %56 = arith.mulf %55, %53 : vector<64x128xf32>
    %57 = arith.addf %52, %56 : vector<64x128xf32>
    %58 = arith.addf %57, %54 : vector<64x128xf32>
    %59 = arith.subf %54, %52 : vector<64x128xf32>
    %c126_i32_17 = arith.constant 126 : i32
    %60 = tpu.dynamic_rotate %58 by %c126_i32_17 dim 1 : vector<64x128xf32>, i32 -> vector<64x128xf32>
    %c127_i32_18 = arith.constant 127 : i32
    %61 = tpu.dynamic_rotate %59 by %c127_i32_18 dim 1 : vector<64x128xf32>, i32 -> vector<64x128xf32>
    %c126_i32_19 = arith.constant 126 : i32
    %62 = tpu.dynamic_rotate %59 by %c126_i32_19 dim 1 : vector<64x128xf32>, i32 -> vector<64x128xf32>
    %63 = arith.subf %60, %58 : vector<64x128xf32>
    %64 = vector.extract_strided_slice %63 {offsets = [0, 0], sizes = [64, 64], strides = [1, 1]} : vector<64x128xf32> to vector<64x64xf32>
    %cst_20 = arith.constant 2.000000e+00 : f32
    %65 = vector.broadcast %cst_20 : f32 to vector<64x128xf32>
    %66 = arith.mulf %65, %61 : vector<64x128xf32>
    %67 = arith.addf %59, %66 : vector<64x128xf32>
    %68 = arith.addf %67, %62 : vector<64x128xf32>
    %69 = vector.extract_strided_slice %68 {offsets = [0, 0], sizes = [64, 64], strides = [1, 1]} : vector<64x128xf32> to vector<64x64xf32>
    %70 = arith.mulf %64, %64 : vector<64x64xf32>
    %71 = arith.mulf %69, %69 : vector<64x64xf32>
    %72 = arith.addf %70, %71 : vector<64x64xf32>
    %73 = arith.cmpf ogt, %72, %47 : vector<64x64xf32>
    %74 = arith.select %73, %72, %47 : vector<64x64xi1>, vector<64x64xf32>
    %75 = arith.select %73, %64, %48 : vector<64x64xi1>, vector<64x64xf32>
    %76 = arith.select %73, %69, %49 : vector<64x64xi1>, vector<64x64xf32>
    %c0_21 = arith.constant 0 : index
    %c3 = arith.constant 3 : index
    %c0_22 = arith.constant 0 : index
    %c0_23 = arith.constant 0 : index
    %77 = vector.load %arg1[%c0_21, %c3, %c0_22, %c0_23] : memref<1x4x72x128xf32, #tpu.memory_space<vmem>>, vector<1x1x72x128xf32>
    %78 = vector.shape_cast %77 : vector<1x1x72x128xf32> to vector<72x128xf32>
    %79 = vector.extract_strided_slice %78 {offsets = [0, 0], sizes = [64, 128], strides = [1, 1]} : vector<72x128xf32> to vector<64x128xf32>
    %80 = vector.extract_strided_slice %78 {offsets = [1, 0], sizes = [64, 128], strides = [1, 1]} : vector<72x128xf32> to vector<64x128xf32>
    %81 = vector.extract_strided_slice %78 {offsets = [2, 0], sizes = [64, 128], strides = [1, 1]} : vector<72x128xf32> to vector<64x128xf32>
    %cst_24 = arith.constant 2.000000e+00 : f32
    %82 = vector.broadcast %cst_24 : f32 to vector<64x128xf32>
    %83 = arith.mulf %82, %80 : vector<64x128xf32>
    %84 = arith.addf %79, %83 : vector<64x128xf32>
    %85 = arith.addf %84, %81 : vector<64x128xf32>
    %86 = arith.subf %81, %79 : vector<64x128xf32>
    %c126_i32_25 = arith.constant 126 : i32
    %87 = tpu.dynamic_rotate %85 by %c126_i32_25 dim 1 : vector<64x128xf32>, i32 -> vector<64x128xf32>
    %c127_i32_26 = arith.constant 127 : i32
    %88 = tpu.dynamic_rotate %86 by %c127_i32_26 dim 1 : vector<64x128xf32>, i32 -> vector<64x128xf32>
    %c126_i32_27 = arith.constant 126 : i32
    %89 = tpu.dynamic_rotate %86 by %c126_i32_27 dim 1 : vector<64x128xf32>, i32 -> vector<64x128xf32>
    %90 = arith.subf %87, %85 : vector<64x128xf32>
    %91 = vector.extract_strided_slice %90 {offsets = [0, 0], sizes = [64, 64], strides = [1, 1]} : vector<64x128xf32> to vector<64x64xf32>
    %cst_28 = arith.constant 2.000000e+00 : f32
    %92 = vector.broadcast %cst_28 : f32 to vector<64x128xf32>
    %93 = arith.mulf %92, %88 : vector<64x128xf32>
    %94 = arith.addf %86, %93 : vector<64x128xf32>
    %95 = arith.addf %94, %89 : vector<64x128xf32>
    %96 = vector.extract_strided_slice %95 {offsets = [0, 0], sizes = [64, 64], strides = [1, 1]} : vector<64x128xf32> to vector<64x64xf32>
    %97 = arith.mulf %91, %91 : vector<64x64xf32>
    %98 = arith.mulf %96, %96 : vector<64x64xf32>
    %99 = arith.addf %97, %98 : vector<64x64xf32>
    %100 = arith.cmpf ogt, %99, %74 : vector<64x64xf32>
    %101 = arith.select %100, %99, %74 : vector<64x64xi1>, vector<64x64xf32>
    %102 = arith.select %100, %91, %75 : vector<64x64xi1>, vector<64x64xf32>
    %103 = arith.select %100, %96, %76 : vector<64x64xi1>, vector<64x64xf32>
    %104 = math.sqrt %101 : vector<64x64xf32>
    %105 = math.atan2 %103, %102 : vector<64x64xf32>
    %cst_29 = arith.constant 0.000000e+00 : f32
    %106 = vector.broadcast %cst_29 : f32 to vector<64x64xf32>
    %107 = arith.cmpf olt, %105, %106 : vector<64x64xf32>
    %cst_30 = arith.constant 3.14159274 : f32
    %108 = vector.broadcast %cst_30 : f32 to vector<64x64xf32>
    %109 = arith.addf %105, %108 : vector<64x64xf32>
    %110 = arith.select %107, %109, %105 : vector<64x64xi1>, vector<64x64xf32>
    %cst_31 = arith.constant 2.86478901 : f32
    %111 = vector.broadcast %cst_31 : f32 to vector<64x64xf32>
    %112 = arith.mulf %111, %110 : vector<64x64xf32>
    %113 = math.floor %112 : vector<64x64xf32>
    %114 = arith.fptosi %113 : vector<64x64xf32> to vector<64x64xi32>
    %cst_32 = arith.constant 0.34906584 : f32
    %115 = vector.broadcast %cst_32 : f32 to vector<64x64xf32>
    %116 = arith.mulf %113, %115 : vector<64x64xf32>
    %117 = arith.subf %110, %116 : vector<64x64xf32>
    %cst_33 = arith.constant 2.86478901 : f32
    %118 = vector.broadcast %cst_33 : f32 to vector<64x64xf32>
    %119 = arith.mulf %118, %117 : vector<64x64xf32>
    %cst_34 = arith.constant 1.000000e+00 : f32
    %120 = vector.broadcast %cst_34 : f32 to vector<64x64xf32>
    %121 = arith.subf %120, %119 : vector<64x64xf32>
    %122 = arith.mulf %121, %104 : vector<64x64xf32>
    %123 = arith.mulf %119, %104 : vector<64x64xf32>
    %c9_i32 = arith.constant 9 : i32
    %124 = vector.broadcast %c9_i32 : i32 to vector<64x64xi32>
    %125 = arith.cmpi sge, %114, %124 : vector<64x64xi32>
    %c9_i32_35 = arith.constant 9 : i32
    %126 = vector.broadcast %c9_i32_35 : i32 to vector<64x64xi32>
    %127 = arith.subi %114, %126 : vector<64x64xi32>
    %128 = arith.select %125, %127, %114 : vector<64x64xi1>, vector<64x64xi32>
    %c0_36 = arith.constant 0 : index
    %c0_37 = arith.constant 0 : index
    %129 = vector.load %arg2[%c0_36, %c0_37] : memref<4x64xf32, #tpu.memory_space<vmem>>, vector<4x64xf32>
    %c0_38 = arith.constant 0 : index
    %c0_39 = arith.constant 0 : index
    %130 = vector.load %arg3[%c0_38, %c0_39] : memref<64x4xf32, #tpu.memory_space<vmem>>, vector<64x4xf32>
    %c0_i32 = arith.constant 0 : i32
    %131 = vector.broadcast %c0_i32 : i32 to vector<64x64xi32>
    %132 = arith.cmpi eq, %128, %131 : vector<64x64xi32>
    %c8_i32 = arith.constant 8 : i32
    %133 = vector.broadcast %c8_i32 : i32 to vector<64x64xi32>
    %134 = arith.cmpi eq, %128, %133 : vector<64x64xi32>
    %cst_40 = arith.constant 0.000000e+00 : f32
    %135 = vector.broadcast %cst_40 : f32 to vector<64x64xf32>
    %136 = arith.select %132, %122, %135 : vector<64x64xi1>, vector<64x64xf32>
    %cst_41 = arith.constant 0.000000e+00 : f32
    %137 = vector.broadcast %cst_41 : f32 to vector<64x64xf32>
    %138 = arith.select %134, %123, %137 : vector<64x64xi1>, vector<64x64xf32>
    %139 = arith.addf %136, %138 : vector<64x64xf32>
    %cst_42 = arith.constant dense<0.000000e+00> : vector<4x64xf32>
    %140 = tpu.matmul %129, %139, %cst_42 {dimension_numbers = #tpu.dot_dimension_numbers<[1], [0], [0], [1], [0, 0, 1, 1], [], []>} : vector<4x64xf32>, vector<64x64xf32>, vector<4x64xf32> -> vector<4x64xf32>
    %cst_43 = arith.constant dense<0.000000e+00> : vector<4x4xf32>
    %141 = tpu.matmul %140, %130, %cst_43 {dimension_numbers = #tpu.dot_dimension_numbers<[1], [0], [0], [1], [0, 0, 1, 1], [], []>} : vector<4x64xf32>, vector<64x4xf32>, vector<4x4xf32> -> vector<4x4xf32>
    %c1_i32 = arith.constant 1 : i32
    %142 = vector.broadcast %c1_i32 : i32 to vector<64x64xi32>
    %143 = arith.cmpi eq, %128, %142 : vector<64x64xi32>
    %c0_i32_44 = arith.constant 0 : i32
    %144 = vector.broadcast %c0_i32_44 : i32 to vector<64x64xi32>
    %145 = arith.cmpi eq, %128, %144 : vector<64x64xi32>
    %cst_45 = arith.constant 0.000000e+00 : f32
    %146 = vector.broadcast %cst_45 : f32 to vector<64x64xf32>
    %147 = arith.select %143, %122, %146 : vector<64x64xi1>, vector<64x64xf32>
    %cst_46 = arith.constant 0.000000e+00 : f32
    %148 = vector.broadcast %cst_46 : f32 to vector<64x64xf32>
    %149 = arith.select %145, %123, %148 : vector<64x64xi1>, vector<64x64xf32>
    %150 = arith.addf %147, %149 : vector<64x64xf32>
    %cst_47 = arith.constant dense<0.000000e+00> : vector<4x64xf32>
    %151 = tpu.matmul %129, %150, %cst_47 {dimension_numbers = #tpu.dot_dimension_numbers<[1], [0], [0], [1], [0, 0, 1, 1], [], []>} : vector<4x64xf32>, vector<64x64xf32>, vector<4x64xf32> -> vector<4x64xf32>
    %cst_48 = arith.constant dense<0.000000e+00> : vector<4x4xf32>
    %152 = tpu.matmul %151, %130, %cst_48 {dimension_numbers = #tpu.dot_dimension_numbers<[1], [0], [0], [1], [0, 0, 1, 1], [], []>} : vector<4x64xf32>, vector<64x4xf32>, vector<4x4xf32> -> vector<4x4xf32>
    %c2_i32 = arith.constant 2 : i32
    %153 = vector.broadcast %c2_i32 : i32 to vector<64x64xi32>
    %154 = arith.cmpi eq, %128, %153 : vector<64x64xi32>
    %c1_i32_49 = arith.constant 1 : i32
    %155 = vector.broadcast %c1_i32_49 : i32 to vector<64x64xi32>
    %156 = arith.cmpi eq, %128, %155 : vector<64x64xi32>
    %cst_50 = arith.constant 0.000000e+00 : f32
    %157 = vector.broadcast %cst_50 : f32 to vector<64x64xf32>
    %158 = arith.select %154, %122, %157 : vector<64x64xi1>, vector<64x64xf32>
    %cst_51 = arith.constant 0.000000e+00 : f32
    %159 = vector.broadcast %cst_51 : f32 to vector<64x64xf32>
    %160 = arith.select %156, %123, %159 : vector<64x64xi1>, vector<64x64xf32>
    %161 = arith.addf %158, %160 : vector<64x64xf32>
    %cst_52 = arith.constant dense<0.000000e+00> : vector<4x64xf32>
    %162 = tpu.matmul %129, %161, %cst_52 {dimension_numbers = #tpu.dot_dimension_numbers<[1], [0], [0], [1], [0, 0, 1, 1], [], []>} : vector<4x64xf32>, vector<64x64xf32>, vector<4x64xf32> -> vector<4x64xf32>
    %cst_53 = arith.constant dense<0.000000e+00> : vector<4x4xf32>
    %163 = tpu.matmul %162, %130, %cst_53 {dimension_numbers = #tpu.dot_dimension_numbers<[1], [0], [0], [1], [0, 0, 1, 1], [], []>} : vector<4x64xf32>, vector<64x4xf32>, vector<4x4xf32> -> vector<4x4xf32>
    %c3_i32 = arith.constant 3 : i32
    %164 = vector.broadcast %c3_i32 : i32 to vector<64x64xi32>
    %165 = arith.cmpi eq, %128, %164 : vector<64x64xi32>
    %c2_i32_54 = arith.constant 2 : i32
    %166 = vector.broadcast %c2_i32_54 : i32 to vector<64x64xi32>
    %167 = arith.cmpi eq, %128, %166 : vector<64x64xi32>
    %cst_55 = arith.constant 0.000000e+00 : f32
    %168 = vector.broadcast %cst_55 : f32 to vector<64x64xf32>
    %169 = arith.select %165, %122, %168 : vector<64x64xi1>, vector<64x64xf32>
    %cst_56 = arith.constant 0.000000e+00 : f32
    %170 = vector.broadcast %cst_56 : f32 to vector<64x64xf32>
    %171 = arith.select %167, %123, %170 : vector<64x64xi1>, vector<64x64xf32>
    %172 = arith.addf %169, %171 : vector<64x64xf32>
    %cst_57 = arith.constant dense<0.000000e+00> : vector<4x64xf32>
    %173 = tpu.matmul %129, %172, %cst_57 {dimension_numbers = #tpu.dot_dimension_numbers<[1], [0], [0], [1], [0, 0, 1, 1], [], []>} : vector<4x64xf32>, vector<64x64xf32>, vector<4x64xf32> -> vector<4x64xf32>
    %cst_58 = arith.constant dense<0.000000e+00> : vector<4x4xf32>
    %174 = tpu.matmul %173, %130, %cst_58 {dimension_numbers = #tpu.dot_dimension_numbers<[1], [0], [0], [1], [0, 0, 1, 1], [], []>} : vector<4x64xf32>, vector<64x4xf32>, vector<4x4xf32> -> vector<4x4xf32>
    %c4_i32 = arith.constant 4 : i32
    %175 = vector.broadcast %c4_i32 : i32 to vector<64x64xi32>
    %176 = arith.cmpi eq, %128, %175 : vector<64x64xi32>
    %c3_i32_59 = arith.constant 3 : i32
    %177 = vector.broadcast %c3_i32_59 : i32 to vector<64x64xi32>
    %178 = arith.cmpi eq, %128, %177 : vector<64x64xi32>
    %cst_60 = arith.constant 0.000000e+00 : f32
    %179 = vector.broadcast %cst_60 : f32 to vector<64x64xf32>
    %180 = arith.select %176, %122, %179 : vector<64x64xi1>, vector<64x64xf32>
    %cst_61 = arith.constant 0.000000e+00 : f32
    %181 = vector.broadcast %cst_61 : f32 to vector<64x64xf32>
    %182 = arith.select %178, %123, %181 : vector<64x64xi1>, vector<64x64xf32>
    %183 = arith.addf %180, %182 : vector<64x64xf32>
    %cst_62 = arith.constant dense<0.000000e+00> : vector<4x64xf32>
    %184 = tpu.matmul %129, %183, %cst_62 {dimension_numbers = #tpu.dot_dimension_numbers<[1], [0], [0], [1], [0, 0, 1, 1], [], []>} : vector<4x64xf32>, vector<64x64xf32>, vector<4x64xf32> -> vector<4x64xf32>
    %cst_63 = arith.constant dense<0.000000e+00> : vector<4x4xf32>
    %185 = tpu.matmul %184, %130, %cst_63 {dimension_numbers = #tpu.dot_dimension_numbers<[1], [0], [0], [1], [0, 0, 1, 1], [], []>} : vector<4x64xf32>, vector<64x4xf32>, vector<4x4xf32> -> vector<4x4xf32>
    %c5_i32 = arith.constant 5 : i32
    %186 = vector.broadcast %c5_i32 : i32 to vector<64x64xi32>
    %187 = arith.cmpi eq, %128, %186 : vector<64x64xi32>
    %c4_i32_64 = arith.constant 4 : i32
    %188 = vector.broadcast %c4_i32_64 : i32 to vector<64x64xi32>
    %189 = arith.cmpi eq, %128, %188 : vector<64x64xi32>
    %cst_65 = arith.constant 0.000000e+00 : f32
    %190 = vector.broadcast %cst_65 : f32 to vector<64x64xf32>
    %191 = arith.select %187, %122, %190 : vector<64x64xi1>, vector<64x64xf32>
    %cst_66 = arith.constant 0.000000e+00 : f32
    %192 = vector.broadcast %cst_66 : f32 to vector<64x64xf32>
    %193 = arith.select %189, %123, %192 : vector<64x64xi1>, vector<64x64xf32>
    %194 = arith.addf %191, %193 : vector<64x64xf32>
    %cst_67 = arith.constant dense<0.000000e+00> : vector<4x64xf32>
    %195 = tpu.matmul %129, %194, %cst_67 {dimension_numbers = #tpu.dot_dimension_numbers<[1], [0], [0], [1], [0, 0, 1, 1], [], []>} : vector<4x64xf32>, vector<64x64xf32>, vector<4x64xf32> -> vector<4x64xf32>
    %cst_68 = arith.constant dense<0.000000e+00> : vector<4x4xf32>
    %196 = tpu.matmul %195, %130, %cst_68 {dimension_numbers = #tpu.dot_dimension_numbers<[1], [0], [0], [1], [0, 0, 1, 1], [], []>} : vector<4x64xf32>, vector<64x4xf32>, vector<4x4xf32> -> vector<4x4xf32>
    %c6_i32 = arith.constant 6 : i32
    %197 = vector.broadcast %c6_i32 : i32 to vector<64x64xi32>
    %198 = arith.cmpi eq, %128, %197 : vector<64x64xi32>
    %c5_i32_69 = arith.constant 5 : i32
    %199 = vector.broadcast %c5_i32_69 : i32 to vector<64x64xi32>
    %200 = arith.cmpi eq, %128, %199 : vector<64x64xi32>
    %cst_70 = arith.constant 0.000000e+00 : f32
    %201 = vector.broadcast %cst_70 : f32 to vector<64x64xf32>
    %202 = arith.select %198, %122, %201 : vector<64x64xi1>, vector<64x64xf32>
    %cst_71 = arith.constant 0.000000e+00 : f32
    %203 = vector.broadcast %cst_71 : f32 to vector<64x64xf32>
    %204 = arith.select %200, %123, %203 : vector<64x64xi1>, vector<64x64xf32>
    %205 = arith.addf %202, %204 : vector<64x64xf32>
    %cst_72 = arith.constant dense<0.000000e+00> : vector<4x64xf32>
    %206 = tpu.matmul %129, %205, %cst_72 {dimension_numbers = #tpu.dot_dimension_numbers<[1], [0], [0], [1], [0, 0, 1, 1], [], []>} : vector<4x64xf32>, vector<64x64xf32>, vector<4x64xf32> -> vector<4x64xf32>
    %cst_73 = arith.constant dense<0.000000e+00> : vector<4x4xf32>
    %207 = tpu.matmul %206, %130, %cst_73 {dimension_numbers = #tpu.dot_dimension_numbers<[1], [0], [0], [1], [0, 0, 1, 1], [], []>} : vector<4x64xf32>, vector<64x4xf32>, vector<4x4xf32> -> vector<4x4xf32>
    %c7_i32 = arith.constant 7 : i32
    %208 = vector.broadcast %c7_i32 : i32 to vector<64x64xi32>
    %209 = arith.cmpi eq, %128, %208 : vector<64x64xi32>
    %c6_i32_74 = arith.constant 6 : i32
    %210 = vector.broadcast %c6_i32_74 : i32 to vector<64x64xi32>
    %211 = arith.cmpi eq, %128, %210 : vector<64x64xi32>
    %cst_75 = arith.constant 0.000000e+00 : f32
    %212 = vector.broadcast %cst_75 : f32 to vector<64x64xf32>
    %213 = arith.select %209, %122, %212 : vector<64x64xi1>, vector<64x64xf32>
    %cst_76 = arith.constant 0.000000e+00 : f32
    %214 = vector.broadcast %cst_76 : f32 to vector<64x64xf32>
    %215 = arith.select %211, %123, %214 : vector<64x64xi1>, vector<64x64xf32>
    %216 = arith.addf %213, %215 : vector<64x64xf32>
    %cst_77 = arith.constant dense<0.000000e+00> : vector<4x64xf32>
    %217 = tpu.matmul %129, %216, %cst_77 {dimension_numbers = #tpu.dot_dimension_numbers<[1], [0], [0], [1], [0, 0, 1, 1], [], []>} : vector<4x64xf32>, vector<64x64xf32>, vector<4x64xf32> -> vector<4x64xf32>
    %cst_78 = arith.constant dense<0.000000e+00> : vector<4x4xf32>
    %218 = tpu.matmul %217, %130, %cst_78 {dimension_numbers = #tpu.dot_dimension_numbers<[1], [0], [0], [1], [0, 0, 1, 1], [], []>} : vector<4x64xf32>, vector<64x4xf32>, vector<4x4xf32> -> vector<4x4xf32>
    %c8_i32_79 = arith.constant 8 : i32
    %219 = vector.broadcast %c8_i32_79 : i32 to vector<64x64xi32>
    %220 = arith.cmpi eq, %128, %219 : vector<64x64xi32>
    %c7_i32_80 = arith.constant 7 : i32
    %221 = vector.broadcast %c7_i32_80 : i32 to vector<64x64xi32>
    %222 = arith.cmpi eq, %128, %221 : vector<64x64xi32>
    %cst_81 = arith.constant 0.000000e+00 : f32
    %223 = vector.broadcast %cst_81 : f32 to vector<64x64xf32>
    %224 = arith.select %220, %122, %223 : vector<64x64xi1>, vector<64x64xf32>
    %cst_82 = arith.constant 0.000000e+00 : f32
    %225 = vector.broadcast %cst_82 : f32 to vector<64x64xf32>
    %226 = arith.select %222, %123, %225 : vector<64x64xi1>, vector<64x64xf32>
    %227 = arith.addf %224, %226 : vector<64x64xf32>
    %cst_83 = arith.constant dense<0.000000e+00> : vector<4x64xf32>
    %228 = tpu.matmul %129, %227, %cst_83 {dimension_numbers = #tpu.dot_dimension_numbers<[1], [0], [0], [1], [0, 0, 1, 1], [], []>} : vector<4x64xf32>, vector<64x64xf32>, vector<4x64xf32> -> vector<4x64xf32>
    %cst_84 = arith.constant dense<0.000000e+00> : vector<4x4xf32>
    %229 = tpu.matmul %228, %130, %cst_84 {dimension_numbers = #tpu.dot_dimension_numbers<[1], [0], [0], [1], [0, 0, 1, 1], [], []>} : vector<4x64xf32>, vector<64x4xf32>, vector<4x4xf32> -> vector<4x4xf32>
    %230 = tpu.concatenate %141, %152, %163, %174, %185, %196, %207, %218, %229 in 1 : vector<4x4xf32>, vector<4x4xf32>, vector<4x4xf32>, vector<4x4xf32>, vector<4x4xf32>, vector<4x4xf32>, vector<4x4xf32>, vector<4x4xf32>, vector<4x4xf32> -> vector<4x36xf32>
    %c0_85 = arith.constant 0 : index
    %c0_86 = arith.constant 0 : index
    %c0_87 = arith.constant 0 : index
    %231 = vector.load %arg4[%c0_85, %c0_86, %c0_87] : memref<1x4x36xf32, #tpu.memory_space<vmem>>, vector<1x4x36xf32>
    %232 = vector.shape_cast %231 : vector<1x4x36xf32> to vector<4x36xf32>
    %233 = vector.shape_cast %230 : vector<4x36xf32> to vector<1x4x36xf32>
    tpu.vector_store %arg4[%c0_85, %c0_86, %c0_87], %233 {strides = array<i32>} : memref<1x4x36xf32, #tpu.memory_space<vmem>>, vector<1x4x36xf32>,
    return
  }
  func.func @transform_0(%arg0: i32) -> (i32, i32, i32, i32) {
    %c0_i32 = arith.constant 0 : i32
    %c0_i32_0 = arith.constant 0 : i32
    %c0_i32_1 = arith.constant 0 : i32
    %c0_i32_2 = arith.constant 0 : i32
    return %arg0, %c0_i32, %c0_i32_0, %c0_i32_1 : i32, i32, i32, i32
  }
  func.func @transform_1(%arg0: i32) -> (i32, i32) {
    %c0_i32 = arith.constant 0 : i32
    %c0_i32_0 = arith.constant 0 : i32
    %c0_i32_1 = arith.constant 0 : i32
    return %c0_i32, %c0_i32_0 : i32, i32
  }
  func.func @transform_2(%arg0: i32) -> (i32, i32) {
    %c0_i32 = arith.constant 0 : i32
    %c0_i32_0 = arith.constant 0 : i32
    %c0_i32_1 = arith.constant 0 : i32
    return %c0_i32, %c0_i32_0 : i32, i32
  }
  func.func @transform_3(%arg0: i32) -> (i32, i32, i32) {
    %c0_i32 = arith.constant 0 : i32
    %c0_i32_0 = arith.constant 0 : i32
    %c0_i32_1 = arith.constant 0 : i32
    return %arg0, %c0_i32, %c0_i32_0 : i32, i32, i32
  }
}

module attributes {stable_mosaic.version = 11 : i64} {
  func.func @_block_l2hys_kernel(%arg0: i32, %arg1: memref<36x128xf32, #tpu.memory_space<vmem>>, %arg2: memref<36x128xf32, #tpu.memory_space<vmem>>) attributes {dimension_semantics = [#tpu.dimension_semantics<parallel>], iteration_bounds = array<i64: 1>, scalar_prefetch = 0 : i64, scratch_operands = 0 : i64, tpu.core_type = #tpu.core_type<tc>, window_params = [{transform_indices = @transform_0, window_bounds = array<i64: 36, 128>}, {transform_indices = @transform_1, window_bounds = array<i64: 36, 128>}]} {
    %c0 = arith.constant 0 : index
    %c0_0 = arith.constant 0 : index
    %0 = vector.load %arg1[%c0, %c0_0] : memref<36x128xf32, #tpu.memory_space<vmem>>, vector<36x128xf32>
    %1 = arith.mulf %0, %0 : vector<36x128xf32>
    %cst = arith.constant dense<0.000000e+00> : vector<128xf32>
    %2 = vector.multi_reduction <add>, %1, %cst [0] : vector<36x128xf32> to vector<128xf32>
    %3 = vector.shape_cast %2 : vector<128xf32> to vector<1x128xf32>
    %4 = math.sqrt %3 : vector<1x128xf32>
    %cst_1 = arith.constant 1.000000e-10 : f32
    %5 = vector.broadcast %cst_1 : f32 to vector<1x128xf32>
    %6 = arith.addf %4, %5 : vector<1x128xf32>
    %cst_2 = arith.constant 1.000000e+00 : f32
    %7 = vector.broadcast %cst_2 : f32 to vector<1x128xf32>
    %8 = arith.divf %7, %6 : vector<1x128xf32>
    %9 = vector.broadcast %8 : vector<1x128xf32> to vector<36x128xf32>
    %10 = arith.mulf %0, %9 : vector<36x128xf32>
    %cst_3 = arith.constant 2.000000e-01 : f32
    %11 = vector.broadcast %cst_3 : f32 to vector<36x128xf32>
    %12 = arith.minimumf %10, %11 : vector<36x128xf32>
    %13 = arith.mulf %12, %12 : vector<36x128xf32>
    %cst_4 = arith.constant dense<0.000000e+00> : vector<128xf32>
    %14 = vector.multi_reduction <add>, %13, %cst_4 [0] : vector<36x128xf32> to vector<128xf32>
    %15 = vector.shape_cast %14 : vector<128xf32> to vector<1x128xf32>
    %16 = math.sqrt %15 : vector<1x128xf32>
    %cst_5 = arith.constant 1.000000e-10 : f32
    %17 = vector.broadcast %cst_5 : f32 to vector<1x128xf32>
    %18 = arith.addf %16, %17 : vector<1x128xf32>
    %cst_6 = arith.constant 1.000000e+00 : f32
    %19 = vector.broadcast %cst_6 : f32 to vector<1x128xf32>
    %20 = arith.divf %19, %18 : vector<1x128xf32>
    %21 = vector.broadcast %20 : vector<1x128xf32> to vector<36x128xf32>
    %22 = arith.mulf %12, %21 : vector<36x128xf32>
    %c0_7 = arith.constant 0 : index
    %c0_8 = arith.constant 0 : index
    %23 = vector.load %arg2[%c0_7, %c0_8] : memref<36x128xf32, #tpu.memory_space<vmem>>, vector<36x128xf32>
    tpu.vector_store %arg2[%c0_7, %c0_8], %22 {strides = array<i32>} : memref<36x128xf32, #tpu.memory_space<vmem>>, vector<36x128xf32>,
    return
  }
  func.func @transform_0(%arg0: i32) -> (i32, i32) {
    %c0_i32 = arith.constant 0 : i32
    %c0_i32_0 = arith.constant 0 : i32
    return %c0_i32, %arg0 : i32, i32
  }
  func.func @transform_1(%arg0: i32) -> (i32, i32) {
    %c0_i32 = arith.constant 0 : i32
    %c0_i32_0 = arith.constant 0 : i32
    return %c0_i32, %arg0 : i32, i32
  }
}

</mosaic_0001>

<llo_original>
// kernel: hog_forward.3
$region0: #{hog_forward.3}
  #allocation0 [shape = 'u32[]', space=smem, size = 0x4, offset = 0x4, fixed_abs, tag = 'smem constant byte address 0x4 - core index']
  #allocation1 [shape = 'u32[144,128]{1,0:T(1,128)}', space=vmem, size = 0x12000, scoped, tag = 'internal scratch']
  %s0 = inlined_call_operand.vmem [shape: f32[36,128], index: 0, kind: input, shape index: {}]
  %s1 = inlined_call_operand.vmem [shape: f32[36,128], index: 1, kind: output, shape index: {}]
  %s2 = sld [smem:[#allocation0]]
  $region14: #{hog_forward.3} parent=0
    _
  %s4 = ssub.s32 1, %s2
  %s5 = scalar_select 0, %s4, %s2
  // Predicated region
  $region2: #{hog_forward.3} parent=0 // pred_check
    _
  $region3: #{hog_forward.3} parent=0 // pred_check_branch
    %7 = sbr.rel (0) target = $region5
  $region4: #{hog_forward.3} parent=0 // pred_region
    _
  $region5: #{hog_forward.3} parent=0 // pred_fallthru
    _
  %v8 = vld [vmem:[%s0] sm:$0xff]
  %v9 = vld [vmem:[%s0 + $0x8] sm:$0xff]
  %v10 = vld [vmem:[%s0 + $0x10] sm:$0xff]
  %v11 = vld [vmem:[%s0 + $0x18] sm:$0xff]
  %v12 = vld [vmem:[%s0 + $0x20] sm:$0xf]
  %v13 = vmul.f32 %v8, %v8
  %v14 = vmul.f32 %v9, %v9
  %v15 = vmul.f32 %v10, %v10
  %v16 = vmul.f32 %v11, %v11
  %v17 = vmul.f32 %v12, %v12
  %v18 = vadd.f32 %v13, %v14
  %v19 = vadd.f32 %v18, %v15
  %v20 = vadd.f32 %v19, %v16
  %vm21 = vcmask 1043456
  %v22 = vsel %vm21, %v17, 0.0
  %v23 = vadd.f32 %v20, %v22
  %v24 = vrot.slane %v23, 4
  %v25 = vadd.f32 %v23, %v24
  %v26 = vrot.slane %v25, 2
  %v27 = vadd.f32 %v25, %v26
  %v28 = vrot.slane %v27, 1
  %v29 = vadd.f32 %v27, %v28
  %v30 = vrsqrt.pop %v29
  %v31 = vmul.f32 %v29, %v30
  %vm32 = vcmp.eq.f32.partialorder %v29, inf
  %v33 = vsel %vm32, %v29, %v31
  %vm34 = vcmp.eq.f32.partialorder %v29, 0.0
  %v35 = vand.u32 %v29, 2147483648
  %v36 = vsel %vm34, %v35, %v33
  %v37 = vadd.f32 %v36, 1e-10
  %v38 = vrcp.pop %v37
  %v39 = vmul.f32 1.0, %v38
  %v40 = vmul.f32 %v8, %v39
  %v41 = vmul.f32 %v9, %v39
  %v42 = vmul.f32 %v10, %v39
  %v43 = vmul.f32 %v11, %v39
  %v44 = vmul.f32 %v12, %v39
  %v45 = vmin.f32 %v40, 0.2
  %v46 = vmin.f32 %v41, 0.2
  %v47 = vmin.f32 %v42, 0.2
  %v48 = vmin.f32 %v43, 0.2
  %v49 = vmin.f32 %v44, 0.2
  %v50 = vmul.f32 %v45, %v45
  %v51 = vmul.f32 %v46, %v46
  %v52 = vmul.f32 %v47, %v47
  %v53 = vmul.f32 %v48, %v48
  %v54 = vmul.f32 %v49, %v49
  %v55 = vadd.f32 %v50, %v51
  %v56 = vadd.f32 %v55, %v52
  %v57 = vadd.f32 %v56, %v53
  %v58 = vsel %vm21, %v54, 0.0
  %v59 = vadd.f32 %v57, %v58
  %v60 = vrot.slane %v59, 4
  %v61 = vadd.f32 %v59, %v60
  %v62 = vrot.slane %v61, 2
  %v63 = vadd.f32 %v61, %v62
  %v64 = vrot.slane %v63, 1
  %v65 = vadd.f32 %v63, %v64
  %v66 = vrsqrt.pop %v65
  %v67 = vmul.f32 %v65, %v66
  %vm68 = vcmp.eq.f32.partialorder %v65, inf
  %v69 = vsel %vm68, %v65, %v67
  %vm70 = vcmp.eq.f32.partialorder %v65, 0.0
  %v71 = vand.u32 %v65, 2147483648
  %v72 = vsel %vm70, %v71, %v69
  %v73 = vadd.f32 %v72, 1e-10
  %v74 = vrcp.pop %v73
  %v75 = vmul.f32 1.0, %v74
  %v76 = vmul.f32 %v45, %v75
  %v77 = vmul.f32 %v46, %v75
  %v78 = vmul.f32 %v47, %v75
  %v79 = vmul.f32 %v48, %v75
  %v80 = vmul.f32 %v49, %v75
  %81 = vst [vmem:[%s1] sm:$0xff] %v76
  %82 = vst [vmem:[%s1 + $0x8] sm:$0xff] %v77
  %83 = vst [vmem:[%s1 + $0x10] sm:$0xff] %v78
  %84 = vst [vmem:[%s1 + $0x18] sm:$0xff] %v79
  %85 = vst [vmem:[%s1 + $0x20] sm:$0xf] %v80
  // Predicated region
  $region6: #{hog_forward.3} parent=0 // pred_check
    _
  $region7: #{hog_forward.3} parent=0 // pred_check_branch
    %87 = sbr.rel (0) target = $region9
  $region8: #{hog_forward.3} parent=0 // pred_region
    _
  $region9: #{hog_forward.3} parent=0 // pred_fallthru
    _
  // Predicated region
  $region10: #{hog_forward.3} parent=0 // pred_check
    _
  $region11: #{hog_forward.3} parent=0 // pred_check_branch
    %89 = sbr.rel (0) target = $region13
  $region12: #{hog_forward.3} parent=0 // pred_region
    _
  $region13: #{hog_forward.3} parent=0 // pred_fallthru
    _

// kernel: hog_forward.2
$region0: #{hog_forward.2}
  #allocation0 [shape = 'u32[]', space=smem, size = 0x4, offset = 0x4, fixed_abs, tag = 'smem constant byte address 0x4 - core index']
  #allocation1 [shape = 'u32[144,128]{1,0:T(1,128)}', space=vmem, size = 0x12000, scoped, tag = 'internal scratch']
  %s0 = inlined_call_operand.vmem [shape: f32[2,4,72,128], index: 0, kind: input, shape index: {}]
  %s1 = inlined_call_operand.vmem [shape: f32[4,64], index: 1, kind: input, shape index: {}]
  %s2 = inlined_call_operand.vmem [shape: f32[64,4], index: 2, kind: input, shape index: {}]
  %s3 = inlined_call_operand.vmem [shape: f32[2,4,36], index: 3, kind: output, shape index: {}]
  %s4 = sld [smem:[#allocation0]]
  $region45: #{hog_forward.2} parent=0
    _
  %s6 = ssub.s32 1, %s4
  %s7 = scalar_select 0, %s6, %s4
  loop: start=0, step=1, limit=4
  $region2: #{hog_forward.2} parent=0 // loop_pre_header
    _
  $region3: #{hog_forward.2} parent=0 // loop_header
    %s9 = sphi 0, %s13
    %p10 = scmp.ge.s32.totalorder %s9, 4
    %s19 = sphi 0, %s21
    %s22 = sphi 0, %s19
    %s23 = sphi 0, %s22
    %s39 = sphi 0, %s23
    %s43 = sphi 0, %s43
    %s45 = sphi 0, %s43
    %s46 = sphi 0, %s45
    %s60 = sphi 0, %s46
    %s64 = sphi 0, %s64
    %s66 = sphi 0, %s64
    %s67 = sphi 0, %s66
    %s81 = sphi 0, %s67
    %s87 = sphi 0, %s89
    %s90 = sphi 0, %s87
    %s91 = sphi 0, %s90
    %s107 = sphi 0, %s91
  $region4: #{hog_forward.2} parent=0 // loop_header_branch
    %12 = sbr.rel (%p10) target = $region8
  $region5: #{hog_forward.2} parent=0 // loop_body
    %s14 = ssub.s32 %s9, 1
    %s15 = ssub.s32 %s9, 2
    %s16 = sadd.s32 %s9, 1
    %s17 = ssub.s32 %s9, %s16
    %p18 = scmp.eq.s32.totalorder %s17, 0
    %s20 = sadd.s32 %s19, 1
    %s21 = scalar_select %p18, %s19, %s20
    %p24 = pneg %p18
    %p25 = scmp.eq.s32.totalorder %s9, 1
    %p26 = por %p24, %p25
    %p27 = scmp.ne.s32.totalorder %s19, %s22
    %p28 = scmp.eq.s32.totalorder %s9, 0
    %p29 = por %p27, %p28
    %p30 = scmp.ne.s32.totalorder %s19, %s22
    %p31 = scmp.eq.s32.totalorder %s14, 1
    %p32 = por %p30, %p31
    %p33 = scmp.ne.s32.totalorder %s22, %s23
    %p34 = scmp.eq.s32.totalorder %s14, 0
    %p35 = por %p33, %p34
    %p36 = scmp.ne.s32.totalorder %s22, %s23
    %p37 = scmp.eq.s32.totalorder %s15, 1
    %p38 = por %p36, %p37
    %p40 = scmp.ne.s32.totalorder %s23, %s39
    %p41 = scmp.eq.s32.totalorder %s15, 0
    %p42 = por %p40, %p41
    %s44 = sadd.s32 %s43, 1
    %p47 = scmp.eq.s32.totalorder %s9, 1
    %p48 = scmp.ne.s32.totalorder %s43, %s45
    %p49 = scmp.eq.s32.totalorder %s9, 0
    %p50 = por %p48, %p49
    %p51 = scmp.ne.s32.totalorder %s43, %s45
    %p52 = scmp.eq.s32.totalorder %s14, 1
    %p53 = por %p51, %p52
    %p54 = scmp.ne.s32.totalorder %s45, %s46
    %p55 = scmp.eq.s32.totalorder %s14, 0
    %p56 = por %p54, %p55
    %p57 = scmp.ne.s32.totalorder %s45, %s46
    %p58 = scmp.eq.s32.totalorder %s15, 1
    %p59 = por %p57, %p58
    %p61 = scmp.ne.s32.totalorder %s46, %s60
    %p62 = scmp.eq.s32.totalorder %s15, 0
    %p63 = por %p61, %p62
    %s65 = sadd.s32 %s64, 1
    %p68 = scmp.eq.s32.totalorder %s9, 1
    %p69 = scmp.ne.s32.totalorder %s64, %s66
    %p70 = scmp.eq.s32.totalorder %s9, 0
    %p71 = por %p69, %p70
    %p72 = scmp.ne.s32.totalorder %s64, %s66
    %p73 = scmp.eq.s32.totalorder %s14, 1
    %p74 = por %p72, %p73
    %p75 = scmp.ne.s32.totalorder %s66, %s67
    %p76 = scmp.eq.s32.totalorder %s14, 0
    %p77 = por %p75, %p76
    %p78 = scmp.ne.s32.totalorder %s66, %s67
    %p79 = scmp.eq.s32.totalorder %s15, 1
    %p80 = por %p78, %p79
    %p82 = scmp.ne.s32.totalorder %s67, %s81
    %p83 = scmp.eq.s32.totalorder %s15, 0
    %p84 = por %p82, %p83
    %s85 = ssub.s32 %s9, %s16
    %p86 = scmp.eq.s32.totalorder %s85, 0
    %s88 = sadd.s32 %s87, 1
    %s89 = scalar_select %p86, %s87, %s88
    %p92 = pneg %p86
    %p93 = scmp.eq.s32.totalorder %s9, 1
    %p94 = por %p92, %p93
    %p95 = scmp.ne.s32.totalorder %s87, %s90
    %p96 = scmp.eq.s32.totalorder %s9, 0
    %p97 = por %p95, %p96
    %p98 = scmp.ne.s32.totalorder %s87, %s90
    %p99 = scmp.eq.s32.totalorder %s14, 1
    %p100 = por %p98, %p99
    %p101 = scmp.ne.s32.totalorder %s90, %s91
    %p102 = scmp.eq.s32.totalorder %s14, 0
    %p103 = por %p101, %p102
    %p104 = scmp.ne.s32.totalorder %s90, %s91
    %p105 = scmp.eq.s32.totalorder %s15, 1
    %p106 = por %p104, %p105
    %p108 = scmp.ne.s32.totalorder %s91, %s107
    %p109 = scmp.eq.s32.totalorder %s15, 0
    %p110 = por %p108, %p109
    %p111 = scmp.le.s32.totalorder 1, %s9
    %p112 = scmp.lt.s32.totalorder %s9, 3
    %p113 = pnand %p111, %p112
    %p114 = pneg %p113
    // Predicated region
    $region9: #{hog_forward.2} parent=5 // pred_check
      _
    $region10: #{hog_forward.2} parent=5 // pred_check_branch
      %116 = sbr.rel (%p113) target = $region12
    $region11: #{hog_forward.2} parent=5 // pred_region
      %s117 = ssub.s32 %s9, 1
      // Predicated region
      $region13: #{hog_forward.2} parent=11 // pred_check
        %p118 = pneg %p56
      $region14: #{hog_forward.2} parent=11 // pred_check_branch
        %120 = sbr.rel (%p118) target = $region16
      $region15: #{hog_forward.2} parent=11 // pred_region
        _
      $region16: #{hog_forward.2} parent=11 // pred_fallthru
        _
      // Predicated region
      $region17: #{hog_forward.2} parent=11 // pred_check
        %p121 = pneg %p77
      $region18: #{hog_forward.2} parent=11 // pred_check_branch
        %123 = sbr.rel (%p121) target = $region20
      $region19: #{hog_forward.2} parent=11 // pred_region
        _
      $region20: #{hog_forward.2} parent=11 // pred_fallthru
        _
    $region12: #{hog_forward.2} parent=5 // pred_fallthru
      _
    %p124 = scmp.lt.s32.totalorder %s9, 2
    // Predicated region
    $region21: #{hog_forward.2} parent=5 // pred_check
      %p125 = pneg %p124
    $region22: #{hog_forward.2} parent=5 // pred_check_branch
      %127 = sbr.rel (%p125) target = $region24
    $region23: #{hog_forward.2} parent=5 // pred_region
      // Predicated region
      $region25: #{hog_forward.2} parent=23 // pred_check
        %p128 = pneg %p29
      $region26: #{hog_forward.2} parent=23 // pred_check_branch
        %130 = sbr.rel (%p128) target = $region28
      $region27: #{hog_forward.2} parent=23 // pred_region
        %p131 = scmp.lt.s32.totalorder %s9, 1
        %s132 = scalar_select %p131, %s9, 1
        %s133 = smul.addr %s132, 36
        %s134 = smul.addr %s133, 8
        %s135 = scalar_lea.vmem %s0, %s134
      $region28: #{hog_forward.2} parent=23 // pred_fallthru
        _
    $region24: #{hog_forward.2} parent=5 // pred_fallthru
      _
    %p136 = scmp.le.s32.totalorder 1, %s9
    %p137 = scmp.lt.s32.totalorder %s9, 3
    %p138 = pnand %p136, %p137
    %p139 = pneg %p138
    // Predicated region
    $region29: #{hog_forward.2} parent=5 // pred_check
      _
    $region30: #{hog_forward.2} parent=5 // pred_check_branch
      %141 = sbr.rel (%p138) target = $region32
    $region31: #{hog_forward.2} parent=5 // pred_region
      %s142 = ssub.s32 %s9, 1
      %p143 = scmp.lt.s32.totalorder %s14, 1
      %s144 = scalar_select %p143, %s14, 1
      %s145 = smul.addr %s144, 36
      %s146 = smul.addr %s145, 8
      %s147 = scalar_lea.vmem %s0, %s146
      %p148 = pneg %p35
      %p149 = pneg %p32
      %p150 = pneg %p56
      %p151 = pneg %p53
      %p152 = pneg %p77
      %p153 = pneg %p74
      %p154 = pneg %p103
      %p155 = pneg %p100
      %p156 = scmp.lt.s32.totalorder %s14, 1
      %s157 = scalar_select %p156, %s14, 1
      %s158 = smul.addr %s157, 4
      %s159 = scalar_lea.vmem %s3, %s158
      %p160 = scmp.lt.s32.totalorder %s14, 1
      %s161 = scalar_select %p160, %s14, 1
      %s162 = smul.addr %s161, 36
      %s163 = smul.addr %s162, 8
      %s164 = scalar_lea.vmem %s0, %s163
      %p165 = scmp.lt.s32.totalorder %s14, 1
      %s166 = scalar_select %p165, %s14, 1
      %s167 = smul.addr %s166, 4
      %s168 = scalar_lea.vmem %s3, %s167
      %v169 = vld [vmem:[%s164] sm:$0xff]
      %v170 = vld [vmem:[%s164 + $0x8] sm:$0xff]
      %v171 = vld [vmem:[%s164 + $0x10] sm:$0xff]
      %v172 = vld [vmem:[%s164 + $0x18] sm:$0xff]
      %v173 = vld [vmem:[%s164 + $0x20] sm:$0xff]
      %v174 = vld [vmem:[%s164 + $0x28] sm:$0xff]
      %v175 = vld [vmem:[%s164 + $0x30] sm:$0xff]
      %v176 = vld [vmem:[%s164 + $0x38] sm:$0xff]
      %v177 = vld [vmem:[%s164 + $0x40] sm:$0xff]
      %v178 = vmul.f32 %v169, 2.0
      %v179 = vmul.f32 %v170, 2.0
      %v180 = vmul.f32 %v171, 2.0
      %v181 = vmul.f32 %v172, 2.0
      %v182 = vmul.f32 %v173, 2.0
      %v183 = vmul.f32 %v174, 2.0
      %v184 = vmul.f32 %v175, 2.0
      %v185 = vmul.f32 %v176, 2.0
      %v186 = vmul.f32 %v177, 2.0
      %vm196 = vcmask 1046528
      %v197 = vrot.slane %v178, 1
      %v198 = vrot.slane %v179, 1
      %v199 = vsel %vm196, %v197, %v198
      %v200 = vrot.slane %v180, 1
      %v201 = vsel %vm196, %v198, %v200
      %v202 = vrot.slane %v181, 1
      %v203 = vsel %vm196, %v200, %v202
      %v204 = vrot.slane %v182, 1
      %v205 = vsel %vm196, %v202, %v204
      %v206 = vrot.slane %v183, 1
      %v207 = vsel %vm196, %v204, %v206
      %v208 = vrot.slane %v184, 1
      %v209 = vsel %vm196, %v206, %v208
      %v210 = vrot.slane %v185, 1
      %v211 = vsel %vm196, %v208, %v210
      %v212 = vrot.slane %v186, 1
      %v213 = vsel %vm196, %v210, %v212
      %v222 = vadd.f32 %v169, %v199
      %v223 = vadd.f32 %v170, %v201
      %v224 = vadd.f32 %v171, %v203
      %v225 = vadd.f32 %v172, %v205
      %v226 = vadd.f32 %v173, %v207
      %v227 = vadd.f32 %v174, %v209
      %v228 = vadd.f32 %v175, %v211
      %v229 = vadd.f32 %v176, %v213
      %vm239 = vcmask 1045504
      %v240 = vrot.slane %v169, 2
      %v241 = vrot.slane %v170, 2
      %v242 = vsel %vm239, %v240, %v241
      %v243 = vrot.slane %v171, 2
      %v244 = vsel %vm239, %v241, %v243
      %v245 = vrot.slane %v172, 2
      %v246 = vsel %vm239, %v243, %v245
      %v247 = vrot.slane %v173, 2
      %v248 = vsel %vm239, %v245, %v247
      %v249 = vrot.slane %v174, 2
      %v250 = vsel %vm239, %v247, %v249
      %v251 = vrot.slane %v175, 2
      %v252 = vsel %vm239, %v249, %v251
      %v253 = vrot.slane %v176, 2
      %v254 = vsel %vm239, %v251, %v253
      %v255 = vrot.slane %v177, 2
      %v256 = vsel %vm239, %v253, %v255
      %v265 = vadd.f32 %v222, %v242
      %v266 = vadd.f32 %v223, %v244
      %v267 = vadd.f32 %v224, %v246
      %v268 = vadd.f32 %v225, %v248
      %v269 = vadd.f32 %v226, %v250
      %v270 = vadd.f32 %v227, %v252
      %v271 = vadd.f32 %v228, %v254
      %v272 = vadd.f32 %v229, %v256
      %vm273 = vcmask 1041408
      %v274 = vrot.slane %v169, 6
      %v275 = vrot.slane %v170, 6
      %v276 = vsel %vm273, %v274, %v275
      %v277 = vrot.slane %v171, 6
      %v278 = vsel %vm273, %v275, %v277
      %v279 = vrot.slane %v172, 6
      %v280 = vsel %vm273, %v277, %v279
      %v281 = vrot.slane %v173, 6
      %v282 = vsel %vm273, %v279, %v281
      %v283 = vrot.slane %v174, 6
      %v284 = vsel %vm273, %v281, %v283
      %v285 = vrot.slane %v175, 6
      %v286 = vsel %vm273, %v283, %v285
      %v287 = vrot.slane %v176, 6
      %v288 = vsel %vm273, %v285, %v287
      %v298 = vsub.f32 %v169, %v274
      %v299 = vsub.f32 %v170, %v276
      %v300 = vsub.f32 %v171, %v278
      %v301 = vsub.f32 %v172, %v280
      %v302 = vsub.f32 %v173, %v282
      %v303 = vsub.f32 %v174, %v284
      %v304 = vsub.f32 %v175, %v286
      %v305 = vsub.f32 %v176, %v288
      %v306 = vsub.f32 %v177, %v287
      %307 = vrot.lane.b32.xlu0 %v265, 126
      %v308 = vpop.permute.xlu0 %307
      %309 = vrot.lane.b32.xlu0 %v266, 126
      %v310 = vpop.permute.xlu0 %309
      %311 = vrot.lane.b32.xlu0 %v267, 126
      %v312 = vpop.permute.xlu0 %311
      %313 = vrot.lane.b32.xlu0 %v268, 126
      %v314 = vpop.permute.xlu0 %313
      %315 = vrot.lane.b32.xlu0 %v269, 126
      %v316 = vpop.permute.xlu0 %315
      %317 = vrot.lane.b32.xlu0 %v270, 126
      %v318 = vpop.permute.xlu0 %317
      %319 = vrot.lane.b32.xlu0 %v271, 126
      %v320 = vpop.permute.xlu0 %319
      %321 = vrot.lane.b32.xlu0 %v272, 126
      %v322 = vpop.permute.xlu0 %321
      %v332 = vrot.slane %v298, 2
      %v333 = vrot.slane %v299, 2
      %v334 = vsel %vm239, %v332, %v333
      %v335 = vrot.slane %v300, 2
      %v336 = vsel %vm239, %v333, %v335
      %v337 = vrot.slane %v301, 2
      %v338 = vsel %vm239, %v335, %v337
      %v339 = vrot.slane %v302, 2
      %v340 = vsel %vm239, %v337, %v339
      %v341 = vrot.slane %v303, 2
      %v342 = vsel %vm239, %v339, %v341
      %v343 = vrot.slane %v304, 2
      %v344 = vsel %vm239, %v341, %v343
      %v345 = vrot.slane %v305, 2
      %v346 = vsel %vm239, %v343, %v345
      %v347 = vrot.slane %v306, 2
      %v348 = vsel %vm239, %v345, %v347
      %357 = vrot.lane.b32.xlu0 %v334, 127
      %v358 = vpop.permute.xlu0 %357
      %359 = vrot.lane.b32.xlu0 %v336, 127
      %v360 = vpop.permute.xlu0 %359
      %361 = vrot.lane.b32.xlu0 %v338, 127
      %v362 = vpop.permute.xlu0 %361
      %363 = vrot.lane.b32.xlu0 %v340, 127
      %v364 = vpop.permute.xlu0 %363
      %365 = vrot.lane.b32.xlu0 %v342, 127
      %v366 = vpop.permute.xlu0 %365
      %367 = vrot.lane.b32.xlu0 %v344, 127
      %v368 = vpop.permute.xlu0 %367
      %369 = vrot.lane.b32.xlu0 %v346, 127
      %v370 = vpop.permute.xlu0 %369
      %371 = vrot.lane.b32.xlu0 %v348, 127
      %v372 = vpop.permute.xlu0 %371
      %373 = vrot.lane.b32.xlu0 %v334, 126
      %v374 = vpop.permute.xlu0 %373
      %375 = vrot.lane.b32.xlu0 %v336, 126
      %v376 = vpop.permute.xlu0 %375
      %377 = vrot.lane.b32.xlu0 %v338, 126
      %v378 = vpop.permute.xlu0 %377
      %379 = vrot.lane.b32.xlu0 %v340, 126
      %v380 = vpop.permute.xlu0 %379
      %381 = vrot.lane.b32.xlu0 %v342, 126
      %v382 = vpop.permute.xlu0 %381
      %383 = vrot.lane.b32.xlu0 %v344, 126
      %v384 = vpop.permute.xlu0 %383
      %385 = vrot.lane.b32.xlu0 %v346, 126
      %v386 = vpop.permute.xlu0 %385
      %387 = vrot.lane.b32.xlu0 %v348, 126
      %v388 = vpop.permute.xlu0 %387
      %v389 = vsub.f32 %v308, %v265
      %v390 = vsub.f32 %v310, %v266
      %v391 = vsub.f32 %v312, %v267
      %v392 = vsub.f32 %v314, %v268
      %v393 = vsub.f32 %v316, %v269
      %v394 = vsub.f32 %v318, %v270
      %v395 = vsub.f32 %v320, %v271
      %v396 = vsub.f32 %v322, %v272
      %v397 = vmul.f32 %v358, 2.0
      %v398 = vmul.f32 %v360, 2.0
      %v399 = vmul.f32 %v362, 2.0
      %v400 = vmul.f32 %v364, 2.0
      %v401 = vmul.f32 %v366, 2.0
      %v402 = vmul.f32 %v368, 2.0
      %v403 = vmul.f32 %v370, 2.0
      %v404 = vmul.f32 %v372, 2.0
      %v413 = vrot.slane %v397, 6
      %v414 = vrot.slane %v398, 6
      %v415 = vsel %vm273, %v413, %v414
      %v416 = vrot.slane %v399, 6
      %v417 = vsel %vm273, %v414, %v416
      %v418 = vrot.slane %v400, 6
      %v419 = vsel %vm273, %v416, %v418
      %v420 = vrot.slane %v401, 6
      %v421 = vsel %vm273, %v418, %v420
      %v422 = vrot.slane %v402, 6
      %v423 = vsel %vm273, %v420, %v422
      %v424 = vrot.slane %v403, 6
      %v425 = vsel %vm273, %v422, %v424
      %v426 = vrot.slane %v404, 6
      %v427 = vsel %vm273, %v424, %v426
      %v437 = vadd.f32 %v298, %v413
      %v438 = vadd.f32 %v299, %v415
      %v439 = vadd.f32 %v300, %v417
      %v440 = vadd.f32 %v301, %v419
      %v441 = vadd.f32 %v302, %v421
      %v442 = vadd.f32 %v303, %v423
      %v443 = vadd.f32 %v304, %v425
      %v444 = vadd.f32 %v305, %v427
      %v445 = vadd.f32 %v306, %v426
      %v454 = vrot.slane %v374, 6
      %v455 = vrot.slane %v376, 6
      %v456 = vsel %vm273, %v454, %v455
      %v457 = vrot.slane %v378, 6
      %v458 = vsel %vm273, %v455, %v457
      %v459 = vrot.slane %v380, 6
      %v460 = vsel %vm273, %v457, %v459
      %v461 = vrot.slane %v382, 6
      %v462 = vsel %vm273, %v459, %v461
      %v463 = vrot.slane %v384, 6
      %v464 = vsel %vm273, %v461, %v463
      %v465 = vrot.slane %v386, 6
      %v466 = vsel %vm273, %v463, %v465
      %v467 = vrot.slane %v388, 6
      %v468 = vsel %vm273, %v465, %v467
      %v478 = vadd.f32 %v437, %v454
      %v479 = vadd.f32 %v438, %v456
      %v480 = vadd.f32 %v439, %v458
      %v481 = vadd.f32 %v440, %v460
      %v482 = vadd.f32 %v441, %v462
      %v483 = vadd.f32 %v442, %v464
      %v484 = vadd.f32 %v443, %v466
      %v485 = vadd.f32 %v444, %v468
      %v486 = vadd.f32 %v445, %v467
      %v487 = vmul.f32 %v389, %v389
      %v488 = vmul.f32 %v390, %v390
      %v489 = vmul.f32 %v391, %v391
      %v490 = vmul.f32 %v392, %v392
      %v491 = vmul.f32 %v393, %v393
      %v492 = vmul.f32 %v394, %v394
      %v493 = vmul.f32 %v395, %v395
      %v494 = vmul.f32 %v396, %v396
      %v495 = vmul.f32 %v478, %v478
      %v496 = vmul.f32 %v479, %v479
      %v497 = vmul.f32 %v480, %v480
      %v498 = vmul.f32 %v481, %v481
      %v499 = vmul.f32 %v482, %v482
      %v500 = vmul.f32 %v483, %v483
      %v501 = vmul.f32 %v484, %v484
      %v502 = vmul.f32 %v485, %v485
      %v503 = vmul.f32 %v486, %v486
      %v513 = vrot.slane %v495, 2
      %v514 = vrot.slane %v496, 2
      %v515 = vsel %vm239, %v513, %v514
      %v516 = vrot.slane %v497, 2
      %v517 = vsel %vm239, %v514, %v516
      %v518 = vrot.slane %v498, 2
      %v519 = vsel %vm239, %v516, %v518
      %v520 = vrot.slane %v499, 2
      %v521 = vsel %vm239, %v518, %v520
      %v522 = vrot.slane %v500, 2
      %v523 = vsel %vm239, %v520, %v522
      %v524 = vrot.slane %v501, 2
      %v525 = vsel %vm239, %v522, %v524
      %v526 = vrot.slane %v502, 2
      %v527 = vsel %vm239, %v524, %v526
      %v528 = vrot.slane %v503, 2
      %v529 = vsel %vm239, %v526, %v528
      %v538 = vadd.f32 %v487, %v515
      %v539 = vadd.f32 %v488, %v517
      %v540 = vadd.f32 %v489, %v519
      %v541 = vadd.f32 %v490, %v521
      %v542 = vadd.f32 %v491, %v523
      %v543 = vadd.f32 %v492, %v525
      %v544 = vadd.f32 %v493, %v527
      %v545 = vadd.f32 %v494, %v529
      %s546 = scalar_lea.vmem %s164, 72
      %v547 = vld [vmem:[%s546] sm:$0xff]
      %v548 = vld [vmem:[%s546 + $0x8] sm:$0xff]
      %v549 = vld [vmem:[%s546 + $0x10] sm:$0xff]
      %v550 = vld [vmem:[%s546 + $0x18] sm:$0xff]
      %v551 = vld [vmem:[%s546 + $0x20] sm:$0xff]
      %v552 = vld [vmem:[%s546 + $0x28] sm:$0xff]
      %v553 = vld [vmem:[%s546 + $0x30] sm:$0xff]
      %v554 = vld [vmem:[%s546 + $0x38] sm:$0xff]
      %v555 = vld [vmem:[%s546 + $0x40] sm:$0xff]
      %v556 = vmul.f32 %v547, 2.0
      %v557 = vmul.f32 %v548, 2.0
      %v558 = vmul.f32 %v549, 2.0
      %v559 = vmul.f32 %v550, 2.0
      %v560 = vmul.f32 %v551, 2.0
      %v561 = vmul.f32 %v552, 2.0
      %v562 = vmul.f32 %v553, 2.0
      %v563 = vmul.f32 %v554, 2.0
      %v564 = vmul.f32 %v555, 2.0
      %v574 = vrot.slane %v556, 1
      %v575 = vrot.slane %v557, 1
      %v576 = vsel %vm196, %v574, %v575
      %v577 = vrot.slane %v558, 1
      %v578 = vsel %vm196, %v575, %v577
      %v579 = vrot.slane %v559, 1
      %v580 = vsel %vm196, %v577, %v579
      %v581 = vrot.slane %v560, 1
      %v582 = vsel %vm196, %v579, %v581
      %v583 = vrot.slane %v561, 1
      %v584 = vsel %vm196, %v581, %v583
      %v585 = vrot.slane %v562, 1
      %v586 = vsel %vm196, %v583, %v585
      %v587 = vrot.slane %v563, 1
      %v588 = vsel %vm196, %v585, %v587
      %v589 = vrot.slane %v564, 1
      %v590 = vsel %vm196, %v587, %v589
      %v599 = vadd.f32 %v547, %v576
      %v600 = vadd.f32 %v548, %v578
      %v601 = vadd.f32 %v549, %v580
      %v602 = vadd.f32 %v550, %v582
      %v603 = vadd.f32 %v551, %v584
      %v604 = vadd.f32 %v552, %v586
      %v605 = vadd.f32 %v553, %v588
      %v606 = vadd.f32 %v554, %v590
      %v616 = vrot.slane %v547, 2
      %v617 = vrot.slane %v548, 2
      %v618 = vsel %vm239, %v616, %v617
      %v619 = vrot.slane %v549, 2
      %v620 = vsel %vm239, %v617, %v619
      %v621 = vrot.slane %v550, 2
      %v622 = vsel %vm239, %v619, %v621
      %v623 = vrot.slane %v551, 2
      %v624 = vsel %vm239, %v621, %v623
      %v625 = vrot.slane %v552, 2
      %v626 = vsel %vm239, %v623, %v625
      %v627 = vrot.slane %v553, 2
      %v628 = vsel %vm239, %v625, %v627
      %v629 = vrot.slane %v554, 2
      %v630 = vsel %vm239, %v627, %v629
      %v631 = vrot.slane %v555, 2
      %v632 = vsel %vm239, %v629, %v631
      %v641 = vadd.f32 %v599, %v618
      %v642 = vadd.f32 %v600, %v620
      %v643 = vadd.f32 %v601, %v622
      %v644 = vadd.f32 %v602, %v624
      %v645 = vadd.f32 %v603, %v626
      %v646 = vadd.f32 %v604, %v628
      %v647 = vadd.f32 %v605, %v630
      %v648 = vadd.f32 %v606, %v632
      %v649 = vrot.slane %v547, 6
      %v650 = vrot.slane %v548, 6
      %v651 = vsel %vm273, %v649, %v650
      %v652 = vrot.slane %v549, 6
      %v653 = vsel %vm273, %v650, %v652
      %v654 = vrot.slane %v550, 6
      %v655 = vsel %vm273, %v652, %v654
      %v656 = vrot.slane %v551, 6
      %v657 = vsel %vm273, %v654, %v656
      %v658 = vrot.slane %v552, 6
      %v659 = vsel %vm273, %v656, %v658
      %v660 = vrot.slane %v553, 6
      %v661 = vsel %vm273, %v658, %v660
      %v662 = vrot.slane %v554, 6
      %v663 = vsel %vm273, %v660, %v662
      %v673 = vsub.f32 %v547, %v649
      %v674 = vsub.f32 %v548, %v651
      %v675 = vsub.f32 %v549, %v653
      %v676 = vsub.f32 %v550, %v655
      %v677 = vsub.f32 %v551, %v657
      %v678 = vsub.f32 %v552, %v659
      %v679 = vsub.f32 %v553, %v661
      %v680 = vsub.f32 %v554, %v663
      %v681 = vsub.f32 %v555, %v662
      %682 = vrot.lane.b32.xlu0 %v641, 126
      %v683 = vpop.permute.xlu0 %682
      %684 = vrot.lane.b32.xlu0 %v642, 126
      %v685 = vpop.permute.xlu0 %684
      %686 = vrot.lane.b32.xlu0 %v643, 126
      %v687 = vpop.permute.xlu0 %686
      %688 = vrot.lane.b32.xlu0 %v644, 126
      %v689 = vpop.permute.xlu0 %688
      %690 = vrot.lane.b32.xlu0 %v645, 126
      %v691 = vpop.permute.xlu0 %690
      %692 = vrot.lane.b32.xlu0 %v646, 126
      %v693 = vpop.permute.xlu0 %692
      %694 = vrot.lane.b32.xlu0 %v647, 126
      %v695 = vpop.permute.xlu0 %694
      %696 = vrot.lane.b32.xlu0 %v648, 126
      %v697 = vpop.permute.xlu0 %696
      %v707 = vrot.slane %v673, 2
      %v708 = vrot.slane %v674, 2
      %v709 = vsel %vm239, %v707, %v708
      %v710 = vrot.slane %v675, 2
      %v711 = vsel %vm239, %v708, %v710
      %v712 = vrot.slane %v676, 2
      %v713 = vsel %vm239, %v710, %v712
      %v714 = vrot.slane %v677, 2
      %v715 = vsel %vm239, %v712, %v714
      %v716 = vrot.slane %v678, 2
      %v717 = vsel %vm239, %v714, %v716
      %v718 = vrot.slane %v679, 2
      %v719 = vsel %vm239, %v716, %v718
      %v720 = vrot.slane %v680, 2
      %v721 = vsel %vm239, %v718, %v720
      %v722 = vrot.slane %v681, 2
      %v723 = vsel %vm239, %v720, %v722
      %732 = vrot.lane.b32.xlu0 %v709, 127
      %v733 = vpop.permute.xlu0 %732
      %734 = vrot.lane.b32.xlu0 %v711, 127
      %v735 = vpop.permute.xlu0 %734
      %736 = vrot.lane.b32.xlu0 %v713, 127
      %v737 = vpop.permute.xlu0 %736
      %738 = vrot.lane.b32.xlu0 %v715, 127
      %v739 = vpop.permute.xlu0 %738
      %740 = vrot.lane.b32.xlu0 %v717, 127
      %v741 = vpop.permute.xlu0 %740
      %742 = vrot.lane.b32.xlu0 %v719, 127
      %v743 = vpop.permute.xlu0 %742
      %744 = vrot.lane.b32.xlu0 %v721, 127
      %v745 = vpop.permute.xlu0 %744
      %746 = vrot.lane.b32.xlu0 %v723, 127
      %v747 = vpop.permute.xlu0 %746
      %748 = vrot.lane.b32.xlu0 %v709, 126
      %v749 = vpop.permute.xlu0 %748
      %750 = vrot.lane.b32.xlu0 %v711, 126
      %v751 = vpop.permute.xlu0 %750
      %752 = vrot.lane.b32.xlu0 %v713, 126
      %v753 = vpop.permute.xlu0 %752
      %754 = vrot.lane.b32.xlu0 %v715, 126
      %v755 = vpop.permute.xlu0 %754
      %756 = vrot.lane.b32.xlu0 %v717, 126
      %v757 = vpop.permute.xlu0 %756
      %758 = vrot.lane.b32.xlu0 %v719, 126
      %v759 = vpop.permute.xlu0 %758
      %760 = vrot.lane.b32.xlu0 %v721, 126
      %v761 = vpop.permute.xlu0 %760
      %762 = vrot.lane.b32.xlu0 %v723, 126
      %v763 = vpop.permute.xlu0 %762
      %v764 = vsub.f32 %v683, %v641
      %v765 = vsub.f32 %v685, %v642
      %v766 = vsub.f32 %v687, %v643
      %v767 = vsub.f32 %v689, %v644
      %v768 = vsub.f32 %v691, %v645
      %v769 = vsub.f32 %v693, %v646
      %v770 = vsub.f32 %v695, %v647
      %v771 = vsub.f32 %v697, %v648
      %v772 = vmul.f32 %v733, 2.0
      %v773 = vmul.f32 %v735, 2.0
      %v774 = vmul.f32 %v737, 2.0
      %v775 = vmul.f32 %v739, 2.0
      %v776 = vmul.f32 %v741, 2.0
      %v777 = vmul.f32 %v743, 2.0
      %v778 = vmul.f32 %v745, 2.0
      %v779 = vmul.f32 %v747, 2.0
      %v788 = vrot.slane %v772, 6
      %v789 = vrot.slane %v773, 6
      %v790 = vsel %vm273, %v788, %v789
      %v791 = vrot.slane %v774, 6
      %v792 = vsel %vm273, %v789, %v791
      %v793 = vrot.slane %v775, 6
      %v794 = vsel %vm273, %v791, %v793
      %v795 = vrot.slane %v776, 6
      %v796 = vsel %vm273, %v793, %v795
      %v797 = vrot.slane %v777, 6
      %v798 = vsel %vm273, %v795, %v797
      %v799 = vrot.slane %v778, 6
      %v800 = vsel %vm273, %v797, %v799
      %v801 = vrot.slane %v779, 6
      %v802 = vsel %vm273, %v799, %v801
      %v812 = vadd.f32 %v673, %v788
      %v813 = vadd.f32 %v674, %v790
      %v814 = vadd.f32 %v675, %v792
      %v815 = vadd.f32 %v676, %v794
      %v816 = vadd.f32 %v677, %v796
      %v817 = vadd.f32 %v678, %v798
      %v818 = vadd.f32 %v679, %v800
      %v819 = vadd.f32 %v680, %v802
      %v820 = vadd.f32 %v681, %v801
      %v829 = vrot.slane %v749, 6
      %v830 = vrot.slane %v751, 6
      %v831 = vsel %vm273, %v829, %v830
      %v832 = vrot.slane %v753, 6
      %v833 = vsel %vm273, %v830, %v832
      %v834 = vrot.slane %v755, 6
      %v835 = vsel %vm273, %v832, %v834
      %v836 = vrot.slane %v757, 6
      %v837 = vsel %vm273, %v834, %v836
      %v838 = vrot.slane %v759, 6
      %v839 = vsel %vm273, %v836, %v838
      %v840 = vrot.slane %v761, 6
      %v841 = vsel %vm273, %v838, %v840
      %v842 = vrot.slane %v763, 6
      %v843 = vsel %vm273, %v840, %v842
      %v853 = vadd.f32 %v812, %v829
      %v854 = vadd.f32 %v813, %v831
      %v855 = vadd.f32 %v814, %v833
      %v856 = vadd.f32 %v815, %v835
      %v857 = vadd.f32 %v816, %v837
      %v858 = vadd.f32 %v817, %v839
      %v859 = vadd.f32 %v818, %v841
      %v860 = vadd.f32 %v819, %v843
      %v861 = vadd.f32 %v820, %v842
      %v862 = vmul.f32 %v764, %v764
      %v863 = vmul.f32 %v765, %v765
      %v864 = vmul.f32 %v766, %v766
      %v865 = vmul.f32 %v767, %v767
      %v866 = vmul.f32 %v768, %v768
      %v867 = vmul.f32 %v769, %v769
      %v868 = vmul.f32 %v770, %v770
      %v869 = vmul.f32 %v771, %v771
      %v870 = vmul.f32 %v853, %v853
      %v871 = vmul.f32 %v854, %v854
      %v872 = vmul.f32 %v855, %v855
      %v873 = vmul.f32 %v856, %v856
      %v874 = vmul.f32 %v857, %v857
      %v875 = vmul.f32 %v858, %v858
      %v876 = vmul.f32 %v859, %v859
      %v877 = vmul.f32 %v860, %v860
      %v878 = vmul.f32 %v861, %v861
      %v888 = vrot.slane %v870, 2
      %v889 = vrot.slane %v871, 2
      %v890 = vsel %vm239, %v888, %v889
      %v891 = vrot.slane %v872, 2
      %v892 = vsel %vm239, %v889, %v891
      %v893 = vrot.slane %v873, 2
      %v894 = vsel %vm239, %v891, %v893
      %v895 = vrot.slane %v874, 2
      %v896 = vsel %vm239, %v893, %v895
      %v897 = vrot.slane %v875, 2
      %v898 = vsel %vm239, %v895, %v897
      %v899 = vrot.slane %v876, 2
      %v900 = vsel %vm239, %v897, %v899
      %v901 = vrot.slane %v877, 2
      %v902 = vsel %vm239, %v899, %v901
      %v903 = vrot.slane %v878, 2
      %v904 = vsel %vm239, %v901, %v903
      %v913 = vadd.f32 %v862, %v890
      %v914 = vadd.f32 %v863, %v892
      %v915 = vadd.f32 %v864, %v894
      %v916 = vadd.f32 %v865, %v896
      %v917 = vadd.f32 %v866, %v898
      %v918 = vadd.f32 %v867, %v900
      %v919 = vadd.f32 %v868, %v902
      %v920 = vadd.f32 %v869, %v904
      %vm921 = vcmp.gt.f32.partialorder %v913, %v538
      %vm922 = vcmp.gt.f32.partialorder %v914, %v539
      %vm923 = vcmp.gt.f32.partialorder %v915, %v540
      %vm924 = vcmp.gt.f32.partialorder %v916, %v541
      %vm925 = vcmp.gt.f32.partialorder %v917, %v542
      %vm926 = vcmp.gt.f32.partialorder %v918, %v543
      %vm927 = vcmp.gt.f32.partialorder %v919, %v544
      %vm928 = vcmp.gt.f32.partialorder %v920, %v545
      %v929 = vsel %vm921, %v913, %v538
      %v930 = vsel %vm922, %v914, %v539
      %v931 = vsel %vm923, %v915, %v540
      %v932 = vsel %vm924, %v916, %v541
      %v933 = vsel %vm925, %v917, %v542
      %v934 = vsel %vm926, %v918, %v543
      %v935 = vsel %vm927, %v919, %v544
      %v936 = vsel %vm928, %v920, %v545
      %v937 = vsel %vm921, %v764, %v389
      %v938 = vsel %vm922, %v765, %v390
      %v939 = vsel %vm923, %v766, %v391
      %v940 = vsel %vm924, %v767, %v392
      %v941 = vsel %vm925, %v768, %v393
      %v942 = vsel %vm926, %v769, %v394
      %v943 = vsel %vm927, %v770, %v395
      %v944 = vsel %vm928, %v771, %v396
      %v954 = vrot.slane %v853, 2
      %v955 = vrot.slane %v854, 2
      %v956 = vsel %vm239, %v954, %v955
      %v957 = vrot.slane %v855, 2
      %v958 = vsel %vm239, %v955, %v957
      %v959 = vrot.slane %v856, 2
      %v960 = vsel %vm239, %v957, %v959
      %v961 = vrot.slane %v857, 2
      %v962 = vsel %vm239, %v959, %v961
      %v963 = vrot.slane %v858, 2
      %v964 = vsel %vm239, %v961, %v963
      %v965 = vrot.slane %v859, 2
      %v966 = vsel %vm239, %v963, %v965
      %v967 = vrot.slane %v860, 2
      %v968 = vsel %vm239, %v965, %v967
      %v969 = vrot.slane %v861, 2
      %v970 = vsel %vm239, %v967, %v969
      %v988 = vrot.slane %v478, 2
      %v989 = vrot.slane %v479, 2
      %v990 = vsel %vm239, %v988, %v989
      %v991 = vrot.slane %v480, 2
      %v992 = vsel %vm239, %v989, %v991
      %v993 = vrot.slane %v481, 2
      %v994 = vsel %vm239, %v991, %v993
      %v995 = vrot.slane %v482, 2
      %v996 = vsel %vm239, %v993, %v995
      %v997 = vrot.slane %v483, 2
      %v998 = vsel %vm239, %v995, %v997
      %v999 = vrot.slane %v484, 2
      %v1000 = vsel %vm239, %v997, %v999
      %v1001 = vrot.slane %v485, 2
      %v1002 = vsel %vm239, %v999, %v1001
      %v1003 = vrot.slane %v486, 2
      %v1004 = vsel %vm239, %v1001, %v1003
      %v1013 = vsel %vm921, %v956, %v990
      %v1014 = vsel %vm922, %v958, %v992
      %v1015 = vsel %vm923, %v960, %v994
      %v1016 = vsel %vm924, %v962, %v996
      %v1017 = vsel %vm925, %v964, %v998
      %v1018 = vsel %vm926, %v966, %v1000
      %v1019 = vsel %vm927, %v968, %v1002
      %v1020 = vsel %vm928, %v970, %v1004
      %s1021 = scalar_lea.vmem %s164, 144
      %v1022 = vld [vmem:[%s1021] sm:$0xff]
      %v1023 = vld [vmem:[%s1021 + $0x8] sm:$0xff]
      %v1024 = vld [vmem:[%s1021 + $0x10] sm:$0xff]
      %v1025 = vld [vmem:[%s1021 + $0x18] sm:$0xff]
      %v1026 = vld [vmem:[%s1021 + $0x20] sm:$0xff]
      %v1027 = vld [vmem:[%s1021 + $0x28] sm:$0xff]
      %v1028 = vld [vmem:[%s1021 + $0x30] sm:$0xff]
      %v1029 = vld [vmem:[%s1021 + $0x38] sm:$0xff]
      %v1030 = vld [vmem:[%s1021 + $0x40] sm:$0xff]
      %v1031 = vmul.f32 %v1022, 2.0
      %v1032 = vmul.f32 %v1023, 2.0
      %v1033 = vmul.f32 %v1024, 2.0
      %v1034 = vmul.f32 %v1025, 2.0
      %v1035 = vmul.f32 %v1026, 2.0
      %v1036 = vmul.f32 %v1027, 2.0
      %v1037 = vmul.f32 %v1028, 2.0
      %v1038 = vmul.f32 %v1029, 2.0
      %v1039 = vmul.f32 %v1030, 2.0
      %v1049 = vrot.slane %v1031, 1
      %v1050 = vrot.slane %v1032, 1
      %v1051 = vsel %vm196, %v1049, %v1050
      %v1052 = vrot.slane %v1033, 1
      %v1053 = vsel %vm196, %v1050, %v1052
      %v1054 = vrot.slane %v1034, 1
      %v1055 = vsel %vm196, %v1052, %v1054
      %v1056 = vrot.slane %v1035, 1
      %v1057 = vsel %vm196, %v1054, %v1056
      %v1058 = vrot.slane %v1036, 1
      %v1059 = vsel %vm196, %v1056, %v1058
      %v1060 = vrot.slane %v1037, 1
      %v1061 = vsel %vm196, %v1058, %v1060
      %v1062 = vrot.slane %v1038, 1
      %v1063 = vsel %vm196, %v1060, %v1062
      %v1064 = vrot.slane %v1039, 1
      %v1065 = vsel %vm196, %v1062, %v1064
      %v1074 = vadd.f32 %v1022, %v1051
      %v1075 = vadd.f32 %v1023, %v1053
      %v1076 = vadd.f32 %v1024, %v1055
      %v1077 = vadd.f32 %v1025, %v1057
      %v1078 = vadd.f32 %v1026, %v1059
      %v1079 = vadd.f32 %v1027, %v1061
      %v1080 = vadd.f32 %v1028, %v1063
      %v1081 = vadd.f32 %v1029, %v1065
      %v1091 = vrot.slane %v1022, 2
      %v1092 = vrot.slane %v1023, 2
      %v1093 = vsel %vm239, %v1091, %v1092
      %v1094 = vrot.slane %v1024, 2
      %v1095 = vsel %vm239, %v1092, %v1094
      %v1096 = vrot.slane %v1025, 2
      %v1097 = vsel %vm239, %v1094, %v1096
      %v1098 = vrot.slane %v1026, 2
      %v1099 = vsel %vm239, %v1096, %v1098
      %v1100 = vrot.slane %v1027, 2
      %v1101 = vsel %vm239, %v1098, %v1100
      %v1102 = vrot.slane %v1028, 2
      %v1103 = vsel %vm239, %v1100, %v1102
      %v1104 = vrot.slane %v1029, 2
      %v1105 = vsel %vm239, %v1102, %v1104
      %v1106 = vrot.slane %v1030, 2
      %v1107 = vsel %vm239, %v1104, %v1106
      %v1116 = vadd.f32 %v1074, %v1093
      %v1117 = vadd.f32 %v1075, %v1095
      %v1118 = vadd.f32 %v1076, %v1097
      %v1119 = vadd.f32 %v1077, %v1099
      %v1120 = vadd.f32 %v1078, %v1101
      %v1121 = vadd.f32 %v1079, %v1103
      %v1122 = vadd.f32 %v1080, %v1105
      %v1123 = vadd.f32 %v1081, %v1107
      %v1124 = vrot.slane %v1022, 6
      %v1125 = vrot.slane %v1023, 6
      %v1126 = vsel %vm273, %v1124, %v1125
      %v1127 = vrot.slane %v1024, 6
      %v1128 = vsel %vm273, %v1125, %v1127
      %v1129 = vrot.slane %v1025, 6
      %v1130 = vsel %vm273, %v1127, %v1129
      %v1131 = vrot.slane %v1026, 6
      %v1132 = vsel %vm273, %v1129, %v1131
      %v1133 = vrot.slane %v1027, 6
      %v1134 = vsel %vm273, %v1131, %v1133
      %v1135 = vrot.slane %v1028, 6
      %v1136 = vsel %vm273, %v1133, %v1135
      %v1137 = vrot.slane %v1029, 6
      %v1138 = vsel %vm273, %v1135, %v1137
      %v1148 = vsub.f32 %v1022, %v1124
      %v1149 = vsub.f32 %v1023, %v1126
      %v1150 = vsub.f32 %v1024, %v1128
      %v1151 = vsub.f32 %v1025, %v1130
      %v1152 = vsub.f32 %v1026, %v1132
      %v1153 = vsub.f32 %v1027, %v1134
      %v1154 = vsub.f32 %v1028, %v1136
      %v1155 = vsub.f32 %v1029, %v1138
      %v1156 = vsub.f32 %v1030, %v1137
      %1157 = vrot.lane.b32.xlu0 %v1116, 126
      %v1158 = vpop.permute.xlu0 %1157
      %1159 = vrot.lane.b32.xlu0 %v1117, 126
      %v1160 = vpop.permute.xlu0 %1159
      %1161 = vrot.lane.b32.xlu0 %v1118, 126
      %v1162 = vpop.permute.xlu0 %1161
      %1163 = vrot.lane.b32.xlu0 %v1119, 126
      %v1164 = vpop.permute.xlu0 %1163
      %1165 = vrot.lane.b32.xlu0 %v1120, 126
      %v1166 = vpop.permute.xlu0 %1165
      %1167 = vrot.lane.b32.xlu0 %v1121, 126
      %v1168 = vpop.permute.xlu0 %1167
      %1169 = vrot.lane.b32.xlu0 %v1122, 126
      %v1170 = vpop.permute.xlu0 %1169
      %1171 = vrot.lane.b32.xlu0 %v1123, 126
      %v1172 = vpop.permute.xlu0 %1171
      %v1182 = vrot.slane %v1148, 2
      %v1183 = vrot.slane %v1149, 2
      %v1184 = vsel %vm239, %v1182, %v1183
      %v1185 = vrot.slane %v1150, 2
      %v1186 = vsel %vm239, %v1183, %v1185
      %v1187 = vrot.slane %v1151, 2
      %v1188 = vsel %vm239, %v1185, %v1187
      %v1189 = vrot.slane %v1152, 2
      %v1190 = vsel %vm239, %v1187, %v1189
      %v1191 = vrot.slane %v1153, 2
      %v1192 = vsel %vm239, %v1189, %v1191
      %v1193 = vrot.slane %v1154, 2
      %v1194 = vsel %vm239, %v1191, %v1193
      %v1195 = vrot.slane %v1155, 2
      %v1196 = vsel %vm239, %v1193, %v1195
      %v1197 = vrot.slane %v1156, 2
      %v1198 = vsel %vm239, %v1195, %v1197
      %1207 = vrot.lane.b32.xlu0 %v1184, 127
      %v1208 = vpop.permute.xlu0 %1207
      %1209 = vrot.lane.b32.xlu0 %v1186, 127
      %v1210 = vpop.permute.xlu0 %1209
      %1211 = vrot.lane.b32.xlu0 %v1188, 127
      %v1212 = vpop.permute.xlu0 %1211
      %1213 = vrot.lane.b32.xlu0 %v1190, 127
      %v1214 = vpop.permute.xlu0 %1213
      %1215 = vrot.lane.b32.xlu0 %v1192, 127
      %v1216 = vpop.permute.xlu0 %1215
      %1217 = vrot.lane.b32.xlu0 %v1194, 127
      %v1218 = vpop.permute.xlu0 %1217
      %1219 = vrot.lane.b32.xlu0 %v1196, 127
      %v1220 = vpop.permute.xlu0 %1219
      %1221 = vrot.lane.b32.xlu0 %v1198, 127
      %v1222 = vpop.permute.xlu0 %1221
      %1223 = vrot.lane.b32.xlu0 %v1184, 126
      %v1224 = vpop.permute.xlu0 %1223
      %1225 = vrot.lane.b32.xlu0 %v1186, 126
      %v1226 = vpop.permute.xlu0 %1225
      %1227 = vrot.lane.b32.xlu0 %v1188, 126
      %v1228 = vpop.permute.xlu0 %1227
      %1229 = vrot.lane.b32.xlu0 %v1190, 126
      %v1230 = vpop.permute.xlu0 %1229
      %1231 = vrot.lane.b32.xlu0 %v1192, 126
      %v1232 = vpop.permute.xlu0 %1231
      %1233 = vrot.lane.b32.xlu0 %v1194, 126
      %v1234 = vpop.permute.xlu0 %1233
      %1235 = vrot.lane.b32.xlu0 %v1196, 126
      %v1236 = vpop.permute.xlu0 %1235
      %1237 = vrot.lane.b32.xlu0 %v1198, 126
      %v1238 = vpop.permute.xlu0 %1237
      %v1239 = vsub.f32 %v1158, %v1116
      %v1240 = vsub.f32 %v1160, %v1117
      %v1241 = vsub.f32 %v1162, %v1118
      %v1242 = vsub.f32 %v1164, %v1119
      %v1243 = vsub.f32 %v1166, %v1120
      %v1244 = vsub.f32 %v1168, %v1121
      %v1245 = vsub.f32 %v1170, %v1122
      %v1246 = vsub.f32 %v1172, %v1123
      %v1247 = vmul.f32 %v1208, 2.0
      %v1248 = vmul.f32 %v1210, 2.0
      %v1249 = vmul.f32 %v1212, 2.0
      %v1250 = vmul.f32 %v1214, 2.0
      %v1251 = vmul.f32 %v1216, 2.0
      %v1252 = vmul.f32 %v1218, 2.0
      %v1253 = vmul.f32 %v1220, 2.0
      %v1254 = vmul.f32 %v1222, 2.0
      %v1263 = vrot.slane %v1247, 6
      %v1264 = vrot.slane %v1248, 6
      %v1265 = vsel %vm273, %v1263, %v1264
      %v1266 = vrot.slane %v1249, 6
      %v1267 = vsel %vm273, %v1264, %v1266
      %v1268 = vrot.slane %v1250, 6
      %v1269 = vsel %vm273, %v1266, %v1268
      %v1270 = vrot.slane %v1251, 6
      %v1271 = vsel %vm273, %v1268, %v1270
      %v1272 = vrot.slane %v1252, 6
      %v1273 = vsel %vm273, %v1270, %v1272
      %v1274 = vrot.slane %v1253, 6
      %v1275 = vsel %vm273, %v1272, %v1274
      %v1276 = vrot.slane %v1254, 6
      %v1277 = vsel %vm273, %v1274, %v1276
      %v1287 = vadd.f32 %v1148, %v1263
      %v1288 = vadd.f32 %v1149, %v1265
      %v1289 = vadd.f32 %v1150, %v1267
      %v1290 = vadd.f32 %v1151, %v1269
      %v1291 = vadd.f32 %v1152, %v1271
      %v1292 = vadd.f32 %v1153, %v1273
      %v1293 = vadd.f32 %v1154, %v1275
      %v1294 = vadd.f32 %v1155, %v1277
      %v1295 = vadd.f32 %v1156, %v1276
      %v1304 = vrot.slane %v1224, 6
      %v1305 = vrot.slane %v1226, 6
      %v1306 = vsel %vm273, %v1304, %v1305
      %v1307 = vrot.slane %v1228, 6
      %v1308 = vsel %vm273, %v1305, %v1307
      %v1309 = vrot.slane %v1230, 6
      %v1310 = vsel %vm273, %v1307, %v1309
      %v1311 = vrot.slane %v1232, 6
      %v1312 = vsel %vm273, %v1309, %v1311
      %v1313 = vrot.slane %v1234, 6
      %v1314 = vsel %vm273, %v1311, %v1313
      %v1315 = vrot.slane %v1236, 6
      %v1316 = vsel %vm273, %v1313, %v1315
      %v1317 = vrot.slane %v1238, 6
      %v1318 = vsel %vm273, %v1315, %v1317
      %v1328 = vadd.f32 %v1287, %v1304
      %v1329 = vadd.f32 %v1288, %v1306
      %v1330 = vadd.f32 %v1289, %v1308
      %v1331 = vadd.f32 %v1290, %v1310
      %v1332 = vadd.f32 %v1291, %v1312
      %v1333 = vadd.f32 %v1292, %v1314
      %v1334 = vadd.f32 %v1293, %v1316
      %v1335 = vadd.f32 %v1294, %v1318
      %v1336 = vadd.f32 %v1295, %v1317
      %v1337 = vmul.f32 %v1239, %v1239
      %v1338 = vmul.f32 %v1240, %v1240
      %v1339 = vmul.f32 %v1241, %v1241
      %v1340 = vmul.f32 %v1242, %v1242
      %v1341 = vmul.f32 %v1243, %v1243
      %v1342 = vmul.f32 %v1244, %v1244
      %v1343 = vmul.f32 %v1245, %v1245
      %v1344 = vmul.f32 %v1246, %v1246
      %v1345 = vmul.f32 %v1328, %v1328
      %v1346 = vmul.f32 %v1329, %v1329
      %v1347 = vmul.f32 %v1330, %v1330
      %v1348 = vmul.f32 %v1331, %v1331
      %v1349 = vmul.f32 %v1332, %v1332
      %v1350 = vmul.f32 %v1333, %v1333
      %v1351 = vmul.f32 %v1334, %v1334
      %v1352 = vmul.f32 %v1335, %v1335
      %v1353 = vmul.f32 %v1336, %v1336
      %v1363 = vrot.slane %v1345, 2
      %v1364 = vrot.slane %v1346, 2
      %v1365 = vsel %vm239, %v1363, %v1364
      %v1366 = vrot.slane %v1347, 2
      %v1367 = vsel %vm239, %v1364, %v1366
      %v1368 = vrot.slane %v1348, 2
      %v1369 = vsel %vm239, %v1366, %v1368
      %v1370 = vrot.slane %v1349, 2
      %v1371 = vsel %vm239, %v1368, %v1370
      %v1372 = vrot.slane %v1350, 2
      %v1373 = vsel %vm239, %v1370, %v1372
      %v1374 = vrot.slane %v1351, 2
      %v1375 = vsel %vm239, %v1372, %v1374
      %v1376 = vrot.slane %v1352, 2
      %v1377 = vsel %vm239, %v1374, %v1376
      %v1378 = vrot.slane %v1353, 2
      %v1379 = vsel %vm239, %v1376, %v1378
      %v1388 = vadd.f32 %v1337, %v1365
      %v1389 = vadd.f32 %v1338, %v1367
      %v1390 = vadd.f32 %v1339, %v1369
      %v1391 = vadd.f32 %v1340, %v1371
      %v1392 = vadd.f32 %v1341, %v1373
      %v1393 = vadd.f32 %v1342, %v1375
      %v1394 = vadd.f32 %v1343, %v1377
      %v1395 = vadd.f32 %v1344, %v1379
      %vm1396 = vcmp.gt.f32.partialorder %v1388, %v929
      %vm1397 = vcmp.gt.f32.partialorder %v1389, %v930
      %vm1398 = vcmp.gt.f32.partialorder %v1390, %v931
      %vm1399 = vcmp.gt.f32.partialorder %v1391, %v932
      %vm1400 = vcmp.gt.f32.partialorder %v1392, %v933
      %vm1401 = vcmp.gt.f32.partialorder %v1393, %v934
      %vm1402 = vcmp.gt.f32.partialorder %v1394, %v935
      %vm1403 = vcmp.gt.f32.partialorder %v1395, %v936
      %v1404 = vsel %vm1396, %v1388, %v929
      %v1405 = vsel %vm1397, %v1389, %v930
      %v1406 = vsel %vm1398, %v1390, %v931
      %v1407 = vsel %vm1399, %v1391, %v932
      %v1408 = vsel %vm1400, %v1392, %v933
      %v1409 = vsel %vm1401, %v1393, %v934
      %v1410 = vsel %vm1402, %v1394, %v935
      %v1411 = vsel %vm1403, %v1395, %v936
      %v1412 = vsel %vm1396, %v1239, %v937
      %v1413 = vsel %vm1397, %v1240, %v938
      %v1414 = vsel %vm1398, %v1241, %v939
      %v1415 = vsel %vm1399, %v1242, %v940
      %v1416 = vsel %vm1400, %v1243, %v941
      %v1417 = vsel %vm1401, %v1244, %v942
      %v1418 = vsel %vm1402, %v1245, %v943
      %v1419 = vsel %vm1403, %v1246, %v944
      %v1429 = vrot.slane %v1328, 2
      %v1430 = vrot.slane %v1329, 2
      %v1431 = vsel %vm239, %v1429, %v1430
      %v1432 = vrot.slane %v1330, 2
      %v1433 = vsel %vm239, %v1430, %v1432
      %v1434 = vrot.slane %v1331, 2
      %v1435 = vsel %vm239, %v1432, %v1434
      %v1436 = vrot.slane %v1332, 2
      %v1437 = vsel %vm239, %v1434, %v1436
      %v1438 = vrot.slane %v1333, 2
      %v1439 = vsel %vm239, %v1436, %v1438
      %v1440 = vrot.slane %v1334, 2
      %v1441 = vsel %vm239, %v1438, %v1440
      %v1442 = vrot.slane %v1335, 2
      %v1443 = vsel %vm239, %v1440, %v1442
      %v1444 = vrot.slane %v1336, 2
      %v1445 = vsel %vm239, %v1442, %v1444
      %v1454 = vsel %vm1396, %v1431, %v1013
      %v1455 = vsel %vm1397, %v1433, %v1014
      %v1456 = vsel %vm1398, %v1435, %v1015
      %v1457 = vsel %vm1399, %v1437, %v1016
      %v1458 = vsel %vm1400, %v1439, %v1017
      %v1459 = vsel %vm1401, %v1441, %v1018
      %v1460 = vsel %vm1402, %v1443, %v1019
      %v1461 = vsel %vm1403, %v1445, %v1020
      %s1462 = scalar_lea.vmem %s164, 216
      %v1463 = vld [vmem:[%s1462] sm:$0xff]
      %v1464 = vld [vmem:[%s1462 + $0x8] sm:$0xff]
      %v1465 = vld [vmem:[%s1462 + $0x10] sm:$0xff]
      %v1466 = vld [vmem:[%s1462 + $0x18] sm:$0xff]
      %v1467 = vld [vmem:[%s1462 + $0x20] sm:$0xff]
      %v1468 = vld [vmem:[%s1462 + $0x28] sm:$0xff]
      %v1469 = vld [vmem:[%s1462 + $0x30] sm:$0xff]
      %v1470 = vld [vmem:[%s1462 + $0x38] sm:$0xff]
      %v1471 = vld [vmem:[%s1462 + $0x40] sm:$0xff]
      %v1472 = vmul.f32 %v1463, 2.0
      %v1473 = vmul.f32 %v1464, 2.0
      %v1474 = vmul.f32 %v1465, 2.0
      %v1475 = vmul.f32 %v1466, 2.0
      %v1476 = vmul.f32 %v1467, 2.0
      %v1477 = vmul.f32 %v1468, 2.0
      %v1478 = vmul.f32 %v1469, 2.0
      %v1479 = vmul.f32 %v1470, 2.0
      %v1480 = vmul.f32 %v1471, 2.0
      %v1490 = vrot.slane %v1472, 1
      %v1491 = vrot.slane %v1473, 1
      %v1492 = vsel %vm196, %v1490, %v1491
      %v1493 = vrot.slane %v1474, 1
      %v1494 = vsel %vm196, %v1491, %v1493
      %v1495 = vrot.slane %v1475, 1
      %v1496 = vsel %vm196, %v1493, %v1495
      %v1497 = vrot.slane %v1476, 1
      %v1498 = vsel %vm196, %v1495, %v1497
      %v1499 = vrot.slane %v1477, 1
      %v1500 = vsel %vm196, %v1497, %v1499
      %v1501 = vrot.slane %v1478, 1
      %v1502 = vsel %vm196, %v1499, %v1501
      %v1503 = vrot.slane %v1479, 1
      %v1504 = vsel %vm196, %v1501, %v1503
      %v1505 = vrot.slane %v1480, 1
      %v1506 = vsel %vm196, %v1503, %v1505
      %v1515 = vadd.f32 %v1463, %v1492
      %v1516 = vadd.f32 %v1464, %v1494
      %v1517 = vadd.f32 %v1465, %v1496
      %v1518 = vadd.f32 %v1466, %v1498
      %v1519 = vadd.f32 %v1467, %v1500
      %v1520 = vadd.f32 %v1468, %v1502
      %v1521 = vadd.f32 %v1469, %v1504
      %v1522 = vadd.f32 %v1470, %v1506
      %v1532 = vrot.slane %v1463, 2
      %v1533 = vrot.slane %v1464, 2
      %v1534 = vsel %vm239, %v1532, %v1533
      %v1535 = vrot.slane %v1465, 2
      %v1536 = vsel %vm239, %v1533, %v1535
      %v1537 = vrot.slane %v1466, 2
      %v1538 = vsel %vm239, %v1535, %v1537
      %v1539 = vrot.slane %v1467, 2
      %v1540 = vsel %vm239, %v1537, %v1539
      %v1541 = vrot.slane %v1468, 2
      %v1542 = vsel %vm239, %v1539, %v1541
      %v1543 = vrot.slane %v1469, 2
      %v1544 = vsel %vm239, %v1541, %v1543
      %v1545 = vrot.slane %v1470, 2
      %v1546 = vsel %vm239, %v1543, %v1545
      %v1547 = vrot.slane %v1471, 2
      %v1548 = vsel %vm239, %v1545, %v1547
      %v1557 = vadd.f32 %v1515, %v1534
      %v1558 = vadd.f32 %v1516, %v1536
      %v1559 = vadd.f32 %v1517, %v1538
      %v1560 = vadd.f32 %v1518, %v1540
      %v1561 = vadd.f32 %v1519, %v1542
      %v1562 = vadd.f32 %v1520, %v1544
      %v1563 = vadd.f32 %v1521, %v1546
      %v1564 = vadd.f32 %v1522, %v1548
      %v1565 = vrot.slane %v1463, 6
      %v1566 = vrot.slane %v1464, 6
      %v1567 = vsel %vm273, %v1565, %v1566
      %v1568 = vrot.slane %v1465, 6
      %v1569 = vsel %vm273, %v1566, %v1568
      %v1570 = vrot.slane %v1466, 6
      %v1571 = vsel %vm273, %v1568, %v1570
      %v1572 = vrot.slane %v1467, 6
      %v1573 = vsel %vm273, %v1570, %v1572
      %v1574 = vrot.slane %v1468, 6
      %v1575 = vsel %vm273, %v1572, %v1574
      %v1576 = vrot.slane %v1469, 6
      %v1577 = vsel %vm273, %v1574, %v1576
      %v1578 = vrot.slane %v1470, 6
      %v1579 = vsel %vm273, %v1576, %v1578
      %v1589 = vsub.f32 %v1463, %v1565
      %v1590 = vsub.f32 %v1464, %v1567
      %v1591 = vsub.f32 %v1465, %v1569
      %v1592 = vsub.f32 %v1466, %v1571
      %v1593 = vsub.f32 %v1467, %v1573
      %v1594 = vsub.f32 %v1468, %v1575
      %v1595 = vsub.f32 %v1469, %v1577
      %v1596 = vsub.f32 %v1470, %v1579
      %v1597 = vsub.f32 %v1471, %v1578
      %1598 = vrot.lane.b32.xlu0 %v1557, 126
      %v1599 = vpop.permute.xlu0 %1598
      %1600 = vrot.lane.b32.xlu0 %v1558, 126
      %v1601 = vpop.permute.xlu0 %1600
      %1602 = vrot.lane.b32.xlu0 %v1559, 126
      %v1603 = vpop.permute.xlu0 %1602
      %1604 = vrot.lane.b32.xlu0 %v1560, 126
      %v1605 = vpop.permute.xlu0 %1604
      %1606 = vrot.lane.b32.xlu0 %v1561, 126
      %v1607 = vpop.permute.xlu0 %1606
      %1608 = vrot.lane.b32.xlu0 %v1562, 126
      %v1609 = vpop.permute.xlu0 %1608
      %1610 = vrot.lane.b32.xlu0 %v1563, 126
      %v1611 = vpop.permute.xlu0 %1610
      %1612 = vrot.lane.b32.xlu0 %v1564, 126
      %v1613 = vpop.permute.xlu0 %1612
      %v1623 = vrot.slane %v1589, 2
      %v1624 = vrot.slane %v1590, 2
      %v1625 = vsel %vm239, %v1623, %v1624
      %v1626 = vrot.slane %v1591, 2
      %v1627 = vsel %vm239, %v1624, %v1626
      %v1628 = vrot.slane %v1592, 2
      %v1629 = vsel %vm239, %v1626, %v1628
      %v1630 = vrot.slane %v1593, 2
      %v1631 = vsel %vm239, %v1628, %v1630
      %v1632 = vrot.slane %v1594, 2
      %v1633 = vsel %vm239, %v1630, %v1632
      %v1634 = vrot.slane %v1595, 2
      %v1635 = vsel %vm239, %v1632, %v1634
      %v1636 = vrot.slane %v1596, 2
      %v1637 = vsel %vm239, %v1634, %v1636
      %v1638 = vrot.slane %v1597, 2
      %v1639 = vsel %vm239, %v1636, %v1638
      %1648 = vrot.lane.b32.xlu0 %v1625, 127
      %v1649 = vpop.permute.xlu0 %1648
      %1650 = vrot.lane.b32.xlu0 %v1627, 127
      %v1651 = vpop.permute.xlu0 %1650
      %1652 = vrot.lane.b32.xlu0 %v1629, 127
      %v1653 = vpop.permute.xlu0 %1652
      %1654 = vrot.lane.b32.xlu0 %v1631, 127
      %v1655 = vpop.permute.xlu0 %1654
      %1656 = vrot.lane.b32.xlu0 %v1633, 127
      %v1657 = vpop.permute.xlu0 %1656
      %1658 = vrot.lane.b32.xlu0 %v1635, 127
      %v1659 = vpop.permute.xlu0 %1658
      %1660 = vrot.lane.b32.xlu0 %v1637, 127
      %v1661 = vpop.permute.xlu0 %1660
      %1662 = vrot.lane.b32.xlu0 %v1639, 127
      %v1663 = vpop.permute.xlu0 %1662
      %1664 = vrot.lane.b32.xlu0 %v1625, 126
      %v1665 = vpop.permute.xlu0 %1664
      %1666 = vrot.lane.b32.xlu0 %v1627, 126
      %v1667 = vpop.permute.xlu0 %1666
      %1668 = vrot.lane.b32.xlu0 %v1629, 126
      %v1669 = vpop.permute.xlu0 %1668
      %1670 = vrot.lane.b32.xlu0 %v1631, 126
      %v1671 = vpop.permute.xlu0 %1670
      %1672 = vrot.lane.b32.xlu0 %v1633, 126
      %v1673 = vpop.permute.xlu0 %1672
      %1674 = vrot.lane.b32.xlu0 %v1635, 126
      %v1675 = vpop.permute.xlu0 %1674
      %1676 = vrot.lane.b32.xlu0 %v1637, 126
      %v1677 = vpop.permute.xlu0 %1676
      %1678 = vrot.lane.b32.xlu0 %v1639, 126
      %v1679 = vpop.permute.xlu0 %1678
      %v1680 = vsub.f32 %v1599, %v1557
      %v1681 = vsub.f32 %v1601, %v1558
      %v1682 = vsub.f32 %v1603, %v1559
      %v1683 = vsub.f32 %v1605, %v1560
      %v1684 = vsub.f32 %v1607, %v1561
      %v1685 = vsub.f32 %v1609, %v1562
      %v1686 = vsub.f32 %v1611, %v1563
      %v1687 = vsub.f32 %v1613, %v1564
      %v1688 = vmul.f32 %v1649, 2.0
      %v1689 = vmul.f32 %v1651, 2.0
      %v1690 = vmul.f32 %v1653, 2.0
      %v1691 = vmul.f32 %v1655, 2.0
      %v1692 = vmul.f32 %v1657, 2.0
      %v1693 = vmul.f32 %v1659, 2.0
      %v1694 = vmul.f32 %v1661, 2.0
      %v1695 = vmul.f32 %v1663, 2.0
      %v1704 = vrot.slane %v1688, 6
      %v1705 = vrot.slane %v1689, 6
      %v1706 = vsel %vm273, %v1704, %v1705
      %v1707 = vrot.slane %v1690, 6
      %v1708 = vsel %vm273, %v1705, %v1707
      %v1709 = vrot.slane %v1691, 6
      %v1710 = vsel %vm273, %v1707, %v1709
      %v1711 = vrot.slane %v1692, 6
      %v1712 = vsel %vm273, %v1709, %v1711
      %v1713 = vrot.slane %v1693, 6
      %v1714 = vsel %vm273, %v1711, %v1713
      %v1715 = vrot.slane %v1694, 6
      %v1716 = vsel %vm273, %v1713, %v1715
      %v1717 = vrot.slane %v1695, 6
      %v1718 = vsel %vm273, %v1715, %v1717
      %v1728 = vadd.f32 %v1589, %v1704
      %v1729 = vadd.f32 %v1590, %v1706
      %v1730 = vadd.f32 %v1591, %v1708
      %v1731 = vadd.f32 %v1592, %v1710
      %v1732 = vadd.f32 %v1593, %v1712
      %v1733 = vadd.f32 %v1594, %v1714
      %v1734 = vadd.f32 %v1595, %v1716
      %v1735 = vadd.f32 %v1596, %v1718
      %v1736 = vadd.f32 %v1597, %v1717
      %v1745 = vrot.slane %v1665, 6
      %v1746 = vrot.slane %v1667, 6
      %v1747 = vsel %vm273, %v1745, %v1746
      %v1748 = vrot.slane %v1669, 6
      %v1749 = vsel %vm273, %v1746, %v1748
      %v1750 = vrot.slane %v1671, 6
      %v1751 = vsel %vm273, %v1748, %v1750
      %v1752 = vrot.slane %v1673, 6
      %v1753 = vsel %vm273, %v1750, %v1752
      %v1754 = vrot.slane %v1675, 6
      %v1755 = vsel %vm273, %v1752, %v1754
      %v1756 = vrot.slane %v1677, 6
      %v1757 = vsel %vm273, %v1754, %v1756
      %v1758 = vrot.slane %v1679, 6
      %v1759 = vsel %vm273, %v1756, %v1758
      %v1769 = vadd.f32 %v1728, %v1745
      %v1770 = vadd.f32 %v1729, %v1747
      %v1771 = vadd.f32 %v1730, %v1749
      %v1772 = vadd.f32 %v1731, %v1751
      %v1773 = vadd.f32 %v1732, %v1753
      %v1774 = vadd.f32 %v1733, %v1755
      %v1775 = vadd.f32 %v1734, %v1757
      %v1776 = vadd.f32 %v1735, %v1759
      %v1777 = vadd.f32 %v1736, %v1758
      %v1778 = vmul.f32 %v1680, %v1680
      %v1779 = vmul.f32 %v1681, %v1681
      %v1780 = vmul.f32 %v1682, %v1682
      %v1781 = vmul.f32 %v1683, %v1683
      %v1782 = vmul.f32 %v1684, %v1684
      %v1783 = vmul.f32 %v1685, %v1685
      %v1784 = vmul.f32 %v1686, %v1686
      %v1785 = vmul.f32 %v1687, %v1687
      %v1786 = vmul.f32 %v1769, %v1769
      %v1787 = vmul.f32 %v1770, %v1770
      %v1788 = vmul.f32 %v1771, %v1771
      %v1789 = vmul.f32 %v1772, %v1772
      %v1790 = vmul.f32 %v1773, %v1773
      %v1791 = vmul.f32 %v1774, %v1774
      %v1792 = vmul.f32 %v1775, %v1775
      %v1793 = vmul.f32 %v1776, %v1776
      %v1794 = vmul.f32 %v1777, %v1777
      %v1804 = vrot.slane %v1786, 2
      %v1805 = vrot.slane %v1787, 2
      %v1806 = vsel %vm239, %v1804, %v1805
      %v1807 = vrot.slane %v1788, 2
      %v1808 = vsel %vm239, %v1805, %v1807
      %v1809 = vrot.slane %v1789, 2
      %v1810 = vsel %vm239, %v1807, %v1809
      %v1811 = vrot.slane %v1790, 2
      %v1812 = vsel %vm239, %v1809, %v1811
      %v1813 = vrot.slane %v1791, 2
      %v1814 = vsel %vm239, %v1811, %v1813
      %v1815 = vrot.slane %v1792, 2
      %v1816 = vsel %vm239, %v1813, %v1815
      %v1817 = vrot.slane %v1793, 2
      %v1818 = vsel %vm239, %v1815, %v1817
      %v1819 = vrot.slane %v1794, 2
      %v1820 = vsel %vm239, %v1817, %v1819
      %v1829 = vadd.f32 %v1778, %v1806
      %v1830 = vadd.f32 %v1779, %v1808
      %v1831 = vadd.f32 %v1780, %v1810
      %v1832 = vadd.f32 %v1781, %v1812
      %v1833 = vadd.f32 %v1782, %v1814
      %v1834 = vadd.f32 %v1783, %v1816
      %v1835 = vadd.f32 %v1784, %v1818
      %v1836 = vadd.f32 %v1785, %v1820
      %vm1837 = vcmp.gt.f32.partialorder %v1829, %v1404
      %vm1838 = vcmp.gt.f32.partialorder %v1830, %v1405
      %vm1839 = vcmp.gt.f32.partialorder %v1831, %v1406
      %vm1840 = vcmp.gt.f32.partialorder %v1832, %v1407
      %vm1841 = vcmp.gt.f32.partialorder %v1833, %v1408
      %vm1842 = vcmp.gt.f32.partialorder %v1834, %v1409
      %vm1843 = vcmp.gt.f32.partialorder %v1835, %v1410
      %vm1844 = vcmp.gt.f32.partialorder %v1836, %v1411
      %v1845 = vsel %vm1837, %v1829, %v1404
      %v1846 = vsel %vm1838, %v1830, %v1405
      %v1847 = vsel %vm1839, %v1831, %v1406
      %v1848 = vsel %vm1840, %v1832, %v1407
      %v1849 = vsel %vm1841, %v1833, %v1408
      %v1850 = vsel %vm1842, %v1834, %v1409
      %v1851 = vsel %vm1843, %v1835, %v1410
      %v1852 = vsel %vm1844, %v1836, %v1411
      %v1853 = vsel %vm1837, %v1680, %v1412
      %v1854 = vsel %vm1838, %v1681, %v1413
      %v1855 = vsel %vm1839, %v1682, %v1414
      %v1856 = vsel %vm1840, %v1683, %v1415
      %v1857 = vsel %vm1841, %v1684, %v1416
      %v1858 = vsel %vm1842, %v1685, %v1417
      %v1859 = vsel %vm1843, %v1686, %v1418
      %v1860 = vsel %vm1844, %v1687, %v1419
      %v1870 = vrot.slane %v1769, 2
      %v1871 = vrot.slane %v1770, 2
      %v1872 = vsel %vm239, %v1870, %v1871
      %v1873 = vrot.slane %v1771, 2
      %v1874 = vsel %vm239, %v1871, %v1873
      %v1875 = vrot.slane %v1772, 2
      %v1876 = vsel %vm239, %v1873, %v1875
      %v1877 = vrot.slane %v1773, 2
      %v1878 = vsel %vm239, %v1875, %v1877
      %v1879 = vrot.slane %v1774, 2
      %v1880 = vsel %vm239, %v1877, %v1879
      %v1881 = vrot.slane %v1775, 2
      %v1882 = vsel %vm239, %v1879, %v1881
      %v1883 = vrot.slane %v1776, 2
      %v1884 = vsel %vm239, %v1881, %v1883
      %v1885 = vrot.slane %v1777, 2
      %v1886 = vsel %vm239, %v1883, %v1885
      %v1895 = vsel %vm1837, %v1872, %v1454
      %v1896 = vsel %vm1838, %v1874, %v1455
      %v1897 = vsel %vm1839, %v1876, %v1456
      %v1898 = vsel %vm1840, %v1878, %v1457
      %v1899 = vsel %vm1841, %v1880, %v1458
      %v1900 = vsel %vm1842, %v1882, %v1459
      %v1901 = vsel %vm1843, %v1884, %v1460
      %v1902 = vsel %vm1844, %v1886, %v1461
      %v1903 = vrsqrt.pop %v1845
      %v1904 = vmul.f32 %v1845, %v1903
      %vm1905 = vcmp.eq.f32.partialorder %v1845, inf
      %v1906 = vsel %vm1905, %v1845, %v1904
      %vm1907 = vcmp.eq.f32.partialorder %v1845, 0.0
      %v1908 = vand.u32 %v1845, 2147483648
      %v1909 = vsel %vm1907, %v1908, %v1906
      %v1910 = vrsqrt.pop %v1846
      %v1911 = vmul.f32 %v1846, %v1910
      %vm1912 = vcmp.eq.f32.partialorder %v1846, inf
      %v1913 = vsel %vm1912, %v1846, %v1911
      %vm1914 = vcmp.eq.f32.partialorder %v1846, 0.0
      %v1915 = vand.u32 %v1846, 2147483648
      %v1916 = vsel %vm1914, %v1915, %v1913
      %v1917 = vrsqrt.pop %v1847
      %v1918 = vmul.f32 %v1847, %v1917
      %vm1919 = vcmp.eq.f32.partialorder %v1847, inf
      %v1920 = vsel %vm1919, %v1847, %v1918
      %vm1921 = vcmp.eq.f32.partialorder %v1847, 0.0
      %v1922 = vand.u32 %v1847, 2147483648
      %v1923 = vsel %vm1921, %v1922, %v1920
      %v1924 = vrsqrt.pop %v1848
      %v1925 = vmul.f32 %v1848, %v1924
      %vm1926 = vcmp.eq.f32.partialorder %v1848, inf
      %v1927 = vsel %vm1926, %v1848, %v1925
      %vm1928 = vcmp.eq.f32.partialorder %v1848, 0.0
      %v1929 = vand.u32 %v1848, 2147483648
      %v1930 = vsel %vm1928, %v1929, %v1927
      %v1931 = vrsqrt.pop %v1849
      %v1932 = vmul.f32 %v1849, %v1931
      %vm1933 = vcmp.eq.f32.partialorder %v1849, inf
      %v1934 = vsel %vm1933, %v1849, %v1932
      %vm1935 = vcmp.eq.f32.partialorder %v1849, 0.0
      %v1936 = vand.u32 %v1849, 2147483648
      %v1937 = vsel %vm1935, %v1936, %v1934
      %v1938 = vrsqrt.pop %v1850
      %v1939 = vmul.f32 %v1850, %v1938
      %vm1940 = vcmp.eq.f32.partialorder %v1850, inf
      %v1941 = vsel %vm1940, %v1850, %v1939
      %vm1942 = vcmp.eq.f32.partialorder %v1850, 0.0
      %v1943 = vand.u32 %v1850, 2147483648
      %v1944 = vsel %vm1942, %v1943, %v1941
      %v1945 = vrsqrt.pop %v1851
      %v1946 = vmul.f32 %v1851, %v1945
      %vm1947 = vcmp.eq.f32.partialorder %v1851, inf
      %v1948 = vsel %vm1947, %v1851, %v1946
      %vm1949 = vcmp.eq.f32.partialorder %v1851, 0.0
      %v1950 = vand.u32 %v1851, 2147483648
      %v1951 = vsel %vm1949, %v1950, %v1948
      %v1952 = vrsqrt.pop %v1852
      %v1953 = vmul.f32 %v1852, %v1952
      %vm1954 = vcmp.eq.f32.partialorder %v1852, inf
      %v1955 = vsel %vm1954, %v1852, %v1953
      %vm1956 = vcmp.eq.f32.partialorder %v1852, 0.0
      %v1957 = vand.u32 %v1852, 2147483648
      %v1958 = vsel %vm1956, %v1957, %v1955
      %v1959 = vand.u32 2147483647, %v1853
      %v1960 = vand.u32 2147483647, %v1895
      %v1961 = vmin.f32 %v1959, %v1960
      %v1962 = vmax.f32 %v1959, %v1960
      %v1963 = vrcp.pop %v1962
      %v1964 = vmul.f32 %v1961, %v1963
      %v1965 = vmul.f32 %v1964, %v1964
      %v1966 = vmul.f32 0.002785687, %v1965
      %v1967 = vadd.f32 %v1966, -0.015866
      %v1968 = vmul.f32 %v1967, %v1965
      %v1969 = vadd.f32 %v1968, 0.04247222
      %v1970 = vmul.f32 %v1969, %v1965
      %v1971 = vadd.f32 %v1970, -0.074975304
      %v1972 = vmul.f32 %v1971, %v1965
      %v1973 = vadd.f32 %v1972, 0.1064488
      %v1974 = vmul.f32 %v1973, %v1965
      %v1975 = vadd.f32 %v1974, -0.14207031
      %v1976 = vmul.f32 %v1975, %v1965
      %v1977 = vadd.f32 %v1976, 0.19993454
      %v1978 = vmul.f32 %v1977, %v1965
      %v1979 = vadd.f32 %v1978, -0.33333147
      %v1980 = vmul.f32 %v1979, %v1965
      %v1981 = vmul.f32 %v1980, %v1964
      %v1982 = vadd.f32 %v1981, %v1964
      %vm1983 = vcmp.gt.f32.partialorder %v1960, %v1959
      %v1984 = vsub.f32 1.5707964, %v1982
      %v1985 = vsel %vm1983, %v1984, %v1982
      %vm1986 = vcmp.lt.f32.partialorder %v1853, 0.0
      %v1987 = vsub.f32 3.1415927, %v1985
      %v1988 = vsel %vm1986, %v1987, %v1985
      %vm1989 = vcmp.lt.s32.totalorder %v1853, 0
      %v1990 = vsel %vm1989, 3.1415927, 0.0
      %vm1991 = vcmp.eq.f32.partialorder %v1895, 0.0
      %v1992 = vsel %vm1991, %v1990, %v1988
      %vm1993 = vcmp.ne.f32.partialorder %v1853, %v1853
      %vm1994 = vcmp.ne.f32.partialorder %v1895, %v1895
      %vm1995 = vmor %vm1993, %vm1994
      %v1996 = vsel %vm1995, nan, %v1992
      %vm1997 = vcmp.lt.f32.partialorder %v1853, 0.0
      %v1998 = vsel %vm1997, 2.3561945, 0.7853982
      %vm1999 = vcmp.eq.s32.totalorder %v1959, inf
      %vm2000 = vcmp.eq.s32.totalorder %v1960, inf
      %vm2001 = vmand %vm1999, %vm2000
      %v2002 = vsel %vm2001, %v1998, %v1996
      %v2003 = vand.u32 2147483647, %v2002
      %v2004 = vand.u32 %v1895, 2147483648
      %v2005 = vor.u32 %v2003, %v2004
      %v2006 = vand.u32 2147483647, %v1854
      %v2007 = vand.u32 2147483647, %v1896
      %v2008 = vmin.f32 %v2006, %v2007
      %v2009 = vmax.f32 %v2006, %v2007
      %v2010 = vrcp.pop %v2009
      %v2011 = vmul.f32 %v2008, %v2010
      %v2012 = vmul.f32 %v2011, %v2011
      %v2013 = vmul.f32 0.002785687, %v2012
      %v2014 = vadd.f32 %v2013, -0.015866
      %v2015 = vmul.f32 %v2014, %v2012
      %v2016 = vadd.f32 %v2015, 0.04247222
      %v2017 = vmul.f32 %v2016, %v2012
      %v2018 = vadd.f32 %v2017, -0.074975304
      %v2019 = vmul.f32 %v2018, %v2012
      %v2020 = vadd.f32 %v2019, 0.1064488
      %v2021 = vmul.f32 %v2020, %v2012
      %v2022 = vadd.f32 %v2021, -0.14207031
      %v2023 = vmul.f32 %v2022, %v2012
      %v2024 = vadd.f32 %v2023, 0.19993454
      %v2025 = vmul.f32 %v2024, %v2012
      %v2026 = vadd.f32 %v2025, -0.33333147
      %v2027 = vmul.f32 %v2026, %v2012
      %v2028 = vmul.f32 %v2027, %v2011
      %v2029 = vadd.f32 %v2028, %v2011
      %vm2030 = vcmp.gt.f32.partialorder %v2007, %v2006
      %v2031 = vsub.f32 1.5707964, %v2029
      %v2032 = vsel %vm2030, %v2031, %v2029
      %vm2033 = vcmp.lt.f32.partialorder %v1854, 0.0
      %v2034 = vsub.f32 3.1415927, %v2032
      %v2035 = vsel %vm2033, %v2034, %v2032
      %vm2036 = vcmp.lt.s32.totalorder %v1854, 0
      %v2037 = vsel %vm2036, 3.1415927, 0.0
      %vm2038 = vcmp.eq.f32.partialorder %v1896, 0.0
      %v2039 = vsel %vm2038, %v2037, %v2035
      %vm2040 = vcmp.ne.f32.partialorder %v1854, %v1854
      %vm2041 = vcmp.ne.f32.partialorder %v1896, %v1896
      %vm2042 = vmor %vm2040, %vm2041
      %v2043 = vsel %vm2042, nan, %v2039
      %vm2044 = vcmp.lt.f32.partialorder %v1854, 0.0
      %v2045 = vsel %vm2044, 2.3561945, 0.7853982
      %vm2046 = vcmp.eq.s32.totalorder %v2006, inf
      %vm2047 = vcmp.eq.s32.totalorder %v2007, inf
      %vm2048 = vmand %vm2046, %vm2047
      %v2049 = vsel %vm2048, %v2045, %v2043
      %v2050 = vand.u32 2147483647, %v2049
      %v2051 = vand.u32 %v1896, 2147483648
      %v2052 = vor.u32 %v2050, %v2051
      %v2053 = vand.u32 2147483647, %v1855
      %v2054 = vand.u32 2147483647, %v1897
      %v2055 = vmin.f32 %v2053, %v2054
      %v2056 = vmax.f32 %v2053, %v2054
      %v2057 = vrcp.pop %v2056
      %v2058 = vmul.f32 %v2055, %v2057
      %v2059 = vmul.f32 %v2058, %v2058
      %v2060 = vmul.f32 0.002785687, %v2059
      %v2061 = vadd.f32 %v2060, -0.015866
      %v2062 = vmul.f32 %v2061, %v2059
      %v2063 = vadd.f32 %v2062, 0.04247222
      %v2064 = vmul.f32 %v2063, %v2059
      %v2065 = vadd.f32 %v2064, -0.074975304
      %v2066 = vmul.f32 %v2065, %v2059
      %v2067 = vadd.f32 %v2066, 0.1064488
      %v2068 = vmul.f32 %v2067, %v2059
      %v2069 = vadd.f32 %v2068, -0.14207031
      %v2070 = vmul.f32 %v2069, %v2059
      %v2071 = vadd.f32 %v2070, 0.19993454
      %v2072 = vmul.f32 %v2071, %v2059
      %v2073 = vadd.f32 %v2072, -0.33333147
      %v2074 = vmul.f32 %v2073, %v2059
      %v2075 = vmul.f32 %v2074, %v2058
      %v2076 = vadd.f32 %v2075, %v2058
      %vm2077 = vcmp.gt.f32.partialorder %v2054, %v2053
      %v2078 = vsub.f32 1.5707964, %v2076
      %v2079 = vsel %vm2077, %v2078, %v2076
      %vm2080 = vcmp.lt.f32.partialorder %v1855, 0.0
      %v2081 = vsub.f32 3.1415927, %v2079
      %v2082 = vsel %vm2080, %v2081, %v2079
      %vm2083 = vcmp.lt.s32.totalorder %v1855, 0
      %v2084 = vsel %vm2083, 3.1415927, 0.0
      %vm2085 = vcmp.eq.f32.partialorder %v1897, 0.0
      %v2086 = vsel %vm2085, %v2084, %v2082
      %vm2087 = vcmp.ne.f32.partialorder %v1855, %v1855
      %vm2088 = vcmp.ne.f32.partialorder %v1897, %v1897
      %vm2089 = vmor %vm2087, %vm2088
      %v2090 = vsel %vm2089, nan, %v2086
      %vm2091 = vcmp.lt.f32.partialorder %v1855, 0.0
      %v2092 = vsel %vm2091, 2.3561945, 0.7853982
      %vm2093 = vcmp.eq.s32.totalorder %v2053, inf
      %vm2094 = vcmp.eq.s32.totalorder %v2054, inf
      %vm2095 = vmand %vm2093, %vm2094
      %v2096 = vsel %vm2095, %v2092, %v2090
      %v2097 = vand.u32 2147483647, %v2096
      %v2098 = vand.u32 %v1897, 2147483648
      %v2099 = vor.u32 %v2097, %v2098
      %v2100 = vand.u32 2147483647, %v1856
      %v2101 = vand.u32 2147483647, %v1898
      %v2102 = vmin.f32 %v2100, %v2101
      %v2103 = vmax.f32 %v2100, %v2101
      %v2104 = vrcp.pop %v2103
      %v2105 = vmul.f32 %v2102, %v2104
      %v2106 = vmul.f32 %v2105, %v2105
      %v2107 = vmul.f32 0.002785687, %v2106
      %v2108 = vadd.f32 %v2107, -0.015866
      %v2109 = vmul.f32 %v2108, %v2106
      %v2110 = vadd.f32 %v2109, 0.04247222
      %v2111 = vmul.f32 %v2110, %v2106
      %v2112 = vadd.f32 %v2111, -0.074975304
      %v2113 = vmul.f32 %v2112, %v2106
      %v2114 = vadd.f32 %v2113, 0.1064488
      %v2115 = vmul.f32 %v2114, %v2106
      %v2116 = vadd.f32 %v2115, -0.14207031
      %v2117 = vmul.f32 %v2116, %v2106
      %v2118 = vadd.f32 %v2117, 0.19993454
      %v2119 = vmul.f32 %v2118, %v2106
      %v2120 = vadd.f32 %v2119, -0.33333147
      %v2121 = vmul.f32 %v2120, %v2106
      %v2122 = vmul.f32 %v2121, %v2105
      %v2123 = vadd.f32 %v2122, %v2105
      %vm2124 = vcmp.gt.f32.partialorder %v2101, %v2100
      %v2125 = vsub.f32 1.5707964, %v2123
      %v2126 = vsel %vm2124, %v2125, %v2123
      %vm2127 = vcmp.lt.f32.partialorder %v1856, 0.0
      %v2128 = vsub.f32 3.1415927, %v2126
      %v2129 = vsel %vm2127, %v2128, %v2126
      %vm2130 = vcmp.lt.s32.totalorder %v1856, 0
      %v2131 = vsel %vm2130, 3.1415927, 0.0
      %vm2132 = vcmp.eq.f32.partialorder %v1898, 0.0
      %v2133 = vsel %vm2132, %v2131, %v2129
      %vm2134 = vcmp.ne.f32.partialorder %v1856, %v1856
      %vm2135 = vcmp.ne.f32.partialorder %v1898, %v1898
      %vm2136 = vmor %vm2134, %vm2135
      %v2137 = vsel %vm2136, nan, %v2133
      %vm2138 = vcmp.lt.f32.partialorder %v1856, 0.0
      %v2139 = vsel %vm2138, 2.3561945, 0.7853982
      %vm2140 = vcmp.eq.s32.totalorder %v2100, inf
      %vm2141 = vcmp.eq.s32.totalorder %v2101, inf
      %vm2142 = vmand %vm2140, %vm2141
      %v2143 = vsel %vm2142, %v2139, %v2137
      %v2144 = vand.u32 2147483647, %v2143
      %v2145 = vand.u32 %v1898, 2147483648
      %v2146 = vor.u32 %v2144, %v2145
      %v2147 = vand.u32 2147483647, %v1857
      %v2148 = vand.u32 2147483647, %v1899
      %v2149 = vmin.f32 %v2147, %v2148
      %v2150 = vmax.f32 %v2147, %v2148
      %v2151 = vrcp.pop %v2150
      %v2152 = vmul.f32 %v2149, %v2151
      %v2153 = vmul.f32 %v2152, %v2152
      %v2154 = vmul.f32 0.002785687, %v2153
      %v2155 = vadd.f32 %v2154, -0.015866
      %v2156 = vmul.f32 %v2155, %v2153
      %v2157 = vadd.f32 %v2156, 0.04247222
      %v2158 = vmul.f32 %v2157, %v2153
      %v2159 = vadd.f32 %v2158, -0.074975304
      %v2160 = vmul.f32 %v2159, %v2153
      %v2161 = vadd.f32 %v2160, 0.1064488
      %v2162 = vmul.f32 %v2161, %v2153
      %v2163 = vadd.f32 %v2162, -0.14207031
      %v2164 = vmul.f32 %v2163, %v2153
      %v2165 = vadd.f32 %v2164, 0.19993454
      %v2166 = vmul.f32 %v2165, %v2153
      %v2167 = vadd.f32 %v2166, -0.33333147
      %v2168 = vmul.f32 %v2167, %v2153
      %v2169 = vmul.f32 %v2168, %v2152
      %v2170 = vadd.f32 %v2169, %v2152
      %vm2171 = vcmp.gt.f32.partialorder %v2148, %v2147
      %v2172 = vsub.f32 1.5707964, %v2170
      %v2173 = vsel %vm2171, %v2172, %v2170
      %vm2174 = vcmp.lt.f32.partialorder %v1857, 0.0
      %v2175 = vsub.f32 3.1415927, %v2173
      %v2176 = vsel %vm2174, %v2175, %v2173
      %vm2177 = vcmp.lt.s32.totalorder %v1857, 0
      %v2178 = vsel %vm2177, 3.1415927, 0.0
      %vm2179 = vcmp.eq.f32.partialorder %v1899, 0.0
      %v2180 = vsel %vm2179, %v2178, %v2176
      %vm2181 = vcmp.ne.f32.partialorder %v1857, %v1857
      %vm2182 = vcmp.ne.f32.partialorder %v1899, %v1899
      %vm2183 = vmor %vm2181, %vm2182
      %v2184 = vsel %vm2183, nan, %v2180
      %vm2185 = vcmp.lt.f32.partialorder %v1857, 0.0
      %v2186 = vsel %vm2185, 2.3561945, 0.7853982
      %vm2187 = vcmp.eq.s32.totalorder %v2147, inf
      %vm2188 = vcmp.eq.s32.totalorder %v2148, inf
      %vm2189 = vmand %vm2187, %vm2188
      %v2190 = vsel %vm2189, %v2186, %v2184
      %v2191 = vand.u32 2147483647, %v2190
      %v2192 = vand.u32 %v1899, 2147483648
      %v2193 = vor.u32 %v2191, %v2192
      %v2194 = vand.u32 2147483647, %v1858
      %v2195 = vand.u32 2147483647, %v1900
      %v2196 = vmin.f32 %v2194, %v2195
      %v2197 = vmax.f32 %v2194, %v2195
      %v2198 = vrcp.pop %v2197
      %v2199 = vmul.f32 %v2196, %v2198
      %v2200 = vmul.f32 %v2199, %v2199
      %v2201 = vmul.f32 0.002785687, %v2200
      %v2202 = vadd.f32 %v2201, -0.015866
      %v2203 = vmul.f32 %v2202, %v2200
      %v2204 = vadd.f32 %v2203, 0.04247222
      %v2205 = vmul.f32 %v2204, %v2200
      %v2206 = vadd.f32 %v2205, -0.074975304
      %v2207 = vmul.f32 %v2206, %v2200
      %v2208 = vadd.f32 %v2207, 0.1064488
      %v2209 = vmul.f32 %v2208, %v2200
      %v2210 = vadd.f32 %v2209, -0.14207031
      %v2211 = vmul.f32 %v2210, %v2200
      %v2212 = vadd.f32 %v2211, 0.19993454
      %v2213 = vmul.f32 %v2212, %v2200
      %v2214 = vadd.f32 %v2213, -0.33333147
      %v2215 = vmul.f32 %v2214, %v2200
      %v2216 = vmul.f32 %v2215, %v2199
      %v2217 = vadd.f32 %v2216, %v2199
      %vm2218 = vcmp.gt.f32.partialorder %v2195, %v2194
      %v2219 = vsub.f32 1.5707964, %v2217
      %v2220 = vsel %vm2218, %v2219, %v2217
      %vm2221 = vcmp.lt.f32.partialorder %v1858, 0.0
      %v2222 = vsub.f32 3.1415927, %v2220
      %v2223 = vsel %vm2221, %v2222, %v2220
      %vm2224 = vcmp.lt.s32.totalorder %v1858, 0
      %v2225 = vsel %vm2224, 3.1415927, 0.0
      %vm2226 = vcmp.eq.f32.partialorder %v1900, 0.0
      %v2227 = vsel %vm2226, %v2225, %v2223
      %vm2228 = vcmp.ne.f32.partialorder %v1858, %v1858
      %vm2229 = vcmp.ne.f32.partialorder %v1900, %v1900
      %vm2230 = vmor %vm2228, %vm2229
      %v2231 = vsel %vm2230, nan, %v2227
      %vm2232 = vcmp.lt.f32.partialorder %v1858, 0.0
      %v2233 = vsel %vm2232, 2.3561945, 0.7853982
      %vm2234 = vcmp.eq.s32.totalorder %v2194, inf
      %vm2235 = vcmp.eq.s32.totalorder %v2195, inf
      %vm2236 = vmand %vm2234, %vm2235
      %v2237 = vsel %vm2236, %v2233, %v2231
      %v2238 = vand.u32 2147483647, %v2237
      %v2239 = vand.u32 %v1900, 2147483648
      %v2240 = vor.u32 %v2238, %v2239
      %v2241 = vand.u32 2147483647, %v1859
      %v2242 = vand.u32 2147483647, %v1901
      %v2243 = vmin.f32 %v2241, %v2242
      %v2244 = vmax.f32 %v2241, %v2242
      %v2245 = vrcp.pop %v2244
      %v2246 = vmul.f32 %v2243, %v2245
      %v2247 = vmul.f32 %v2246, %v2246
      %v2248 = vmul.f32 0.002785687, %v2247
      %v2249 = vadd.f32 %v2248, -0.015866
      %v2250 = vmul.f32 %v2249, %v2247
      %v2251 = vadd.f32 %v2250, 0.04247222
      %v2252 = vmul.f32 %v2251, %v2247
      %v2253 = vadd.f32 %v2252, -0.074975304
      %v2254 = vmul.f32 %v2253, %v2247
      %v2255 = vadd.f32 %v2254, 0.1064488
      %v2256 = vmul.f32 %v2255, %v2247
      %v2257 = vadd.f32 %v2256, -0.14207031
      %v2258 = vmul.f32 %v2257, %v2247
      %v2259 = vadd.f32 %v2258, 0.19993454
      %v2260 = vmul.f32 %v2259, %v2247
      %v2261 = vadd.f32 %v2260, -0.33333147
      %v2262 = vmul.f32 %v2261, %v2247
      %v2263 = vmul.f32 %v2262, %v2246
      %v2264 = vadd.f32 %v2263, %v2246
      %vm2265 = vcmp.gt.f32.partialorder %v2242, %v2241
      %v2266 = vsub.f32 1.5707964, %v2264
      %v2267 = vsel %vm2265, %v2266, %v2264
      %vm2268 = vcmp.lt.f32.partialorder %v1859, 0.0
      %v2269 = vsub.f32 3.1415927, %v2267
      %v2270 = vsel %vm2268, %v2269, %v2267
      %vm2271 = vcmp.lt.s32.totalorder %v1859, 0
      %v2272 = vsel %vm2271, 3.1415927, 0.0
      %vm2273 = vcmp.eq.f32.partialorder %v1901, 0.0
      %v2274 = vsel %vm2273, %v2272, %v2270
      %vm2275 = vcmp.ne.f32.partialorder %v1859, %v1859
      %vm2276 = vcmp.ne.f32.partialorder %v1901, %v1901
      %vm2277 = vmor %vm2275, %vm2276
      %v2278 = vsel %vm2277, nan, %v2274
      %vm2279 = vcmp.lt.f32.partialorder %v1859, 0.0
      %v2280 = vsel %vm2279, 2.3561945, 0.7853982
      %vm2281 = vcmp.eq.s32.totalorder %v2241, inf
      %vm2282 = vcmp.eq.s32.totalorder %v2242, inf
      %vm2283 = vmand %vm2281, %vm2282
      %v2284 = vsel %vm2283, %v2280, %v2278
      %v2285 = vand.u32 2147483647, %v2284
      %v2286 = vand.u32 %v1901, 2147483648
      %v2287 = vor.u32 %v2285, %v2286
      %v2288 = vand.u32 2147483647, %v1860
      %v2289 = vand.u32 2147483647, %v1902
      %v2290 = vmin.f32 %v2288, %v2289
      %v2291 = vmax.f32 %v2288, %v2289
      %v2292 = vrcp.pop %v2291
      %v2293 = vmul.f32 %v2290, %v2292
      %v2294 = vmul.f32 %v2293, %v2293
      %v2295 = vmul.f32 0.002785687, %v2294
      %v2296 = vadd.f32 %v2295, -0.015866
      %v2297 = vmul.f32 %v2296, %v2294
      %v2298 = vadd.f32 %v2297, 0.04247222
      %v2299 = vmul.f32 %v2298, %v2294
      %v2300 = vadd.f32 %v2299, -0.074975304
      %v2301 = vmul.f32 %v2300, %v2294
      %v2302 = vadd.f32 %v2301, 0.1064488
      %v2303 = vmul.f32 %v2302, %v2294
      %v2304 = vadd.f32 %v2303, -0.14207031
      %v2305 = vmul.f32 %v2304, %v2294
      %v2306 = vadd.f32 %v2305, 0.19993454
      %v2307 = vmul.f32 %v2306, %v2294
      %v2308 = vadd.f32 %v2307, -0.33333147
      %v2309 = vmul.f32 %v2308, %v2294
      %v2310 = vmul.f32 %v2309, %v2293
      %v2311 = vadd.f32 %v2310, %v2293
      %vm2312 = vcmp.gt.f32.partialorder %v2289, %v2288
      %v2313 = vsub.f32 1.5707964, %v2311
      %v2314 = vsel %vm2312, %v2313, %v2311
      %vm2315 = vcmp.lt.f32.partialorder %v1860, 0.0
      %v2316 = vsub.f32 3.1415927, %v2314
      %v2317 = vsel %vm2315, %v2316, %v2314
      %vm2318 = vcmp.lt.s32.totalorder %v1860, 0
      %v2319 = vsel %vm2318, 3.1415927, 0.0
      %vm2320 = vcmp.eq.f32.partialorder %v1902, 0.0
      %v2321 = vsel %vm2320, %v2319, %v2317
      %vm2322 = vcmp.ne.f32.partialorder %v1860, %v1860
      %vm2323 = vcmp.ne.f32.partialorder %v1902, %v1902
      %vm2324 = vmor %vm2322, %vm2323
      %v2325 = vsel %vm2324, nan, %v2321
      %vm2326 = vcmp.lt.f32.partialorder %v1860, 0.0
      %v2327 = vsel %vm2326, 2.3561945, 0.7853982
      %vm2328 = vcmp.eq.s32.totalorder %v2288, inf
      %vm2329 = vcmp.eq.s32.totalorder %v2289, inf
      %vm2330 = vmand %vm2328, %vm2329
      %v2331 = vsel %vm2330, %v2327, %v2325
      %v2332 = vand.u32 2147483647, %v2331
      %v2333 = vand.u32 %v1902, 2147483648
      %v2334 = vor.u32 %v2332, %v2333
      %vm2335 = vcmp.lt.f32.partialorder %v2005, 0.0
      %vm2336 = vcmp.lt.f32.partialorder %v2052, 0.0
      %vm2337 = vcmp.lt.f32.partialorder %v2099, 0.0
      %vm2338 = vcmp.lt.f32.partialorder %v2146, 0.0
      %vm2339 = vcmp.lt.f32.partialorder %v2193, 0.0
      %vm2340 = vcmp.lt.f32.partialorder %v2240, 0.0
      %vm2341 = vcmp.lt.f32.partialorder %v2287, 0.0
      %vm2342 = vcmp.lt.f32.partialorder %v2334, 0.0
      %v2343 = vadd.f32 %v2005, 3.1415927
      %v2344 = vadd.f32 %v2052, 3.1415927
      %v2345 = vadd.f32 %v2099, 3.1415927
      %v2346 = vadd.f32 %v2146, 3.1415927
      %v2347 = vadd.f32 %v2193, 3.1415927
      %v2348 = vadd.f32 %v2240, 3.1415927
      %v2349 = vadd.f32 %v2287, 3.1415927
      %v2350 = vadd.f32 %v2334, 3.1415927
      %v2351 = vsel %vm2335, %v2343, %v2005
      %v2352 = vsel %vm2336, %v2344, %v2052
      %v2353 = vsel %vm2337, %v2345, %v2099
      %v2354 = vsel %vm2338, %v2346, %v2146
      %v2355 = vsel %vm2339, %v2347, %v2193
      %v2356 = vsel %vm2340, %v2348, %v2240
      %v2357 = vsel %vm2341, %v2349, %v2287
      %v2358 = vsel %vm2342, %v2350, %v2334
      %v2359 = vmul.f32 %v2351, 2.864789
      %v2360 = vmul.f32 %v2352, 2.864789
      %v2361 = vmul.f32 %v2353, 2.864789
      %v2362 = vmul.f32 %v2354, 2.864789
      %v2363 = vmul.f32 %v2355, 2.864789
      %v2364 = vmul.f32 %v2356, 2.864789
      %v2365 = vmul.f32 %v2357, 2.864789
      %v2366 = vmul.f32 %v2358, 2.864789
      %v2367 = vfloor.f32 %v2359
      %v2368 = vfloor.f32 %v2360
      %v2369 = vfloor.f32 %v2361
      %v2370 = vfloor.f32 %v2362
      %v2371 = vfloor.f32 %v2363
      %v2372 = vfloor.f32 %v2364
      %v2373 = vfloor.f32 %v2365
      %v2374 = vfloor.f32 %v2366
      %v2375 = vcvt.f32.s32.to.zero.pseudo %v2367
      %v2376 = vcvt.f32.s32.to.zero.pseudo %v2368
      %v2377 = vcvt.f32.s32.to.zero.pseudo %v2369
      %v2378 = vcvt.f32.s32.to.zero.pseudo %v2370
      %v2379 = vcvt.f32.s32.to.zero.pseudo %v2371
      %v2380 = vcvt.f32.s32.to.zero.pseudo %v2372
      %v2381 = vcvt.f32.s32.to.zero.pseudo %v2373
      %v2382 = vcvt.f32.s32.to.zero.pseudo %v2374
      %v2383 = vmul.f32 %v2367, 0.34906584
      %v2384 = vmul.f32 %v2368, 0.34906584
      %v2385 = vmul.f32 %v2369, 0.34906584
      %v2386 = vmul.f32 %v2370, 0.34906584
      %v2387 = vmul.f32 %v2371, 0.34906584
      %v2388 = vmul.f32 %v2372, 0.34906584
      %v2389 = vmul.f32 %v2373, 0.34906584
      %v2390 = vmul.f32 %v2374, 0.34906584
      %v2391 = vsub.f32 %v2351, %v2383
      %v2392 = vsub.f32 %v2352, %v2384
      %v2393 = vsub.f32 %v2353, %v2385
      %v2394 = vsub.f32 %v2354, %v2386
      %v2395 = vsub.f32 %v2355, %v2387
      %v2396 = vsub.f32 %v2356, %v2388
      %v2397 = vsub.f32 %v2357, %v2389
      %v2398 = vsub.f32 %v2358, %v2390
      %v2399 = vmul.f32 %v2391, 2.864789
      %v2400 = vmul.f32 %v2392, 2.864789
      %v2401 = vmul.f32 %v2393, 2.864789
      %v2402 = vmul.f32 %v2394, 2.864789
      %v2403 = vmul.f32 %v2395, 2.864789
      %v2404 = vmul.f32 %v2396, 2.864789
      %v2405 = vmul.f32 %v2397, 2.864789
      %v2406 = vmul.f32 %v2398, 2.864789
      %v2407 = vsub.f32 1.0, %v2399
      %v2408 = vsub.f32 1.0, %v2400
      %v2409 = vsub.f32 1.0, %v2401
      %v2410 = vsub.f32 1.0, %v2402
      %v2411 = vsub.f32 1.0, %v2403
      %v2412 = vsub.f32 1.0, %v2404
      %v2413 = vsub.f32 1.0, %v2405
      %v2414 = vsub.f32 1.0, %v2406
      %v2415 = vmul.f32 %v2407, %v1909
      %v2416 = vmul.f32 %v2408, %v1916
      %v2417 = vmul.f32 %v2409, %v1923
      %v2418 = vmul.f32 %v2410, %v1930
      %v2419 = vmul.f32 %v2411, %v1937
      %v2420 = vmul.f32 %v2412, %v1944
      %v2421 = vmul.f32 %v2413, %v1951
      %v2422 = vmul.f32 %v2414, %v1958
      %v2423 = vmul.f32 %v2399, %v1909
      %v2424 = vmul.f32 %v2400, %v1916
      %v2425 = vmul.f32 %v2401, %v1923
      %v2426 = vmul.f32 %v2402, %v1930
      %v2427 = vmul.f32 %v2403, %v1937
      %v2428 = vmul.f32 %v2404, %v1944
      %v2429 = vmul.f32 %v2405, %v1951
      %v2430 = vmul.f32 %v2406, %v1958
      %vm2431 = vcmp.ge.s32.totalorder %v2375, 9
      %vm2432 = vcmp.ge.s32.totalorder %v2376, 9
      %vm2433 = vcmp.ge.s32.totalorder %v2377, 9
      %vm2434 = vcmp.ge.s32.totalorder %v2378, 9
      %vm2435 = vcmp.ge.s32.totalorder %v2379, 9
      %vm2436 = vcmp.ge.s32.totalorder %v2380, 9
      %vm2437 = vcmp.ge.s32.totalorder %v2381, 9
      %vm2438 = vcmp.ge.s32.totalorder %v2382, 9
      %v2439 = vsub.s32 %v2375, 9
      %v2440 = vsub.s32 %v2376, 9
      %v2441 = vsub.s32 %v2377, 9
      %v2442 = vsub.s32 %v2378, 9
      %v2443 = vsub.s32 %v2379, 9
      %v2444 = vsub.s32 %v2380, 9
      %v2445 = vsub.s32 %v2381, 9
      %v2446 = vsub.s32 %v2382, 9
      %v2447 = vsel %vm2431, %v2439, %v2375
      %v2448 = vsel %vm2432, %v2440, %v2376
      %v2449 = vsel %vm2433, %v2441, %v2377
      %v2450 = vsel %vm2434, %v2442, %v2378
      %v2451 = vsel %vm2435, %v2443, %v2379
      %v2452 = vsel %vm2436, %v2444, %v2380
      %v2453 = vsel %vm2437, %v2445, %v2381
      %v2454 = vsel %vm2438, %v2446, %v2382
      %v2455 = vld [vmem:[%s1] sm:$0xf]
      %v2456 = vld [vmem:[%s2] sm:$0xff]
      %v2457 = vld [vmem:[%s2 + $0x8] sm:$0xff]
      %v2458 = vld [vmem:[%s2 + $0x10] sm:$0xff]
      %v2459 = vld [vmem:[%s2 + $0x18] sm:$0xff]
      %v2460 = vld [vmem:[%s2 + $0x20] sm:$0xff]
      %v2461 = vld [vmem:[%s2 + $0x28] sm:$0xff]
      %v2462 = vld [vmem:[%s2 + $0x30] sm:$0xff]
      %v2463 = vld [vmem:[%s2 + $0x38] sm:$0xff]
      %vm2464 = vcmp.eq.s32.totalorder %v2447, 0
      %vm2465 = vcmp.eq.s32.totalorder %v2448, 0
      %vm2466 = vcmp.eq.s32.totalorder %v2449, 0
      %vm2467 = vcmp.eq.s32.totalorder %v2450, 0
      %vm2468 = vcmp.eq.s32.totalorder %v2451, 0
      %vm2469 = vcmp.eq.s32.totalorder %v2452, 0
      %vm2470 = vcmp.eq.s32.totalorder %v2453, 0
      %vm2471 = vcmp.eq.s32.totalorder %v2454, 0
      %vm2472 = vcmp.eq.s32.totalorder %v2447, 8
      %vm2473 = vcmp.eq.s32.totalorder %v2448, 8
      %vm2474 = vcmp.eq.s32.totalorder %v2449, 8
      %vm2475 = vcmp.eq.s32.totalorder %v2450, 8
      %vm2476 = vcmp.eq.s32.totalorder %v2451, 8
      %vm2477 = vcmp.eq.s32.totalorder %v2452, 8
      %vm2478 = vcmp.eq.s32.totalorder %v2453, 8
      %vm2479 = vcmp.eq.s32.totalorder %v2454, 8
      %v2480 = vsel %vm2464, %v2415, 0.0
      %v2481 = vsel %vm2465, %v2416, 0.0
      %v2482 = vsel %vm2466, %v2417, 0.0
      %v2483 = vsel %vm2467, %v2418, 0.0
      %v2484 = vsel %vm2468, %v2419, 0.0
      %v2485 = vsel %vm2469, %v2420, 0.0
      %v2486 = vsel %vm2470, %v2421, 0.0
      %v2487 = vsel %vm2471, %v2422, 0.0
      %v2488 = vsel %vm2472, %v2423, 0.0
      %v2489 = vsel %vm2473, %v2424, 0.0
      %v2490 = vsel %vm2474, %v2425, 0.0
      %v2491 = vsel %vm2475, %v2426, 0.0
      %v2492 = vsel %vm2476, %v2427, 0.0
      %v2493 = vsel %vm2477, %v2428, 0.0
      %v2494 = vsel %vm2478, %v2429, 0.0
      %v2495 = vsel %vm2479, %v2430, 0.0
      %v2496 = vadd.f32 %v2480, %v2488
      %v2497 = vadd.f32 %v2481, %v2489
      %v2498 = vadd.f32 %v2482, %v2490
      %v2499 = vadd.f32 %v2483, %v2491
      %v2500 = vadd.f32 %v2484, %v2492
      %v2501 = vadd.f32 %v2485, %v2493
      %v2502 = vadd.f32 %v2486, %v2494
      %v2503 = vadd.f32 %v2487, %v2495
      %vm2504 = vcmask 523264
      %v2506 = vsel %vm2504, %v2455, 0
      %2508 = vmatprep.subr.mxu0 0.0
      %2509 = vmatpush1.msra.mxu0 %v2496
      %2510 = vmatprep.subr.mxu0 0.0
      %2511 = vmatpush1.msra.mxu0 %v2497
      %2512 = vmatprep.subr.mxu0 0.0
      %2513 = vmatpush1.msra.mxu0 %v2498
      %2514 = vmatprep.subr.mxu0 0.0
      %2515 = vmatpush1.msra.mxu0 %v2499
      %2516 = vmatprep.subr.mxu0 0.0
      %2517 = vmatpush1.msra.mxu0 %v2500
      %2518 = vmatprep.subr.mxu0 0.0
      %2519 = vmatpush1.msra.mxu0 %v2501
      %2520 = vmatprep.subr.mxu0 0.0
      %2521 = vmatpush1.msra.mxu0 %v2502
      %2522 = vmatprep.subr.mxu0 0.0
      %2523 = vmatpush1.msra.mxu0 %v2503
      %2524 = vmatprep.subr.mxu0 0.0
      %2525 = vmatpush1.msra.mxu0 0.0
      %2526 = vmatprep.subr.mxu0 0.0
      %2527 = vmatpush1.msra.mxu0 0.0
      %2528 = vmatprep.subr.mxu0 0.0
      %2529 = vmatpush1.msra.mxu0 0.0
      %2530 = vmatprep.subr.mxu0 0.0
      %2531 = vmatpush1.msra.mxu0 0.0
      %2532 = vmatprep.subr.mxu0 0.0
      %2533 = vmatpush1.msra.mxu0 0.0
      %2534 = vmatprep.subr.mxu0 0.0
      %2535 = vmatpush1.msra.mxu0 0.0
      %2536 = vmatprep.subr.mxu0 0.0
      %2537 = vmatpush1.msra.mxu0 0.0
      %2538 = vmatprep.subr.mxu0 0.0
      %2539 = vmatpush1.msra.mxu0 0.0
      %2540 = vmatprep.subr.mxu0 0.0
      %2541 = vmatpush1.msra.mxu0 0.0
      %2542 = vmatprep.subr.mxu0 0.0
      %2543 = vmatpush1.msra.mxu0 0.0
      %2544 = vmatprep.subr.mxu0 0.0
      %2545 = vmatpush1.msra.mxu0 0.0
      %2546 = vmatprep.subr.mxu0 0.0
      %2547 = vmatpush1.msra.mxu0 0.0
      %2548 = vmatprep.subr.mxu0 0.0
      %2549 = vmatpush1.msra.mxu0 0.0
      %2550 = vmatprep.subr.mxu0 0.0
      %2551 = vmatpush1.msra.mxu0 0.0
      %2552 = vmatprep.subr.mxu0 0.0
      %2553 = vmatpush1.msra.mxu0 0.0
      %2554 = vmatprep.subr.mxu0 0.0
      %2555 = vmatpush1.msra.mxu0 0.0
      %2556 = vmatprep.subr.mxu0 0.0
      %2557 = vmatpush1.msra.mxu0 0.0
      %2558 = vmatprep.subr.mxu0 0.0
      %2559 = vmatpush1.msra.mxu0 0.0
      %2560 = vmatprep.subr.mxu0 0.0
      %2561 = vmatpush1.msra.mxu0 0.0
      %2562 = vmatprep.subr.mxu0 0.0
      %2563 = vmatpush1.msra.mxu0 0.0
      %2564 = vmatprep.subr.mxu0 0.0
      %2565 = vmatpush1.msra.mxu0 0.0
      %2566 = vmatprep.subr.mxu0 0.0
      %2567 = vmatpush1.msra.mxu0 0.0
      %2568 = vmatprep.subr.mxu0 0.0
      %2569 = vmatpush1.msra.mxu0 0.0
      %2570 = vmatprep.subr.mxu0 0.0
      %2571 = vmatpush1.msra.mxu0 0.0
      %2572 = vmatprep.mubr.f32.mxu0 0.0
      %2573 = vmatmul.mubr.f32.gmra.mrb[0].mxu0 %v2506
      %v2574 = vpop.f32.mrb[0].mxu0
      %v2575 = vadd.f32 0.0, %v2574
      %v2576 = vpop.f32.mrb[0].mxu0
      %2577 = vdwg.mxu0
      %v2579 = vsel %vm2504, %v2575, 0
      %2581 = vmatprep.subr.mxu0 0.0
      %2582 = vmatpush1.msra.mxu0 %v2456
      %2583 = vmatprep.subr.mxu0 0.0
      %2584 = vmatpush1.msra.mxu0 %v2457
      %2585 = vmatprep.subr.mxu0 0.0
      %2586 = vmatpush1.msra.mxu0 %v2458
      %2587 = vmatprep.subr.mxu0 0.0
      %2588 = vmatpush1.msra.mxu0 %v2459
      %2589 = vmatprep.subr.mxu0 0.0
      %2590 = vmatpush1.msra.mxu0 %v2460
      %2591 = vmatprep.subr.mxu0 0.0
      %2592 = vmatpush1.msra.mxu0 %v2461
      %2593 = vmatprep.subr.mxu0 0.0
      %2594 = vmatpush1.msra.mxu0 %v2462
      %2595 = vmatprep.subr.mxu0 0.0
      %2596 = vmatpush1.msra.mxu0 %v2463
      %2597 = vmatprep.subr.mxu0 0.0
      %2598 = vmatpush1.msra.mxu0 0.0
      %2599 = vmatprep.subr.mxu0 0.0
      %2600 = vmatpush1.msra.mxu0 0.0
      %2601 = vmatprep.subr.mxu0 0.0
      %2602 = vmatpush1.msra.mxu0 0.0
      %2603 = vmatprep.subr.mxu0 0.0
      %2604 = vmatpush1.msra.mxu0 0.0
      %2605 = vmatprep.subr.mxu0 0.0
      %2606 = vmatpush1.msra.mxu0 0.0
      %2607 = vmatprep.subr.mxu0 0.0
      %2608 = vmatpush1.msra.mxu0 0.0
      %2609 = vmatprep.subr.mxu0 0.0
      %2610 = vmatpush1.msra.mxu0 0.0
      %2611 = vmatprep.subr.mxu0 0.0
      %2612 = vmatpush1.msra.mxu0 0.0
      %2613 = vmatprep.subr.mxu0 0.0
      %2614 = vmatpush1.msra.mxu0 0.0
      %2615 = vmatprep.subr.mxu0 0.0
      %2616 = vmatpush1.msra.mxu0 0.0
      %2617 = vmatprep.subr.mxu0 0.0
      %2618 = vmatpush1.msra.mxu0 0.0
      %2619 = vmatprep.subr.mxu0 0.0
      %2620 = vmatpush1.msra.mxu0 0.0
      %2621 = vmatprep.subr.mxu0 0.0
      %2622 = vmatpush1.msra.mxu0 0.0
      %2623 = vmatprep.subr.mxu0 0.0
      %2624 = vmatpush1.msra.mxu0 0.0
      %2625 = vmatprep.subr.mxu0 0.0
      %2626 = vmatpush1.msra.mxu0 0.0
      %2627 = vmatprep.subr.mxu0 0.0
      %2628 = vmatpush1.msra.mxu0 0.0
      %2629 = vmatprep.subr.mxu0 0.0
      %2630 = vmatpush1.msra.mxu0 0.0
      %2631 = vmatprep.subr.mxu0 0.0
      %2632 = vmatpush1.msra.mxu0 0.0
      %2633 = vmatprep.subr.mxu0 0.0
      %2634 = vmatpush1.msra.mxu0 0.0
      %2635 = vmatprep.subr.mxu0 0.0
      %2636 = vmatpush1.msra.mxu0 0.0
      %2637 = vmatprep.subr.mxu0 0.0
      %2638 = vmatpush1.msra.mxu0 0.0
      %2639 = vmatprep.subr.mxu0 0.0
      %2640 = vmatpush1.msra.mxu0 0.0
      %2641 = vmatprep.subr.mxu0 0.0
      %2642 = vmatpush1.msra.mxu0 0.0
      %2643 = vmatprep.subr.mxu0 0.0
      %2644 = vmatpush1.msra.mxu0 0.0
      %2645 = vmatprep.mubr.f32.mxu0 0.0
      %2646 = vmatmul.mubr.f32.gmra.mrb[0].mxu0 %v2579
      %v2647 = vpop.f32.mrb[0].mxu0
      %v2648 = vadd.f32 0.0, %v2647
      %v2649 = vpop.f32.mrb[0].mxu0
      %2650 = vdwg.mxu0
      %vm2651 = vcmp.eq.s32.totalorder %v2447, 1
      %vm2652 = vcmp.eq.s32.totalorder %v2448, 1
      %vm2653 = vcmp.eq.s32.totalorder %v2449, 1
      %vm2654 = vcmp.eq.s32.totalorder %v2450, 1
      %vm2655 = vcmp.eq.s32.totalorder %v2451, 1
      %vm2656 = vcmp.eq.s32.totalorder %v2452, 1
      %vm2657 = vcmp.eq.s32.totalorder %v2453, 1
      %vm2658 = vcmp.eq.s32.totalorder %v2454, 1
      %v2659 = vsel %vm2651, %v2415, 0.0
      %v2660 = vsel %vm2652, %v2416, 0.0
      %v2661 = vsel %vm2653, %v2417, 0.0
      %v2662 = vsel %vm2654, %v2418, 0.0
      %v2663 = vsel %vm2655, %v2419, 0.0
      %v2664 = vsel %vm2656, %v2420, 0.0
      %v2665 = vsel %vm2657, %v2421, 0.0
      %v2666 = vsel %vm2658, %v2422, 0.0
      %v2667 = vsel %vm2464, %v2423, 0.0
      %v2668 = vsel %vm2465, %v2424, 0.0
      %v2669 = vsel %vm2466, %v2425, 0.0
      %v2670 = vsel %vm2467, %v2426, 0.0
      %v2671 = vsel %vm2468, %v2427, 0.0
      %v2672 = vsel %vm2469, %v2428, 0.0
      %v2673 = vsel %vm2470, %v2429, 0.0
      %v2674 = vsel %vm2471, %v2430, 0.0
      %v2675 = vadd.f32 %v2659, %v2667
      %v2676 = vadd.f32 %v2660, %v2668
      %v2677 = vadd.f32 %v2661, %v2669
      %v2678 = vadd.f32 %v2662, %v2670
      %v2679 = vadd.f32 %v2663, %v2671
      %v2680 = vadd.f32 %v2664, %v2672
      %v2681 = vadd.f32 %v2665, %v2673
      %v2682 = vadd.f32 %v2666, %v2674
      %2683 = vmatprep.subr.mxu0 0.0
      %2684 = vmatpush1.msra.mxu0 %v2675
      %2685 = vmatprep.subr.mxu0 0.0
      %2686 = vmatpush1.msra.mxu0 %v2676
      %2687 = vmatprep.subr.mxu0 0.0
      %2688 = vmatpush1.msra.mxu0 %v2677
      %2689 = vmatprep.subr.mxu0 0.0
      %2690 = vmatpush1.msra.mxu0 %v2678
      %2691 = vmatprep.subr.mxu0 0.0
      %2692 = vmatpush1.msra.mxu0 %v2679
      %2693 = vmatprep.subr.mxu0 0.0
      %2694 = vmatpush1.msra.mxu0 %v2680
      %2695 = vmatprep.subr.mxu0 0.0
      %2696 = vmatpush1.msra.mxu0 %v2681
      %2697 = vmatprep.subr.mxu0 0.0
      %2698 = vmatpush1.msra.mxu0 %v2682
      %2699 = vmatprep.subr.mxu0 0.0
      %2700 = vmatpush1.msra.mxu0 0.0
      %2701 = vmatprep.subr.mxu0 0.0
      %2702 = vmatpush1.msra.mxu0 0.0
      %2703 = vmatprep.subr.mxu0 0.0
      %2704 = vmatpush1.msra.mxu0 0.0
      %2705 = vmatprep.subr.mxu0 0.0
      %2706 = vmatpush1.msra.mxu0 0.0
      %2707 = vmatprep.subr.mxu0 0.0
      %2708 = vmatpush1.msra.mxu0 0.0
      %2709 = vmatprep.subr.mxu0 0.0
      %2710 = vmatpush1.msra.mxu0 0.0
      %2711 = vmatprep.subr.mxu0 0.0
      %2712 = vmatpush1.msra.mxu0 0.0
      %2713 = vmatprep.subr.mxu0 0.0
      %2714 = vmatpush1.msra.mxu0 0.0
      %2715 = vmatprep.subr.mxu0 0.0
      %2716 = vmatpush1.msra.mxu0 0.0
      %2717 = vmatprep.subr.mxu0 0.0
      %2718 = vmatpush1.msra.mxu0 0.0
      %2719 = vmatprep.subr.mxu0 0.0
      %2720 = vmatpush1.msra.mxu0 0.0
      %2721 = vmatprep.subr.mxu0 0.0
      %2722 = vmatpush1.msra.mxu0 0.0
      %2723 = vmatprep.subr.mxu0 0.0
      %2724 = vmatpush1.msra.mxu0 0.0
      %2725 = vmatprep.subr.mxu0 0.0
      %2726 = vmatpush1.msra.mxu0 0.0
      %2727 = vmatprep.subr.mxu0 0.0
      %2728 = vmatpush1.msra.mxu0 0.0
      %2729 = vmatprep.subr.mxu0 0.0
      %2730 = vmatpush1.msra.mxu0 0.0
      %2731 = vmatprep.subr.mxu0 0.0
      %2732 = vmatpush1.msra.mxu0 0.0
      %2733 = vmatprep.subr.mxu0 0.0
      %2734 = vmatpush1.msra.mxu0 0.0
      %2735 = vmatprep.subr.mxu0 0.0
      %2736 = vmatpush1.msra.mxu0 0.0
      %2737 = vmatprep.subr.mxu0 0.0
      %2738 = vmatpush1.msra.mxu0 0.0
      %2739 = vmatprep.subr.mxu0 0.0
      %2740 = vmatpush1.msra.mxu0 0.0
      %2741 = vmatprep.subr.mxu0 0.0
      %2742 = vmatpush1.msra.mxu0 0.0
      %2743 = vmatprep.subr.mxu0 0.0
      %2744 = vmatpush1.msra.mxu0 0.0
      %2745 = vmatprep.subr.mxu0 0.0
      %2746 = vmatpush1.msra.mxu0 0.0
      %2747 = vmatprep.mubr.f32.mxu0 0.0
      %2748 = vmatmul.mubr.f32.gmra.mrb[0].mxu0 %v2506
      %v2749 = vpop.f32.mrb[0].mxu0
      %v2750 = vadd.f32 0.0, %v2749
      %v2751 = vpop.f32.mrb[0].mxu0
      %2752 = vdwg.mxu0
      %v2754 = vsel %vm2504, %v2750, 0
      %2756 = vmatprep.subr.mxu0 0.0
      %2757 = vmatpush1.msra.mxu0 %v2456
      %2758 = vmatprep.subr.mxu0 0.0
      %2759 = vmatpush1.msra.mxu0 %v2457
      %2760 = vmatprep.subr.mxu0 0.0
      %2761 = vmatpush1.msra.mxu0 %v2458
      %2762 = vmatprep.subr.mxu0 0.0
      %2763 = vmatpush1.msra.mxu0 %v2459
      %2764 = vmatprep.subr.mxu0 0.0
      %2765 = vmatpush1.msra.mxu0 %v2460
      %2766 = vmatprep.subr.mxu0 0.0
      %2767 = vmatpush1.msra.mxu0 %v2461
      %2768 = vmatprep.subr.mxu0 0.0
      %2769 = vmatpush1.msra.mxu0 %v2462
      %2770 = vmatprep.subr.mxu0 0.0
      %2771 = vmatpush1.msra.mxu0 %v2463
      %2772 = vmatprep.subr.mxu0 0.0
      %2773 = vmatpush1.msra.mxu0 0.0
      %2774 = vmatprep.subr.mxu0 0.0
      %2775 = vmatpush1.msra.mxu0 0.0
      %2776 = vmatprep.subr.mxu0 0.0
      %2777 = vmatpush1.msra.mxu0 0.0
      %2778 = vmatprep.subr.mxu0 0.0
      %2779 = vmatpush1.msra.mxu0 0.0
      %2780 = vmatprep.subr.mxu0 0.0
      %2781 = vmatpush1.msra.mxu0 0.0
      %2782 = vmatprep.subr.mxu0 0.0
      %2783 = vmatpush1.msra.mxu0 0.0
      %2784 = vmatprep.subr.mxu0 0.0
      %2785 = vmatpush1.msra.mxu0 0.0
      %2786 = vmatprep.subr.mxu0 0.0
      %2787 = vmatpush1.msra.mxu0 0.0
      %2788 = vmatprep.subr.mxu0 0.0
      %2789 = vmatpush1.msra.mxu0 0.0
      %2790 = vmatprep.subr.mxu0 0.0
      %2791 = vmatpush1.msra.mxu0 0.0
      %2792 = vmatprep.subr.mxu0 0.0
      %2793 = vmatpush1.msra.mxu0 0.0
      %2794 = vmatprep.subr.mxu0 0.0
      %2795 = vmatpush1.msra.mxu0 0.0
      %2796 = vmatprep.subr.mxu0 0.0
      %2797 = vmatpush1.msra.mxu0 0.0
      %2798 = vmatprep.subr.mxu0 0.0
      %2799 = vmatpush1.msra.mxu0 0.0
      %2800 = vmatprep.subr.mxu0 0.0
      %2801 = vmatpush1.msra.mxu0 0.0
      %2802 = vmatprep.subr.mxu0 0.0
      %2803 = vmatpush1.msra.mxu0 0.0
      %2804 = vmatprep.subr.mxu0 0.0
      %2805 = vmatpush1.msra.mxu0 0.0
      %2806 = vmatprep.subr.mxu0 0.0
      %2807 = vmatpush1.msra.mxu0 0.0
      %2808 = vmatprep.subr.mxu0 0.0
      %2809 = vmatpush1.msra.mxu0 0.0
      %2810 = vmatprep.subr.mxu0 0.0
      %2811 = vmatpush1.msra.mxu0 0.0
      %2812 = vmatprep.subr.mxu0 0.0
      %2813 = vmatpush1.msra.mxu0 0.0
      %2814 = vmatprep.subr.mxu0 0.0
      %2815 = vmatpush1.msra.mxu0 0.0
      %2816 = vmatprep.subr.mxu0 0.0
      %2817 = vmatpush1.msra.mxu0 0.0
      %2818 = vmatprep.subr.mxu0 0.0
      %2819 = vmatpush1.msra.mxu0 0.0
      %2820 = vmatprep.mubr.f32.mxu0 0.0
      %2821 = vmatmul.mubr.f32.gmra.mrb[0].mxu0 %v2754
      %v2822 = vpop.f32.mrb[0].mxu0
      %v2823 = vadd.f32 0.0, %v2822
      %v2824 = vpop.f32.mrb[0].mxu0
      %2825 = vdwg.mxu0
      %vm2826 = vcmp.eq.s32.totalorder %v2447, 2
      %vm2827 = vcmp.eq.s32.totalorder %v2448, 2
      %vm2828 = vcmp.eq.s32.totalorder %v2449, 2
      %vm2829 = vcmp.eq.s32.totalorder %v2450, 2
      %vm2830 = vcmp.eq.s32.totalorder %v2451, 2
      %vm2831 = vcmp.eq.s32.totalorder %v2452, 2
      %vm2832 = vcmp.eq.s32.totalorder %v2453, 2
      %vm2833 = vcmp.eq.s32.totalorder %v2454, 2
      %v2834 = vsel %vm2826, %v2415, 0.0
      %v2835 = vsel %vm2827, %v2416, 0.0
      %v2836 = vsel %vm2828, %v2417, 0.0
      %v2837 = vsel %vm2829, %v2418, 0.0
      %v2838 = vsel %vm2830, %v2419, 0.0
      %v2839 = vsel %vm2831, %v2420, 0.0
      %v2840 = vsel %vm2832, %v2421, 0.0
      %v2841 = vsel %vm2833, %v2422, 0.0
      %v2842 = vsel %vm2651, %v2423, 0.0
      %v2843 = vsel %vm2652, %v2424, 0.0
      %v2844 = vsel %vm2653, %v2425, 0.0
      %v2845 = vsel %vm2654, %v2426, 0.0
      %v2846 = vsel %vm2655, %v2427, 0.0
      %v2847 = vsel %vm2656, %v2428, 0.0
      %v2848 = vsel %vm2657, %v2429, 0.0
      %v2849 = vsel %vm2658, %v2430, 0.0
      %v2850 = vadd.f32 %v2834, %v2842
      %v2851 = vadd.f32 %v2835, %v2843
      %v2852 = vadd.f32 %v2836, %v2844
      %v2853 = vadd.f32 %v2837, %v2845
      %v2854 = vadd.f32 %v2838, %v2846
      %v2855 = vadd.f32 %v2839, %v2847
      %v2856 = vadd.f32 %v2840, %v2848
      %v2857 = vadd.f32 %v2841, %v2849
      %2858 = vmatprep.subr.mxu0 0.0
      %2859 = vmatpush1.msra.mxu0 %v2850
      %2860 = vmatprep.subr.mxu0 0.0
      %2861 = vmatpush1.msra.mxu0 %v2851
      %2862 = vmatprep.subr.mxu0 0.0
      %2863 = vmatpush1.msra.mxu0 %v2852
      %2864 = vmatprep.subr.mxu0 0.0
      %2865 = vmatpush1.msra.mxu0 %v2853
      %2866 = vmatprep.subr.mxu0 0.0
      %2867 = vmatpush1.msra.mxu0 %v2854
      %2868 = vmatprep.subr.mxu0 0.0
      %2869 = vmatpush1.msra.mxu0 %v2855
      %2870 = vmatprep.subr.mxu0 0.0
      %2871 = vmatpush1.msra.mxu0 %v2856
      %2872 = vmatprep.subr.mxu0 0.0
      %2873 = vmatpush1.msra.mxu0 %v2857
      %2874 = vmatprep.subr.mxu0 0.0
      %2875 = vmatpush1.msra.mxu0 0.0
      %2876 = vmatprep.subr.mxu0 0.0
      %2877 = vmatpush1.msra.mxu0 0.0
      %2878 = vmatprep.subr.mxu0 0.0
      %2879 = vmatpush1.msra.mxu0 0.0
      %2880 = vmatprep.subr.mxu0 0.0
      %2881 = vmatpush1.msra.mxu0 0.0
      %2882 = vmatprep.subr.mxu0 0.0
      %2883 = vmatpush1.msra.mxu0 0.0
      %2884 = vmatprep.subr.mxu0 0.0
      %2885 = vmatpush1.msra.mxu0 0.0
      %2886 = vmatprep.subr.mxu0 0.0
      %2887 = vmatpush1.msra.mxu0 0.0
      %2888 = vmatprep.subr.mxu0 0.0
      %2889 = vmatpush1.msra.mxu0 0.0
      %2890 = vmatprep.subr.mxu0 0.0
      %2891 = vmatpush1.msra.mxu0 0.0
      %2892 = vmatprep.subr.mxu0 0.0
      %2893 = vmatpush1.msra.mxu0 0.0
      %2894 = vmatprep.subr.mxu0 0.0
      %2895 = vmatpush1.msra.mxu0 0.0
      %2896 = vmatprep.subr.mxu0 0.0
      %2897 = vmatpush1.msra.mxu0 0.0
      %2898 = vmatprep.subr.mxu0 0.0
      %2899 = vmatpush1.msra.mxu0 0.0
      %2900 = vmatprep.subr.mxu0 0.0
      %2901 = vmatpush1.msra.mxu0 0.0
      %2902 = vmatprep.subr.mxu0 0.0
      %2903 = vmatpush1.msra.mxu0 0.0
      %2904 = vmatprep.subr.mxu0 0.0
      %2905 = vmatpush1.msra.mxu0 0.0
      %2906 = vmatprep.subr.mxu0 0.0
      %2907 = vmatpush1.msra.mxu0 0.0
      %2908 = vmatprep.subr.mxu0 0.0
      %2909 = vmatpush1.msra.mxu0 0.0
      %2910 = vmatprep.subr.mxu0 0.0
      %2911 = vmatpush1.msra.mxu0 0.0
      %2912 = vmatprep.subr.mxu0 0.0
      %2913 = vmatpush1.msra.mxu0 0.0
      %2914 = vmatprep.subr.mxu0 0.0
      %2915 = vmatpush1.msra.mxu0 0.0
      %2916 = vmatprep.subr.mxu0 0.0
      %2917 = vmatpush1.msra.mxu0 0.0
      %2918 = vmatprep.subr.mxu0 0.0
      %2919 = vmatpush1.msra.mxu0 0.0
      %2920 = vmatprep.subr.mxu0 0.0
      %2921 = vmatpush1.msra.mxu0 0.0
      %2922 = vmatprep.mubr.f32.mxu0 0.0
      %2923 = vmatmul.mubr.f32.gmra.mrb[0].mxu0 %v2506
      %v2924 = vpop.f32.mrb[0].mxu0
      %v2925 = vadd.f32 0.0, %v2924
      %v2926 = vpop.f32.mrb[0].mxu0
      %2927 = vdwg.mxu0
      %v2929 = vsel %vm2504, %v2925, 0
      %2931 = vmatprep.subr.mxu0 0.0
      %2932 = vmatpush1.msra.mxu0 %v2456
      %2933 = vmatprep.subr.mxu0 0.0
      %2934 = vmatpush1.msra.mxu0 %v2457
      %2935 = vmatprep.subr.mxu0 0.0
      %2936 = vmatpush1.msra.mxu0 %v2458
      %2937 = vmatprep.subr.mxu0 0.0
      %2938 = vmatpush1.msra.mxu0 %v2459
      %2939 = vmatprep.subr.mxu0 0.0
      %2940 = vmatpush1.msra.mxu0 %v2460
      %2941 = vmatprep.subr.mxu0 0.0
      %2942 = vmatpush1.msra.mxu0 %v2461
      %2943 = vmatprep.subr.mxu0 0.0
      %2944 = vmatpush1.msra.mxu0 %v2462
      %2945 = vmatprep.subr.mxu0 0.0
      %2946 = vmatpush1.msra.mxu0 %v2463
      %2947 = vmatprep.subr.mxu0 0.0
      %2948 = vmatpush1.msra.mxu0 0.0
      %2949 = vmatprep.subr.mxu0 0.0
      %2950 = vmatpush1.msra.mxu0 0.0
      %2951 = vmatprep.subr.mxu0 0.0
      %2952 = vmatpush1.msra.mxu0 0.0
      %2953 = vmatprep.subr.mxu0 0.0
      %2954 = vmatpush1.msra.mxu0 0.0
      %2955 = vmatprep.subr.mxu0 0.0
      %2956 = vmatpush1.msra.mxu0 0.0
      %2957 = vmatprep.subr.mxu0 0.0
      %2958 = vmatpush1.msra.mxu0 0.0
      %2959 = vmatprep.subr.mxu0 0.0
      %2960 = vmatpush1.msra.mxu0 0.0
      %2961 = vmatprep.subr.mxu0 0.0
      %2962 = vmatpush1.msra.mxu0 0.0
      %2963 = vmatprep.subr.mxu0 0.0
      %2964 = vmatpush1.msra.mxu0 0.0
      %2965 = vmatprep.subr.mxu0 0.0
      %2966 = vmatpush1.msra.mxu0 0.0
      %2967 = vmatprep.subr.mxu0 0.0
      %2968 = vmatpush1.msra.mxu0 0.0
      %2969 = vmatprep.subr.mxu0 0.0
      %2970 = vmatpush1.msra.mxu0 0.0
      %2971 = vmatprep.subr.mxu0 0.0
      %2972 = vmatpush1.msra.mxu0 0.0
      %2973 = vmatprep.subr.mxu0 0.0
      %2974 = vmatpush1.msra.mxu0 0.0
      %2975 = vmatprep.subr.mxu0 0.0
      %2976 = vmatpush1.msra.mxu0 0.0
      %2977 = vmatprep.subr.mxu0 0.0
      %2978 = vmatpush1.msra.mxu0 0.0
      %2979 = vmatprep.subr.mxu0 0.0
      %2980 = vmatpush1.msra.mxu0 0.0
      %2981 = vmatprep.subr.mxu0 0.0
      %2982 = vmatpush1.msra.mxu0 0.0
      %2983 = vmatprep.subr.mxu0 0.0
      %2984 = vmatpush1.msra.mxu0 0.0
      %2985 = vmatprep.subr.mxu0 0.0
      %2986 = vmatpush1.msra.mxu0 0.0
      %2987 = vmatprep.subr.mxu0 0.0
      %2988 = vmatpush1.msra.mxu0 0.0
      %2989 = vmatprep.subr.mxu0 0.0
      %2990 = vmatpush1.msra.mxu0 0.0
      %2991 = vmatprep.subr.mxu0 0.0
      %2992 = vmatpush1.msra.mxu0 0.0
      %2993 = vmatprep.subr.mxu0 0.0
      %2994 = vmatpush1.msra.mxu0 0.0
      %2995 = vmatprep.mubr.f32.mxu0 0.0
      %2996 = vmatmul.mubr.f32.gmra.mrb[0].mxu0 %v2929
      %v2997 = vpop.f32.mrb[0].mxu0
      %v2998 = vadd.f32 0.0, %v2997
      %v2999 = vpop.f32.mrb[0].mxu0
      %3000 = vdwg.mxu0
      %vm3001 = vcmp.eq.s32.totalorder %v2447, 3
      %vm3002 = vcmp.eq.s32.totalorder %v2448, 3
      %vm3003 = vcmp.eq.s32.totalorder %v2449, 3
      %vm3004 = vcmp.eq.s32.totalorder %v2450, 3
      %vm3005 = vcmp.eq.s32.totalorder %v2451, 3
      %vm3006 = vcmp.eq.s32.totalorder %v2452, 3
      %vm3007 = vcmp.eq.s32.totalorder %v2453, 3
      %vm3008 = vcmp.eq.s32.totalorder %v2454, 3
      %v3009 = vsel %vm3001, %v2415, 0.0
      %v3010 = vsel %vm3002, %v2416, 0.0
      %v3011 = vsel %vm3003, %v2417, 0.0
      %v3012 = vsel %vm3004, %v2418, 0.0
      %v3013 = vsel %vm3005, %v2419, 0.0
      %v3014 = vsel %vm3006, %v2420, 0.0
      %v3015 = vsel %vm3007, %v2421, 0.0
      %v3016 = vsel %vm3008, %v2422, 0.0
      %v3017 = vsel %vm2826, %v2423, 0.0
      %v3018 = vsel %vm2827, %v2424, 0.0
      %v3019 = vsel %vm2828, %v2425, 0.0
      %v3020 = vsel %vm2829, %v2426, 0.0
      %v3021 = vsel %vm2830, %v2427, 0.0
      %v3022 = vsel %vm2831, %v2428, 0.0
      %v3023 = vsel %vm2832, %v2429, 0.0
      %v3024 = vsel %vm2833, %v2430, 0.0
      %v3025 = vadd.f32 %v3009, %v3017
      %v3026 = vadd.f32 %v3010, %v3018
      %v3027 = vadd.f32 %v3011, %v3019
      %v3028 = vadd.f32 %v3012, %v3020
      %v3029 = vadd.f32 %v3013, %v3021
      %v3030 = vadd.f32 %v3014, %v3022
      %v3031 = vadd.f32 %v3015, %v3023
      %v3032 = vadd.f32 %v3016, %v3024
      %3033 = vmatprep.subr.mxu0 0.0
      %3034 = vmatpush1.msra.mxu0 %v3025
      %3035 = vmatprep.subr.mxu0 0.0
      %3036 = vmatpush1.msra.mxu0 %v3026
      %3037 = vmatprep.subr.mxu0 0.0
      %3038 = vmatpush1.msra.mxu0 %v3027
      %3039 = vmatprep.subr.mxu0 0.0
      %3040 = vmatpush1.msra.mxu0 %v3028
      %3041 = vmatprep.subr.mxu0 0.0
      %3042 = vmatpush1.msra.mxu0 %v3029
      %3043 = vmatprep.subr.mxu0 0.0
      %3044 = vmatpush1.msra.mxu0 %v3030
      %3045 = vmatprep.subr.mxu0 0.0
      %3046 = vmatpush1.msra.mxu0 %v3031
      %3047 = vmatprep.subr.mxu0 0.0
      %3048 = vmatpush1.msra.mxu0 %v3032
      %3049 = vmatprep.subr.mxu0 0.0
      %3050 = vmatpush1.msra.mxu0 0.0
      %3051 = vmatprep.subr.mxu0 0.0
      %3052 = vmatpush1.msra.mxu0 0.0
      %3053 = vmatprep.subr.mxu0 0.0
      %3054 = vmatpush1.msra.mxu0 0.0
      %3055 = vmatprep.subr.mxu0 0.0
      %3056 = vmatpush1.msra.mxu0 0.0
      %3057 = vmatprep.subr.mxu0 0.0
      %3058 = vmatpush1.msra.mxu0 0.0
      %3059 = vmatprep.subr.mxu0 0.0
      %3060 = vmatpush1.msra.mxu0 0.0
      %3061 = vmatprep.subr.mxu0 0.0
      %3062 = vmatpush1.msra.mxu0 0.0
      %3063 = vmatprep.subr.mxu0 0.0
      %3064 = vmatpush1.msra.mxu0 0.0
      %3065 = vmatprep.subr.mxu0 0.0
      %3066 = vmatpush1.msra.mxu0 0.0
      %3067 = vmatprep.subr.mxu0 0.0
      %3068 = vmatpush1.msra.mxu0 0.0
      %3069 = vmatprep.subr.mxu0 0.0
      %3070 = vmatpush1.msra.mxu0 0.0
      %3071 = vmatprep.subr.mxu0 0.0
      %3072 = vmatpush1.msra.mxu0 0.0
      %3073 = vmatprep.subr.mxu0 0.0
      %3074 = vmatpush1.msra.mxu0 0.0
      %3075 = vmatprep.subr.mxu0 0.0
      %3076 = vmatpush1.msra.mxu0 0.0
      %3077 = vmatprep.subr.mxu0 0.0
      %3078 = vmatpush1.msra.mxu0 0.0
      %3079 = vmatprep.subr.mxu0 0.0
      %3080 = vmatpush1.msra.mxu0 0.0
      %3081 = vmatprep.subr.mxu0 0.0
      %3082 = vmatpush1.msra.mxu0 0.0
      %3083 = vmatprep.subr.mxu0 0.0
      %3084 = vmatpush1.msra.mxu0 0.0
      %3085 = vmatprep.subr.mxu0 0.0
      %3086 = vmatpush1.msra.mxu0 0.0
      %3087 = vmatprep.subr.mxu0 0.0
      %3088 = vmatpush1.msra.mxu0 0.0
      %3089 = vmatprep.subr.mxu0 0.0
      %3090 = vmatpush1.msra.mxu0 0.0
      %3091 = vmatprep.subr.mxu0 0.0
      %3092 = vmatpush1.msra.mxu0 0.0
      %3093 = vmatprep.subr.mxu0 0.0
      %3094 = vmatpush1.msra.mxu0 0.0
      %3095 = vmatprep.subr.mxu0 0.0
      %3096 = vmatpush1.msra.mxu0 0.0
      %3097 = vmatprep.mubr.f32.mxu0 0.0
      %3098 = vmatmul.mubr.f32.gmra.mrb[0].mxu0 %v2506
      %v3099 = vpop.f32.mrb[0].mxu0
      %v3100 = vadd.f32 0.0, %v3099
      %v3101 = vpop.f32.mrb[0].mxu0
      %3102 = vdwg.mxu0
      %v3104 = vsel %vm2504, %v3100, 0
      %3106 = vmatprep.subr.mxu0 0.0
      %3107 = vmatpush1.msra.mxu0 %v2456
      %3108 = vmatprep.subr.mxu0 0.0
      %3109 = vmatpush1.msra.mxu0 %v2457
      %3110 = vmatprep.subr.mxu0 0.0
      %3111 = vmatpush1.msra.mxu0 %v2458
      %3112 = vmatprep.subr.mxu0 0.0
      %3113 = vmatpush1.msra.mxu0 %v2459
      %3114 = vmatprep.subr.mxu0 0.0
      %3115 = vmatpush1.msra.mxu0 %v2460
      %3116 = vmatprep.subr.mxu0 0.0
      %3117 = vmatpush1.msra.mxu0 %v2461
      %3118 = vmatprep.subr.mxu0 0.0
      %3119 = vmatpush1.msra.mxu0 %v2462
      %3120 = vmatprep.subr.mxu0 0.0
      %3121 = vmatpush1.msra.mxu0 %v2463
      %3122 = vmatprep.subr.mxu0 0.0
      %3123 = vmatpush1.msra.mxu0 0.0
      %3124 = vmatprep.subr.mxu0 0.0
      %3125 = vmatpush1.msra.mxu0 0.0
      %3126 = vmatprep.subr.mxu0 0.0
      %3127 = vmatpush1.msra.mxu0 0.0
      %3128 = vmatprep.subr.mxu0 0.0
      %3129 = vmatpush1.msra.mxu0 0.0
      %3130 = vmatprep.subr.mxu0 0.0
      %3131 = vmatpush1.msra.mxu0 0.0
      %3132 = vmatprep.subr.mxu0 0.0
      %3133 = vmatpush1.msra.mxu0 0.0
      %3134 = vmatprep.subr.mxu0 0.0
      %3135 = vmatpush1.msra.mxu0 0.0
      %3136 = vmatprep.subr.mxu0 0.0
      %3137 = vmatpush1.msra.mxu0 0.0
      %3138 = vmatprep.subr.mxu0 0.0
      %3139 = vmatpush1.msra.mxu0 0.0
      %3140 = vmatprep.subr.mxu0 0.0
      %3141 = vmatpush1.msra.mxu0 0.0
      %3142 = vmatprep.subr.mxu0 0.0
      %3143 = vmatpush1.msra.mxu0 0.0
      %3144 = vmatprep.subr.mxu0 0.0
      %3145 = vmatpush1.msra.mxu0 0.0
      %3146 = vmatprep.subr.mxu0 0.0
      %3147 = vmatpush1.msra.mxu0 0.0
      %3148 = vmatprep.subr.mxu0 0.0
      %3149 = vmatpush1.msra.mxu0 0.0
      %3150 = vmatprep.subr.mxu0 0.0
      %3151 = vmatpush1.msra.mxu0 0.0
      %3152 = vmatprep.subr.mxu0 0.0
      %3153 = vmatpush1.msra.mxu0 0.0
      %3154 = vmatprep.subr.mxu0 0.0
      %3155 = vmatpush1.msra.mxu0 0.0
      %3156 = vmatprep.subr.mxu0 0.0
      %3157 = vmatpush1.msra.mxu0 0.0
      %3158 = vmatprep.subr.mxu0 0.0
      %3159 = vmatpush1.msra.mxu0 0.0
      %3160 = vmatprep.subr.mxu0 0.0
      %3161 = vmatpush1.msra.mxu0 0.0
      %3162 = vmatprep.subr.mxu0 0.0
      %3163 = vmatpush1.msra.mxu0 0.0
      %3164 = vmatprep.subr.mxu0 0.0
      %3165 = vmatpush1.msra.mxu0 0.0
      %3166 = vmatprep.subr.mxu0 0.0
      %3167 = vmatpush1.msra.mxu0 0.0
      %3168 = vmatprep.subr.mxu0 0.0
      %3169 = vmatpush1.msra.mxu0 0.0
      %3170 = vmatprep.mubr.f32.mxu0 0.0
      %3171 = vmatmul.mubr.f32.gmra.mrb[0].mxu0 %v3104
      %v3172 = vpop.f32.mrb[0].mxu0
      %v3173 = vadd.f32 0.0, %v3172
      %v3174 = vpop.f32.mrb[0].mxu0
      %3175 = vdwg.mxu0
      %vm3176 = vcmp.eq.s32.totalorder %v2447, 4
      %vm3177 = vcmp.eq.s32.totalorder %v2448, 4
      %vm3178 = vcmp.eq.s32.totalorder %v2449, 4
      %vm3179 = vcmp.eq.s32.totalorder %v2450, 4
      %vm3180 = vcmp.eq.s32.totalorder %v2451, 4
      %vm3181 = vcmp.eq.s32.totalorder %v2452, 4
      %vm3182 = vcmp.eq.s32.totalorder %v2453, 4
      %vm3183 = vcmp.eq.s32.totalorder %v2454, 4
      %v3184 = vsel %vm3176, %v2415, 0.0
      %v3185 = vsel %vm3177, %v2416, 0.0
      %v3186 = vsel %vm3178, %v2417, 0.0
      %v3187 = vsel %vm3179, %v2418, 0.0
      %v3188 = vsel %vm3180, %v2419, 0.0
      %v3189 = vsel %vm3181, %v2420, 0.0
      %v3190 = vsel %vm3182, %v2421, 0.0
      %v3191 = vsel %vm3183, %v2422, 0.0
      %v3192 = vsel %vm3001, %v2423, 0.0
      %v3193 = vsel %vm3002, %v2424, 0.0
      %v3194 = vsel %vm3003, %v2425, 0.0
      %v3195 = vsel %vm3004, %v2426, 0.0
      %v3196 = vsel %vm3005, %v2427, 0.0
      %v3197 = vsel %vm3006, %v2428, 0.0
      %v3198 = vsel %vm3007, %v2429, 0.0
      %v3199 = vsel %vm3008, %v2430, 0.0
      %v3200 = vadd.f32 %v3184, %v3192
      %v3201 = vadd.f32 %v3185, %v3193
      %v3202 = vadd.f32 %v3186, %v3194
      %v3203 = vadd.f32 %v3187, %v3195
      %v3204 = vadd.f32 %v3188, %v3196
      %v3205 = vadd.f32 %v3189, %v3197
      %v3206 = vadd.f32 %v3190, %v3198
      %v3207 = vadd.f32 %v3191, %v3199
      %3208 = vmatprep.subr.mxu0 0.0
      %3209 = vmatpush1.msra.mxu0 %v3200
      %3210 = vmatprep.subr.mxu0 0.0
      %3211 = vmatpush1.msra.mxu0 %v3201
      %3212 = vmatprep.subr.mxu0 0.0
      %3213 = vmatpush1.msra.mxu0 %v3202
      %3214 = vmatprep.subr.mxu0 0.0
      %3215 = vmatpush1.msra.mxu0 %v3203
      %3216 = vmatprep.subr.mxu0 0.0
      %3217 = vmatpush1.msra.mxu0 %v3204
      %3218 = vmatprep.subr.mxu0 0.0
      %3219 = vmatpush1.msra.mxu0 %v3205
      %3220 = vmatprep.subr.mxu0 0.0
      %3221 = vmatpush1.msra.mxu0 %v3206
      %3222 = vmatprep.subr.mxu0 0.0
      %3223 = vmatpush1.msra.mxu0 %v3207
      %3224 = vmatprep.subr.mxu0 0.0
      %3225 = vmatpush1.msra.mxu0 0.0
      %3226 = vmatprep.subr.mxu0 0.0
      %3227 = vmatpush1.msra.mxu0 0.0
      %3228 = vmatprep.subr.mxu0 0.0
      %3229 = vmatpush1.msra.mxu0 0.0
      %3230 = vmatprep.subr.mxu0 0.0
      %3231 = vmatpush1.msra.mxu0 0.0
      %3232 = vmatprep.subr.mxu0 0.0
      %3233 = vmatpush1.msra.mxu0 0.0
      %3234 = vmatprep.subr.mxu0 0.0
      %3235 = vmatpush1.msra.mxu0 0.0
      %3236 = vmatprep.subr.mxu0 0.0
      %3237 = vmatpush1.msra.mxu0 0.0
      %3238 = vmatprep.subr.mxu0 0.0
      %3239 = vmatpush1.msra.mxu0 0.0
      %3240 = vmatprep.subr.mxu0 0.0
      %3241 = vmatpush1.msra.mxu0 0.0
      %3242 = vmatprep.subr.mxu0 0.0
      %3243 = vmatpush1.msra.mxu0 0.0
      %3244 = vmatprep.subr.mxu0 0.0
      %3245 = vmatpush1.msra.mxu0 0.0
      %3246 = vmatprep.subr.mxu0 0.0
      %3247 = vmatpush1.msra.mxu0 0.0
      %3248 = vmatprep.subr.mxu0 0.0
      %3249 = vmatpush1.msra.mxu0 0.0
      %3250 = vmatprep.subr.mxu0 0.0
      %3251 = vmatpush1.msra.mxu0 0.0
      %3252 = vmatprep.subr.mxu0 0.0
      %3253 = vmatpush1.msra.mxu0 0.0
      %3254 = vmatprep.subr.mxu0 0.0
      %3255 = vmatpush1.msra.mxu0 0.0
      %3256 = vmatprep.subr.mxu0 0.0
      %3257 = vmatpush1.msra.mxu0 0.0
      %3258 = vmatprep.subr.mxu0 0.0
      %3259 = vmatpush1.msra.mxu0 0.0
      %3260 = vmatprep.subr.mxu0 0.0
      %3261 = vmatpush1.msra.mxu0 0.0
      %3262 = vmatprep.subr.mxu0 0.0
      %3263 = vmatpush1.msra.mxu0 0.0
      %3264 = vmatprep.subr.mxu0 0.0
      %3265 = vmatpush1.msra.mxu0 0.0
      %3266 = vmatprep.subr.mxu0 0.0
      %3267 = vmatpush1.msra.mxu0 0.0
      %3268 = vmatprep.subr.mxu0 0.0
      %3269 = vmatpush1.msra.mxu0 0.0
      %3270 = vmatprep.subr.mxu0 0.0
      %3271 = vmatpush1.msra.mxu0 0.0
      %3272 = vmatprep.mubr.f32.mxu0 0.0
      %3273 = vmatmul.mubr.f32.gmra.mrb[0].mxu0 %v2506
      %v3274 = vpop.f32.mrb[0].mxu0
      %v3275 = vadd.f32 0.0, %v3274
      %v3276 = vpop.f32.mrb[0].mxu0
      %3277 = vdwg.mxu0
      %v3279 = vsel %vm2504, %v3275, 0
      %3281 = vmatprep.subr.mxu0 0.0
      %3282 = vmatpush1.msra.mxu0 %v2456
      %3283 = vmatprep.subr.mxu0 0.0
      %3284 = vmatpush1.msra.mxu0 %v2457
      %3285 = vmatprep.subr.mxu0 0.0
      %3286 = vmatpush1.msra.mxu0 %v2458
      %3287 = vmatprep.subr.mxu0 0.0
      %3288 = vmatpush1.msra.mxu0 %v2459
      %3289 = vmatprep.subr.mxu0 0.0
      %3290 = vmatpush1.msra.mxu0 %v2460
      %3291 = vmatprep.subr.mxu0 0.0
      %3292 = vmatpush1.msra.mxu0 %v2461
      %3293 = vmatprep.subr.mxu0 0.0
      %3294 = vmatpush1.msra.mxu0 %v2462
      %3295 = vmatprep.subr.mxu0 0.0
      %3296 = vmatpush1.msra.mxu0 %v2463
      %3297 = vmatprep.subr.mxu0 0.0
      %3298 = vmatpush1.msra.mxu0 0.0
      %3299 = vmatprep.subr.mxu0 0.0
      %3300 = vmatpush1.msra.mxu0 0.0
      %3301 = vmatprep.subr.mxu0 0.0
      %3302 = vmatpush1.msra.mxu0 0.0
      %3303 = vmatprep.subr.mxu0 0.0
      %3304 = vmatpush1.msra.mxu0 0.0
      %3305 = vmatprep.subr.mxu0 0.0
      %3306 = vmatpush1.msra.mxu0 0.0
      %3307 = vmatprep.subr.mxu0 0.0
      %3308 = vmatpush1.msra.mxu0 0.0
      %3309 = vmatprep.subr.mxu0 0.0
      %3310 = vmatpush1.msra.mxu0 0.0
      %3311 = vmatprep.subr.mxu0 0.0
      %3312 = vmatpush1.msra.mxu0 0.0
      %3313 = vmatprep.subr.mxu0 0.0
      %3314 = vmatpush1.msra.mxu0 0.0
      %3315 = vmatprep.subr.mxu0 0.0
      %3316 = vmatpush1.msra.mxu0 0.0
      %3317 = vmatprep.subr.mxu0 0.0
      %3318 = vmatpush1.msra.mxu0 0.0
      %3319 = vmatprep.subr.mxu0 0.0
      %3320 = vmatpush1.msra.mxu0 0.0
      %3321 = vmatprep.subr.mxu0 0.0
      %3322 = vmatpush1.msra.mxu0 0.0
      %3323 = vmatprep.subr.mxu0 0.0
      %3324 = vmatpush1.msra.mxu0 0.0
      %3325 = vmatprep.subr.mxu0 0.0
      %3326 = vmatpush1.msra.mxu0 0.0
      %3327 = vmatprep.subr.mxu0 0.0
      %3328 = vmatpush1.msra.mxu0 0.0
      %3329 = vmatprep.subr.mxu0 0.0
      %3330 = vmatpush1.msra.mxu0 0.0
      %3331 = vmatprep.subr.mxu0 0.0
      %3332 = vmatpush1.msra.mxu0 0.0
      %3333 = vmatprep.subr.mxu0 0.0
      %3334 = vmatpush1.msra.mxu0 0.0
      %3335 = vmatprep.subr.mxu0 0.0
      %3336 = vmatpush1.msra.mxu0 0.0
      %3337 = vmatprep.subr.mxu0 0.0
      %3338 = vmatpush1.msra.mxu0 0.0
      %3339 = vmatprep.subr.mxu0 0.0
      %3340 = vmatpush1.msra.mxu0 0.0
      %3341 = vmatprep.subr.mxu0 0.0
      %3342 = vmatpush1.msra.mxu0 0.0
      %3343 = vmatprep.subr.mxu0 0.0
      %3344 = vmatpush1.msra.mxu0 0.0
      %3345 = vmatprep.mubr.f32.mxu0 0.0
      %3346 = vmatmul.mubr.f32.gmra.mrb[0].mxu0 %v3279
      %v3347 = vpop.f32.mrb[0].mxu0
      %v3348 = vadd.f32 0.0, %v3347
      %v3349 = vpop.f32.mrb[0].mxu0
      %3350 = vdwg.mxu0
      %vm3351 = vcmp.eq.s32.totalorder %v2447, 5
      %vm3352 = vcmp.eq.s32.totalorder %v2448, 5
      %vm3353 = vcmp.eq.s32.totalorder %v2449, 5
      %vm3354 = vcmp.eq.s32.totalorder %v2450, 5
      %vm3355 = vcmp.eq.s32.totalorder %v2451, 5
      %vm3356 = vcmp.eq.s32.totalorder %v2452, 5
      %vm3357 = vcmp.eq.s32.totalorder %v2453, 5
      %vm3358 = vcmp.eq.s32.totalorder %v2454, 5
      %v3359 = vsel %vm3351, %v2415, 0.0
      %v3360 = vsel %vm3352, %v2416, 0.0
      %v3361 = vsel %vm3353, %v2417, 0.0
      %v3362 = vsel %vm3354, %v2418, 0.0
      %v3363 = vsel %vm3355, %v2419, 0.0
      %v3364 = vsel %vm3356, %v2420, 0.0
      %v3365 = vsel %vm3357, %v2421, 0.0
      %v3366 = vsel %vm3358, %v2422, 0.0
      %v3367 = vsel %vm3176, %v2423, 0.0
      %v3368 = vsel %vm3177, %v2424, 0.0
      %v3369 = vsel %vm3178, %v2425, 0.0
      %v3370 = vsel %vm3179, %v2426, 0.0
      %v3371 = vsel %vm3180, %v2427, 0.0
      %v3372 = vsel %vm3181, %v2428, 0.0
      %v3373 = vsel %vm3182, %v2429, 0.0
      %v3374 = vsel %vm3183, %v2430, 0.0
      %v3375 = vadd.f32 %v3359, %v3367
      %v3376 = vadd.f32 %v3360, %v3368
      %v3377 = vadd.f32 %v3361, %v3369
      %v3378 = vadd.f32 %v3362, %v3370
      %v3379 = vadd.f32 %v3363, %v3371
      %v3380 = vadd.f32 %v3364, %v3372
      %v3381 = vadd.f32 %v3365, %v3373
      %v3382 = vadd.f32 %v3366, %v3374
      %3383 = vmatprep.subr.mxu0 0.0
      %3384 = vmatpush1.msra.mxu0 %v3375
      %3385 = vmatprep.subr.mxu0 0.0
      %3386 = vmatpush1.msra.mxu0 %v3376
      %3387 = vmatprep.subr.mxu0 0.0
      %3388 = vmatpush1.msra.mxu0 %v3377
      %3389 = vmatprep.subr.mxu0 0.0
      %3390 = vmatpush1.msra.mxu0 %v3378
      %3391 = vmatprep.subr.mxu0 0.0
      %3392 = vmatpush1.msra.mxu0 %v3379
      %3393 = vmatprep.subr.mxu0 0.0
      %3394 = vmatpush1.msra.mxu0 %v3380
      %3395 = vmatprep.subr.mxu0 0.0
      %3396 = vmatpush1.msra.mxu0 %v3381
      %3397 = vmatprep.subr.mxu0 0.0
      %3398 = vmatpush1.msra.mxu0 %v3382
      %3399 = vmatprep.subr.mxu0 0.0
      %3400 = vmatpush1.msra.mxu0 0.0
      %3401 = vmatprep.subr.mxu0 0.0
      %3402 = vmatpush1.msra.mxu0 0.0
      %3403 = vmatprep.subr.mxu0 0.0
      %3404 = vmatpush1.msra.mxu0 0.0
      %3405 = vmatprep.subr.mxu0 0.0
      %3406 = vmatpush1.msra.mxu0 0.0
      %3407 = vmatprep.subr.mxu0 0.0
      %3408 = vmatpush1.msra.mxu0 0.0
      %3409 = vmatprep.subr.mxu0 0.0
      %3410 = vmatpush1.msra.mxu0 0.0
      %3411 = vmatprep.subr.mxu0 0.0
      %3412 = vmatpush1.msra.mxu0 0.0
      %3413 = vmatprep.subr.mxu0 0.0
      %3414 = vmatpush1.msra.mxu0 0.0
      %3415 = vmatprep.subr.mxu0 0.0
      %3416 = vmatpush1.msra.mxu0 0.0
      %3417 = vmatprep.subr.mxu0 0.0
      %3418 = vmatpush1.msra.mxu0 0.0
      %3419 = vmatprep.subr.mxu0 0.0
      %3420 = vmatpush1.msra.mxu0 0.0
      %3421 = vmatprep.subr.mxu0 0.0
      %3422 = vmatpush1.msra.mxu0 0.0
      %3423 = vmatprep.subr.mxu0 0.0
      %3424 = vmatpush1.msra.mxu0 0.0
      %3425 = vmatprep.subr.mxu0 0.0
      %3426 = vmatpush1.msra.mxu0 0.0
      %3427 = vmatprep.subr.mxu0 0.0
      %3428 = vmatpush1.msra.mxu0 0.0
      %3429 = vmatprep.subr.mxu0 0.0
      %3430 = vmatpush1.msra.mxu0 0.0
      %3431 = vmatprep.subr.mxu0 0.0
      %3432 = vmatpush1.msra.mxu0 0.0
      %3433 = vmatprep.subr.mxu0 0.0
      %3434 = vmatpush1.msra.mxu0 0.0
      %3435 = vmatprep.subr.mxu0 0.0
      %3436 = vmatpush1.msra.mxu0 0.0
      %3437 = vmatprep.subr.mxu0 0.0
      %3438 = vmatpush1.msra.mxu0 0.0
      %3439 = vmatprep.subr.mxu0 0.0
      %3440 = vmatpush1.msra.mxu0 0.0
      %3441 = vmatprep.subr.mxu0 0.0
      %3442 = vmatpush1.msra.mxu0 0.0
      %3443 = vmatprep.subr.mxu0 0.0
      %3444 = vmatpush1.msra.mxu0 0.0
      %3445 = vmatprep.subr.mxu0 0.0
      %3446 = vmatpush1.msra.mxu0 0.0
      %3447 = vmatprep.mubr.f32.mxu0 0.0
      %3448 = vmatmul.mubr.f32.gmra.mrb[0].mxu0 %v2506
      %v3449 = vpop.f32.mrb[0].mxu0
      %v3450 = vadd.f32 0.0, %v3449
      %v3451 = vpop.f32.mrb[0].mxu0
      %3452 = vdwg.mxu0
      %v3454 = vsel %vm2504, %v3450, 0
      %3456 = vmatprep.subr.mxu0 0.0
      %3457 = vmatpush1.msra.mxu0 %v2456
      %3458 = vmatprep.subr.mxu0 0.0
      %3459 = vmatpush1.msra.mxu0 %v2457
      %3460 = vmatprep.subr.mxu0 0.0
      %3461 = vmatpush1.msra.mxu0 %v2458
      %3462 = vmatprep.subr.mxu0 0.0
      %3463 = vmatpush1.msra.mxu0 %v2459
      %3464 = vmatprep.subr.mxu0 0.0
      %3465 = vmatpush1.msra.mxu0 %v2460
      %3466 = vmatprep.subr.mxu0 0.0
      %3467 = vmatpush1.msra.mxu0 %v2461
      %3468 = vmatprep.subr.mxu0 0.0
      %3469 = vmatpush1.msra.mxu0 %v2462
      %3470 = vmatprep.subr.mxu0 0.0
      %3471 = vmatpush1.msra.mxu0 %v2463
      %3472 = vmatprep.subr.mxu0 0.0
      %3473 = vmatpush1.msra.mxu0 0.0
      %3474 = vmatprep.subr.mxu0 0.0
      %3475 = vmatpush1.msra.mxu0 0.0
      %3476 = vmatprep.subr.mxu0 0.0
      %3477 = vmatpush1.msra.mxu0 0.0
      %3478 = vmatprep.subr.mxu0 0.0
      %3479 = vmatpush1.msra.mxu0 0.0
      %3480 = vmatprep.subr.mxu0 0.0
      %3481 = vmatpush1.msra.mxu0 0.0
      %3482 = vmatprep.subr.mxu0 0.0
      %3483 = vmatpush1.msra.mxu0 0.0
      %3484 = vmatprep.subr.mxu0 0.0
      %3485 = vmatpush1.msra.mxu0 0.0
      %3486 = vmatprep.subr.mxu0 0.0
      %3487 = vmatpush1.msra.mxu0 0.0
      %3488 = vmatprep.subr.mxu0 0.0
      %3489 = vmatpush1.msra.mxu0 0.0
      %3490 = vmatprep.subr.mxu0 0.0
      %3491 = vmatpush1.msra.mxu0 0.0
      %3492 = vmatprep.subr.mxu0 0.0
      %3493 = vmatpush1.msra.mxu0 0.0
      %3494 = vmatprep.subr.mxu0 0.0
      %3495 = vmatpush1.msra.mxu0 0.0
      %3496 = vmatprep.subr.mxu0 0.0
      %3497 = vmatpush1.msra.mxu0 0.0
      %3498 = vmatprep.subr.mxu0 0.0
      %3499 = vmatpush1.msra.mxu0 0.0
      %3500 = vmatprep.subr.mxu0 0.0
      %3501 = vmatpush1.msra.mxu0 0.0
      %3502 = vmatprep.subr.mxu0 0.0
      %3503 = vmatpush1.msra.mxu0 0.0
      %3504 = vmatprep.subr.mxu0 0.0
      %3505 = vmatpush1.msra.mxu0 0.0
      %3506 = vmatprep.subr.mxu0 0.0
      %3507 = vmatpush1.msra.mxu0 0.0
      %3508 = vmatprep.subr.mxu0 0.0
      %3509 = vmatpush1.msra.mxu0 0.0
      %3510 = vmatprep.subr.mxu0 0.0
      %3511 = vmatpush1.msra.mxu0 0.0
      %3512 = vmatprep.subr.mxu0 0.0
      %3513 = vmatpush1.msra.mxu0 0.0
      %3514 = vmatprep.subr.mxu0 0.0
      %3515 = vmatpush1.msra.mxu0 0.0
      %3516 = vmatprep.subr.mxu0 0.0
      %3517 = vmatpush1.msra.mxu0 0.0
      %3518 = vmatprep.subr.mxu0 0.0
      %3519 = vmatpush1.msra.mxu0 0.0
      %3520 = vmatprep.mubr.f32.mxu0 0.0
      %3521 = vmatmul.mubr.f32.gmra.mrb[0].mxu0 %v3454
      %v3522 = vpop.f32.mrb[0].mxu0
      %v3523 = vadd.f32 0.0, %v3522
      %v3524 = vpop.f32.mrb[0].mxu0
      %3525 = vdwg.mxu0
      %vm3526 = vcmp.eq.s32.totalorder %v2447, 6
      %vm3527 = vcmp.eq.s32.totalorder %v2448, 6
      %vm3528 = vcmp.eq.s32.totalorder %v2449, 6
      %vm3529 = vcmp.eq.s32.totalorder %v2450, 6
      %vm3530 = vcmp.eq.s32.totalorder %v2451, 6
      %vm3531 = vcmp.eq.s32.totalorder %v2452, 6
      %vm3532 = vcmp.eq.s32.totalorder %v2453, 6
      %vm3533 = vcmp.eq.s32.totalorder %v2454, 6
      %v3534 = vsel %vm3526, %v2415, 0.0
      %v3535 = vsel %vm3527, %v2416, 0.0
      %v3536 = vsel %vm3528, %v2417, 0.0
      %v3537 = vsel %vm3529, %v2418, 0.0
      %v3538 = vsel %vm3530, %v2419, 0.0
      %v3539 = vsel %vm3531, %v2420, 0.0
      %v3540 = vsel %vm3532, %v2421, 0.0
      %v3541 = vsel %vm3533, %v2422, 0.0
      %v3542 = vsel %vm3351, %v2423, 0.0
      %v3543 = vsel %vm3352, %v2424, 0.0
      %v3544 = vsel %vm3353, %v2425, 0.0
      %v3545 = vsel %vm3354, %v2426, 0.0
      %v3546 = vsel %vm3355, %v2427, 0.0
      %v3547 = vsel %vm3356, %v2428, 0.0
      %v3548 = vsel %vm3357, %v2429, 0.0
      %v3549 = vsel %vm3358, %v2430, 0.0
      %v3550 = vadd.f32 %v3534, %v3542
      %v3551 = vadd.f32 %v3535, %v3543
      %v3552 = vadd.f32 %v3536, %v3544
      %v3553 = vadd.f32 %v3537, %v3545
      %v3554 = vadd.f32 %v3538, %v3546
      %v3555 = vadd.f32 %v3539, %v3547
      %v3556 = vadd.f32 %v3540, %v3548
      %v3557 = vadd.f32 %v3541, %v3549
      %3558 = vmatprep.subr.mxu0 0.0
      %3559 = vmatpush1.msra.mxu0 %v3550
      %3560 = vmatprep.subr.mxu0 0.0
      %3561 = vmatpush1.msra.mxu0 %v3551
      %3562 = vmatprep.subr.mxu0 0.0
      %3563 = vmatpush1.msra.mxu0 %v3552
      %3564 = vmatprep.subr.mxu0 0.0
      %3565 = vmatpush1.msra.mxu0 %v3553
      %3566 = vmatprep.subr.mxu0 0.0
      %3567 = vmatpush1.msra.mxu0 %v3554
      %3568 = vmatprep.subr.mxu0 0.0
      %3569 = vmatpush1.msra.mxu0 %v3555
      %3570 = vmatprep.subr.mxu0 0.0
      %3571 = vmatpush1.msra.mxu0 %v3556
      %3572 = vmatprep.subr.mxu0 0.0
      %3573 = vmatpush1.msra.mxu0 %v3557
      %3574 = vmatprep.subr.mxu0 0.0
      %3575 = vmatpush1.msra.mxu0 0.0
      %3576 = vmatprep.subr.mxu0 0.0
      %3577 = vmatpush1.msra.mxu0 0.0
      %3578 = vmatprep.subr.mxu0 0.0
      %3579 = vmatpush1.msra.mxu0 0.0
      %3580 = vmatprep.subr.mxu0 0.0
      %3581 = vmatpush1.msra.mxu0 0.0
      %3582 = vmatprep.subr.mxu0 0.0
      %3583 = vmatpush1.msra.mxu0 0.0
      %3584 = vmatprep.subr.mxu0 0.0
      %3585 = vmatpush1.msra.mxu0 0.0
      %3586 = vmatprep.subr.mxu0 0.0
      %3587 = vmatpush1.msra.mxu0 0.0
      %3588 = vmatprep.subr.mxu0 0.0
      %3589 = vmatpush1.msra.mxu0 0.0
      %3590 = vmatprep.subr.mxu0 0.0
      %3591 = vmatpush1.msra.mxu0 0.0
      %3592 = vmatprep.subr.mxu0 0.0
      %3593 = vmatpush1.msra.mxu0 0.0
      %3594 = vmatprep.subr.mxu0 0.0
      %3595 = vmatpush1.msra.mxu0 0.0
      %3596 = vmatprep.subr.mxu0 0.0
      %3597 = vmatpush1.msra.mxu0 0.0
      %3598 = vmatprep.subr.mxu0 0.0
      %3599 = vmatpush1.msra.mxu0 0.0
      %3600 = vmatprep.subr.mxu0 0.0
      %3601 = vmatpush1.msra.mxu0 0.0
      %3602 = vmatprep.subr.mxu0 0.0
      %3603 = vmatpush1.msra.mxu0 0.0
      %3604 = vmatprep.subr.mxu0 0.0
      %3605 = vmatpush1.msra.mxu0 0.0
      %3606 = vmatprep.subr.mxu0 0.0
      %3607 = vmatpush1.msra.mxu0 0.0
      %3608 = vmatprep.subr.mxu0 0.0
      %3609 = vmatpush1.msra.mxu0 0.0
      %3610 = vmatprep.subr.mxu0 0.0
      %3611 = vmatpush1.msra.mxu0 0.0
      %3612 = vmatprep.subr.mxu0 0.0
      %3613 = vmatpush1.msra.mxu0 0.0
      %3614 = vmatprep.subr.mxu0 0.0
      %3615 = vmatpush1.msra.mxu0 0.0
      %3616 = vmatprep.subr.mxu0 0.0
      %3617 = vmatpush1.msra.mxu0 0.0
      %3618 = vmatprep.subr.mxu0 0.0
      %3619 = vmatpush1.msra.mxu0 0.0
      %3620 = vmatprep.subr.mxu0 0.0
      %3621 = vmatpush1.msra.mxu0 0.0
      %3622 = vmatprep.mubr.f32.mxu0 0.0
      %3623 = vmatmul.mubr.f32.gmra.mrb[0].mxu0 %v2506
      %v3624 = vpop.f32.mrb[0].mxu0
      %v3625 = vadd.f32 0.0, %v3624
      %v3626 = vpop.f32.mrb[0].mxu0
      %3627 = vdwg.mxu0
      %v3629 = vsel %vm2504, %v3625, 0
      %3631 = vmatprep.subr.mxu0 0.0
      %3632 = vmatpush1.msra.mxu0 %v2456
      %3633 = vmatprep.subr.mxu0 0.0
      %3634 = vmatpush1.msra.mxu0 %v2457
      %3635 = vmatprep.subr.mxu0 0.0
      %3636 = vmatpush1.msra.mxu0 %v2458
      %3637 = vmatprep.subr.mxu0 0.0
      %3638 = vmatpush1.msra.mxu0 %v2459
      %3639 = vmatprep.subr.mxu0 0.0
      %3640 = vmatpush1.msra.mxu0 %v2460
      %3641 = vmatprep.subr.mxu0 0.0
      %3642 = vmatpush1.msra.mxu0 %v2461
      %3643 = vmatprep.subr.mxu0 0.0
      %3644 = vmatpush1.msra.mxu0 %v2462
      %3645 = vmatprep.subr.mxu0 0.0
      %3646 = vmatpush1.msra.mxu0 %v2463
      %3647 = vmatprep.subr.mxu0 0.0
      %3648 = vmatpush1.msra.mxu0 0.0
      %3649 = vmatprep.subr.mxu0 0.0
      %3650 = vmatpush1.msra.mxu0 0.0
      %3651 = vmatprep.subr.mxu0 0.0
      %3652 = vmatpush1.msra.mxu0 0.0
      %3653 = vmatprep.subr.mxu0 0.0
      %3654 = vmatpush1.msra.mxu0 0.0
      %3655 = vmatprep.subr.mxu0 0.0
      %3656 = vmatpush1.msra.mxu0 0.0
      %3657 = vmatprep.subr.mxu0 0.0
      %3658 = vmatpush1.msra.mxu0 0.0
      %3659 = vmatprep.subr.mxu0 0.0
      %3660 = vmatpush1.msra.mxu0 0.0
      %3661 = vmatprep.subr.mxu0 0.0
      %3662 = vmatpush1.msra.mxu0 0.0
      %3663 = vmatprep.subr.mxu0 0.0
      %3664 = vmatpush1.msra.mxu0 0.0
      %3665 = vmatprep.subr.mxu0 0.0
      %3666 = vmatpush1.msra.mxu0 0.0
      %3667 = vmatprep.subr.mxu0 0.0
      %3668 = vmatpush1.msra.mxu0 0.0
      %3669 = vmatprep.subr.mxu0 0.0
      %3670 = vmatpush1.msra.mxu0 0.0
      %3671 = vmatprep.subr.mxu0 0.0
      %3672 = vmatpush1.msra.mxu0 0.0
      %3673 = vmatprep.subr.mxu0 0.0
      %3674 = vmatpush1.msra.mxu0 0.0
      %3675 = vmatprep.subr.mxu0 0.0
      %3676 = vmatpush1.msra.mxu0 0.0
      %3677 = vmatprep.subr.mxu0 0.0
      %3678 = vmatpush1.msra.mxu0 0.0
      %3679 = vmatprep.subr.mxu0 0.0
      %3680 = vmatpush1.msra.mxu0 0.0
      %3681 = vmatprep.subr.mxu0 0.0
      %3682 = vmatpush1.msra.mxu0 0.0
      %3683 = vmatprep.subr.mxu0 0.0
      %3684 = vmatpush1.msra.mxu0 0.0
      %3685 = vmatprep.subr.mxu0 0.0
      %3686 = vmatpush1.msra.mxu0 0.0
      %3687 = vmatprep.subr.mxu0 0.0
      %3688 = vmatpush1.msra.mxu0 0.0
      %3689 = vmatprep.subr.mxu0 0.0
      %3690 = vmatpush1.msra.mxu0 0.0
      %3691 = vmatprep.subr.mxu0 0.0
      %3692 = vmatpush1.msra.mxu0 0.0
      %3693 = vmatprep.subr.mxu0 0.0
      %3694 = vmatpush1.msra.mxu0 0.0
      %3695 = vmatprep.mubr.f32.mxu0 0.0
      %3696 = vmatmul.mubr.f32.gmra.mrb[0].mxu0 %v3629
      %v3697 = vpop.f32.mrb[0].mxu0
      %v3698 = vadd.f32 0.0, %v3697
      %v3699 = vpop.f32.mrb[0].mxu0
      %3700 = vdwg.mxu0
      %vm3701 = vcmp.eq.s32.totalorder %v2447, 7
      %vm3702 = vcmp.eq.s32.totalorder %v2448, 7
      %vm3703 = vcmp.eq.s32.totalorder %v2449, 7
      %vm3704 = vcmp.eq.s32.totalorder %v2450, 7
      %vm3705 = vcmp.eq.s32.totalorder %v2451, 7
      %vm3706 = vcmp.eq.s32.totalorder %v2452, 7
      %vm3707 = vcmp.eq.s32.totalorder %v2453, 7
      %vm3708 = vcmp.eq.s32.totalorder %v2454, 7
      %v3709 = vsel %vm3701, %v2415, 0.0
      %v3710 = vsel %vm3702, %v2416, 0.0
      %v3711 = vsel %vm3703, %v2417, 0.0
      %v3712 = vsel %vm3704, %v2418, 0.0
      %v3713 = vsel %vm3705, %v2419, 0.0
      %v3714 = vsel %vm3706, %v2420, 0.0
      %v3715 = vsel %vm3707, %v2421, 0.0
      %v3716 = vsel %vm3708, %v2422, 0.0
      %v3717 = vsel %vm3526, %v2423, 0.0
      %v3718 = vsel %vm3527, %v2424, 0.0
      %v3719 = vsel %vm3528, %v2425, 0.0
      %v3720 = vsel %vm3529, %v2426, 0.0
      %v3721 = vsel %vm3530, %v2427, 0.0
      %v3722 = vsel %vm3531, %v2428, 0.0
      %v3723 = vsel %vm3532, %v2429, 0.0
      %v3724 = vsel %vm3533, %v2430, 0.0
      %v3725 = vadd.f32 %v3709, %v3717
      %v3726 = vadd.f32 %v3710, %v3718
      %v3727 = vadd.f32 %v3711, %v3719
      %v3728 = vadd.f32 %v3712, %v3720
      %v3729 = vadd.f32 %v3713, %v3721
      %v3730 = vadd.f32 %v3714, %v3722
      %v3731 = vadd.f32 %v3715, %v3723
      %v3732 = vadd.f32 %v3716, %v3724
      %3733 = vmatprep.subr.mxu0 0.0
      %3734 = vmatpush1.msra.mxu0 %v3725
      %3735 = vmatprep.subr.mxu0 0.0
      %3736 = vmatpush1.msra.mxu0 %v3726
      %3737 = vmatprep.subr.mxu0 0.0
      %3738 = vmatpush1.msra.mxu0 %v3727
      %3739 = vmatprep.subr.mxu0 0.0
      %3740 = vmatpush1.msra.mxu0 %v3728
      %3741 = vmatprep.subr.mxu0 0.0
      %3742 = vmatpush1.msra.mxu0 %v3729
      %3743 = vmatprep.subr.mxu0 0.0
      %3744 = vmatpush1.msra.mxu0 %v3730
      %3745 = vmatprep.subr.mxu0 0.0
      %3746 = vmatpush1.msra.mxu0 %v3731
      %3747 = vmatprep.subr.mxu0 0.0
      %3748 = vmatpush1.msra.mxu0 %v3732
      %3749 = vmatprep.subr.mxu0 0.0
      %3750 = vmatpush1.msra.mxu0 0.0
      %3751 = vmatprep.subr.mxu0 0.0
      %3752 = vmatpush1.msra.mxu0 0.0
      %3753 = vmatprep.subr.mxu0 0.0
      %3754 = vmatpush1.msra.mxu0 0.0
      %3755 = vmatprep.subr.mxu0 0.0
      %3756 = vmatpush1.msra.mxu0 0.0
      %3757 = vmatprep.subr.mxu0 0.0
      %3758 = vmatpush1.msra.mxu0 0.0
      %3759 = vmatprep.subr.mxu0 0.0
      %3760 = vmatpush1.msra.mxu0 0.0
      %3761 = vmatprep.subr.mxu0 0.0
      %3762 = vmatpush1.msra.mxu0 0.0
      %3763 = vmatprep.subr.mxu0 0.0
      %3764 = vmatpush1.msra.mxu0 0.0
      %3765 = vmatprep.subr.mxu0 0.0
      %3766 = vmatpush1.msra.mxu0 0.0
      %3767 = vmatprep.subr.mxu0 0.0
      %3768 = vmatpush1.msra.mxu0 0.0
      %3769 = vmatprep.subr.mxu0 0.0
      %3770 = vmatpush1.msra.mxu0 0.0
      %3771 = vmatprep.subr.mxu0 0.0
      %3772 = vmatpush1.msra.mxu0 0.0
      %3773 = vmatprep.subr.mxu0 0.0
      %3774 = vmatpush1.msra.mxu0 0.0
      %3775 = vmatprep.subr.mxu0 0.0
      %3776 = vmatpush1.msra.mxu0 0.0
      %3777 = vmatprep.subr.mxu0 0.0
      %3778 = vmatpush1.msra.mxu0 0.0
      %3779 = vmatprep.subr.mxu0 0.0
      %3780 = vmatpush1.msra.mxu0 0.0
      %3781 = vmatprep.subr.mxu0 0.0
      %3782 = vmatpush1.msra.mxu0 0.0
      %3783 = vmatprep.subr.mxu0 0.0
      %3784 = vmatpush1.msra.mxu0 0.0
      %3785 = vmatprep.subr.mxu0 0.0
      %3786 = vmatpush1.msra.mxu0 0.0
      %3787 = vmatprep.subr.mxu0 0.0
      %3788 = vmatpush1.msra.mxu0 0.0
      %3789 = vmatprep.subr.mxu0 0.0
      %3790 = vmatpush1.msra.mxu0 0.0
      %3791 = vmatprep.subr.mxu0 0.0
      %3792 = vmatpush1.msra.mxu0 0.0
      %3793 = vmatprep.subr.mxu0 0.0
      %3794 = vmatpush1.msra.mxu0 0.0
      %3795 = vmatprep.subr.mxu0 0.0
      %3796 = vmatpush1.msra.mxu0 0.0
      %3797 = vmatprep.mubr.f32.mxu0 0.0
      %3798 = vmatmul.mubr.f32.gmra.mrb[0].mxu0 %v2506
      %v3799 = vpop.f32.mrb[0].mxu0
      %v3800 = vadd.f32 0.0, %v3799
      %v3801 = vpop.f32.mrb[0].mxu0
      %3802 = vdwg.mxu0
      %v3804 = vsel %vm2504, %v3800, 0
      %3806 = vmatprep.subr.mxu0 0.0
      %3807 = vmatpush1.msra.mxu0 %v2456
      %3808 = vmatprep.subr.mxu0 0.0
      %3809 = vmatpush1.msra.mxu0 %v2457
      %3810 = vmatprep.subr.mxu0 0.0
      %3811 = vmatpush1.msra.mxu0 %v2458
      %3812 = vmatprep.subr.mxu0 0.0
      %3813 = vmatpush1.msra.mxu0 %v2459
      %3814 = vmatprep.subr.mxu0 0.0
      %3815 = vmatpush1.msra.mxu0 %v2460
      %3816 = vmatprep.subr.mxu0 0.0
      %3817 = vmatpush1.msra.mxu0 %v2461
      %3818 = vmatprep.subr.mxu0 0.0
      %3819 = vmatpush1.msra.mxu0 %v2462
      %3820 = vmatprep.subr.mxu0 0.0
      %3821 = vmatpush1.msra.mxu0 %v2463
      %3822 = vmatprep.subr.mxu0 0.0
      %3823 = vmatpush1.msra.mxu0 0.0
      %3824 = vmatprep.subr.mxu0 0.0
      %3825 = vmatpush1.msra.mxu0 0.0
      %3826 = vmatprep.subr.mxu0 0.0
      %3827 = vmatpush1.msra.mxu0 0.0
      %3828 = vmatprep.subr.mxu0 0.0
      %3829 = vmatpush1.msra.mxu0 0.0
      %3830 = vmatprep.subr.mxu0 0.0
      %3831 = vmatpush1.msra.mxu0 0.0
      %3832 = vmatprep.subr.mxu0 0.0
      %3833 = vmatpush1.msra.mxu0 0.0
      %3834 = vmatprep.subr.mxu0 0.0
      %3835 = vmatpush1.msra.mxu0 0.0
      %3836 = vmatprep.subr.mxu0 0.0
      %3837 = vmatpush1.msra.mxu0 0.0
      %3838 = vmatprep.subr.mxu0 0.0
      %3839 = vmatpush1.msra.mxu0 0.0
      %3840 = vmatprep.subr.mxu0 0.0
      %3841 = vmatpush1.msra.mxu0 0.0
      %3842 = vmatprep.subr.mxu0 0.0
      %3843 = vmatpush1.msra.mxu0 0.0
      %3844 = vmatprep.subr.mxu0 0.0
      %3845 = vmatpush1.msra.mxu0 0.0
      %3846 = vmatprep.subr.mxu0 0.0
      %3847 = vmatpush1.msra.mxu0 0.0
      %3848 = vmatprep.subr.mxu0 0.0
      %3849 = vmatpush1.msra.mxu0 0.0
      %3850 = vmatprep.subr.mxu0 0.0
      %3851 = vmatpush1.msra.mxu0 0.0
      %3852 = vmatprep.subr.mxu0 0.0
      %3853 = vmatpush1.msra.mxu0 0.0
      %3854 = vmatprep.subr.mxu0 0.0
      %3855 = vmatpush1.msra.mxu0 0.0
      %3856 = vmatprep.subr.mxu0 0.0
      %3857 = vmatpush1.msra.mxu0 0.0
      %3858 = vmatprep.subr.mxu0 0.0
      %3859 = vmatpush1.msra.mxu0 0.0
      %3860 = vmatprep.subr.mxu0 0.0
      %3861 = vmatpush1.msra.mxu0 0.0
      %3862 = vmatprep.subr.mxu0 0.0
      %3863 = vmatpush1.msra.mxu0 0.0
      %3864 = vmatprep.subr.mxu0 0.0
      %3865 = vmatpush1.msra.mxu0 0.0
      %3866 = vmatprep.subr.mxu0 0.0
      %3867 = vmatpush1.msra.mxu0 0.0
      %3868 = vmatprep.subr.mxu0 0.0
      %3869 = vmatpush1.msra.mxu0 0.0
      %3870 = vmatprep.mubr.f32.mxu0 0.0
      %3871 = vmatmul.mubr.f32.gmra.mrb[0].mxu0 %v3804
      %v3872 = vpop.f32.mrb[0].mxu0
      %v3873 = vadd.f32 0.0, %v3872
      %v3874 = vpop.f32.mrb[0].mxu0
      %3875 = vdwg.mxu0
      %v3876 = vsel %vm2472, %v2415, 0.0
      %v3877 = vsel %vm2473, %v2416, 0.0
      %v3878 = vsel %vm2474, %v2417, 0.0
      %v3879 = vsel %vm2475, %v2418, 0.0
      %v3880 = vsel %vm2476, %v2419, 0.0
      %v3881 = vsel %vm2477, %v2420, 0.0
      %v3882 = vsel %vm2478, %v2421, 0.0
      %v3883 = vsel %vm2479, %v2422, 0.0
      %v3884 = vsel %vm3701, %v2423, 0.0
      %v3885 = vsel %vm3702, %v2424, 0.0
      %v3886 = vsel %vm3703, %v2425, 0.0
      %v3887 = vsel %vm3704, %v2426, 0.0
      %v3888 = vsel %vm3705, %v2427, 0.0
      %v3889 = vsel %vm3706, %v2428, 0.0
      %v3890 = vsel %vm3707, %v2429, 0.0
      %v3891 = vsel %vm3708, %v2430, 0.0
      %v3892 = vadd.f32 %v3876, %v3884
      %v3893 = vadd.f32 %v3877, %v3885
      %v3894 = vadd.f32 %v3878, %v3886
      %v3895 = vadd.f32 %v3879, %v3887
      %v3896 = vadd.f32 %v3880, %v3888
      %v3897 = vadd.f32 %v3881, %v3889
      %v3898 = vadd.f32 %v3882, %v3890
      %v3899 = vadd.f32 %v3883, %v3891
      %3900 = vmatprep.subr.mxu0 0.0
      %3901 = vmatpush1.msra.mxu0 %v3892
      %3902 = vmatprep.subr.mxu0 0.0
      %3903 = vmatpush1.msra.mxu0 %v3893
      %3904 = vmatprep.subr.mxu0 0.0
      %3905 = vmatpush1.msra.mxu0 %v3894
      %3906 = vmatprep.subr.mxu0 0.0
      %3907 = vmatpush1.msra.mxu0 %v3895
      %3908 = vmatprep.subr.mxu0 0.0
      %3909 = vmatpush1.msra.mxu0 %v3896
      %3910 = vmatprep.subr.mxu0 0.0
      %3911 = vmatpush1.msra.mxu0 %v3897
      %3912 = vmatprep.subr.mxu0 0.0
      %3913 = vmatpush1.msra.mxu0 %v3898
      %3914 = vmatprep.subr.mxu0 0.0
      %3915 = vmatpush1.msra.mxu0 %v3899
      %3916 = vmatprep.subr.mxu0 0.0
      %3917 = vmatpush1.msra.mxu0 0.0
      %3918 = vmatprep.subr.mxu0 0.0
      %3919 = vmatpush1.msra.mxu0 0.0
      %3920 = vmatprep.subr.mxu0 0.0
      %3921 = vmatpush1.msra.mxu0 0.0
      %3922 = vmatprep.subr.mxu0 0.0
      %3923 = vmatpush1.msra.mxu0 0.0
      %3924 = vmatprep.subr.mxu0 0.0
      %3925 = vmatpush1.msra.mxu0 0.0
      %3926 = vmatprep.subr.mxu0 0.0
      %3927 = vmatpush1.msra.mxu0 0.0
      %3928 = vmatprep.subr.mxu0 0.0
      %3929 = vmatpush1.msra.mxu0 0.0
      %3930 = vmatprep.subr.mxu0 0.0
      %3931 = vmatpush1.msra.mxu0 0.0
      %3932 = vmatprep.subr.mxu0 0.0
      %3933 = vmatpush1.msra.mxu0 0.0
      %3934 = vmatprep.subr.mxu0 0.0
      %3935 = vmatpush1.msra.mxu0 0.0
      %3936 = vmatprep.subr.mxu0 0.0
      %3937 = vmatpush1.msra.mxu0 0.0
      %3938 = vmatprep.subr.mxu0 0.0
      %3939 = vmatpush1.msra.mxu0 0.0
      %3940 = vmatprep.subr.mxu0 0.0
      %3941 = vmatpush1.msra.mxu0 0.0
      %3942 = vmatprep.subr.mxu0 0.0
      %3943 = vmatpush1.msra.mxu0 0.0
      %3944 = vmatprep.subr.mxu0 0.0
      %3945 = vmatpush1.msra.mxu0 0.0
      %3946 = vmatprep.subr.mxu0 0.0
      %3947 = vmatpush1.msra.mxu0 0.0
      %3948 = vmatprep.subr.mxu0 0.0
      %3949 = vmatpush1.msra.mxu0 0.0
      %3950 = vmatprep.subr.mxu0 0.0
      %3951 = vmatpush1.msra.mxu0 0.0
      %3952 = vmatprep.subr.mxu0 0.0
      %3953 = vmatpush1.msra.mxu0 0.0
      %3954 = vmatprep.subr.mxu0 0.0
      %3955 = vmatpush1.msra.mxu0 0.0
      %3956 = vmatprep.subr.mxu0 0.0
      %3957 = vmatpush1.msra.mxu0 0.0
      %3958 = vmatprep.subr.mxu0 0.0
      %3959 = vmatpush1.msra.mxu0 0.0
      %3960 = vmatprep.subr.mxu0 0.0
      %3961 = vmatpush1.msra.mxu0 0.0
      %3962 = vmatprep.subr.mxu0 0.0
      %3963 = vmatpush1.msra.mxu0 0.0
      %3964 = vmatprep.mubr.f32.mxu0 0.0
      %3965 = vmatmul.mubr.f32.gmra.mrb[0].mxu0 %v2506
      %v3966 = vpop.f32.mrb[0].mxu0
      %v3967 = vadd.f32 0.0, %v3966
      %v3968 = vpop.f32.mrb[0].mxu0
      %3969 = vdwg.mxu0
      %v3971 = vsel %vm2504, %v3967, 0
      %3973 = vmatprep.subr.mxu0 0.0
      %3974 = vmatpush1.msra.mxu0 %v2456
      %3975 = vmatprep.subr.mxu0 0.0
      %3976 = vmatpush1.msra.mxu0 %v2457
      %3977 = vmatprep.subr.mxu0 0.0
      %3978 = vmatpush1.msra.mxu0 %v2458
      %3979 = vmatprep.subr.mxu0 0.0
      %3980 = vmatpush1.msra.mxu0 %v2459
      %3981 = vmatprep.subr.mxu0 0.0
      %3982 = vmatpush1.msra.mxu0 %v2460
      %3983 = vmatprep.subr.mxu0 0.0
      %3984 = vmatpush1.msra.mxu0 %v2461
      %3985 = vmatprep.subr.mxu0 0.0
      %3986 = vmatpush1.msra.mxu0 %v2462
      %3987 = vmatprep.subr.mxu0 0.0
      %3988 = vmatpush1.msra.mxu0 %v2463
      %3989 = vmatprep.subr.mxu0 0.0
      %3990 = vmatpush1.msra.mxu0 0.0
      %3991 = vmatprep.subr.mxu0 0.0
      %3992 = vmatpush1.msra.mxu0 0.0
      %3993 = vmatprep.subr.mxu0 0.0
      %3994 = vmatpush1.msra.mxu0 0.0
      %3995 = vmatprep.subr.mxu0 0.0
      %3996 = vmatpush1.msra.mxu0 0.0
      %3997 = vmatprep.subr.mxu0 0.0
      %3998 = vmatpush1.msra.mxu0 0.0
      %3999 = vmatprep.subr.mxu0 0.0
      %4000 = vmatpush1.msra.mxu0 0.0
      %4001 = vmatprep.subr.mxu0 0.0
      %4002 = vmatpush1.msra.mxu0 0.0
      %4003 = vmatprep.subr.mxu0 0.0
      %4004 = vmatpush1.msra.mxu0 0.0
      %4005 = vmatprep.subr.mxu0 0.0
      %4006 = vmatpush1.msra.mxu0 0.0
      %4007 = vmatprep.subr.mxu0 0.0
      %4008 = vmatpush1.msra.mxu0 0.0
      %4009 = vmatprep.subr.mxu0 0.0
      %4010 = vmatpush1.msra.mxu0 0.0
      %4011 = vmatprep.subr.mxu0 0.0
      %4012 = vmatpush1.msra.mxu0 0.0
      %4013 = vmatprep.subr.mxu0 0.0
      %4014 = vmatpush1.msra.mxu0 0.0
      %4015 = vmatprep.subr.mxu0 0.0
      %4016 = vmatpush1.msra.mxu0 0.0
      %4017 = vmatprep.subr.mxu0 0.0
      %4018 = vmatpush1.msra.mxu0 0.0
      %4019 = vmatprep.subr.mxu0 0.0
      %4020 = vmatpush1.msra.mxu0 0.0
      %4021 = vmatprep.subr.mxu0 0.0
      %4022 = vmatpush1.msra.mxu0 0.0
      %4023 = vmatprep.subr.mxu0 0.0
      %4024 = vmatpush1.msra.mxu0 0.0
      %4025 = vmatprep.subr.mxu0 0.0
      %4026 = vmatpush1.msra.mxu0 0.0
      %4027 = vmatprep.subr.mxu0 0.0
      %4028 = vmatpush1.msra.mxu0 0.0
      %4029 = vmatprep.subr.mxu0 0.0
      %4030 = vmatpush1.msra.mxu0 0.0
      %4031 = vmatprep.subr.mxu0 0.0
      %4032 = vmatpush1.msra.mxu0 0.0
      %4033 = vmatprep.subr.mxu0 0.0
      %4034 = vmatpush1.msra.mxu0 0.0
      %4035 = vmatprep.subr.mxu0 0.0
      %4036 = vmatpush1.msra.mxu0 0.0
      %4037 = vmatprep.mubr.f32.mxu0 0.0
      %4038 = vmatmul.mubr.f32.gmra.mrb[0].mxu0 %v3971
      %v4039 = vpop.f32.mrb[0].mxu0
      %v4040 = vadd.f32 0.0, %v4039
      %v4041 = vpop.f32.mrb[0].mxu0
      %4042 = vdwg.mxu0
      %4044 = vrot.lane.b32.xlu0 %v2823, 4
      %v4045 = vpop.permute.xlu0 %4044
      %4048 = vrot.lane.b32.xlu0 %v2998, 8
      %v4049 = vpop.permute.xlu0 %4048
      %4052 = vrot.lane.b32.xlu0 %v3173, 12
      %v4053 = vpop.permute.xlu0 %4052
      %4056 = vrot.lane.b32.xlu0 %v3348, 16
      %v4057 = vpop.permute.xlu0 %4056
      %4060 = vrot.lane.b32.xlu0 %v3523, 20
      %v4061 = vpop.permute.xlu0 %4060
      %4064 = vrot.lane.b32.xlu0 %v3698, 24
      %v4065 = vpop.permute.xlu0 %4064
      %4068 = vrot.lane.b32.xlu0 %v3873, 28
      %v4069 = vpop.permute.xlu0 %4068
      %4072 = vrot.lane.b32.xlu0 %v4040, 32
      %v4073 = vpop.permute.xlu0 %4072
      %vm4075 = vcmask 31744
      %v4076 = vsel %vm4075, %v2648, %v4045
      %vm4077 = vcmask 64512
      %v4078 = vsel %vm4077, %v4076, %v4049
      %vm4079 = vcmask 97280
      %v4080 = vsel %vm4079, %v4078, %v4053
      %vm4081 = vcmask 130048
      %v4082 = vsel %vm4081, %v4080, %v4057
      %vm4083 = vcmask 162816
      %v4084 = vsel %vm4083, %v4082, %v4061
      %vm4085 = vcmask 195584
      %v4086 = vsel %vm4085, %v4084, %v4065
      %vm4087 = vcmask 228352
      %v4088 = vsel %vm4087, %v4086, %v4069
      %vm4089 = vcmask 261120
      %v4090 = vsel %vm4089, %v4088, %v4073
      %vm4091 = vcmask 289792
      %4092 = vst.msk [vmem:[%s168] sm:$0xf] %vm4091, %v4090
      %p4093 = scmp.lt.s32.totalorder %s14, 1
      %s4094 = scalar_select %p4093, %s14, 1
      %s4095 = smul.addr %s4094, 4
      %s4096 = scalar_lea.vmem %s3, %s4095
      // Predicated region
      $region33: #{hog_forward.2} parent=31 // pred_check
        %p4097 = pneg %p100
      $region34: #{hog_forward.2} parent=31 // pred_check_branch
        %4099 = sbr.rel (%p4097) target = $region36
      $region35: #{hog_forward.2} parent=31 // pred_region
        _
      $region36: #{hog_forward.2} parent=31 // pred_fallthru
        _
    $region32: #{hog_forward.2} parent=5 // pred_fallthru
      _
    %p4100 = scmp.le.s32.totalorder 2, %s9
    // Predicated region
    $region37: #{hog_forward.2} parent=5 // pred_check
      %p4101 = pneg %p4100
    $region38: #{hog_forward.2} parent=5 // pred_check_branch
      %4103 = sbr.rel (%p4101) target = $region40
    $region39: #{hog_forward.2} parent=5 // pred_region
      %s4104 = ssub.s32 %s9, 2
      // Predicated region
      $region41: #{hog_forward.2} parent=39 // pred_check
        %p4105 = pneg %p106
      $region42: #{hog_forward.2} parent=39 // pred_check_branch
        %4107 = sbr.rel (%p4105) target = $region44
      $region43: #{hog_forward.2} parent=39 // pred_region
        %p4108 = scmp.lt.s32.totalorder %s15, 1
        %s4109 = scalar_select %p4108, %s15, 1
        %s4110 = smul.addr %s4109, 4
        %s4111 = scalar_lea.vmem %s3, %s4110
      $region44: #{hog_forward.2} parent=39 // pred_fallthru
        _
    $region40: #{hog_forward.2} parent=5 // pred_fallthru
      _
  $region6: #{hog_forward.2} parent=0 // loop_footer
    %s13 = sadd.s32 1, %s9
  $region7: #{hog_forward.2} parent=0 // loop_footer_branch
    %8 = sbr.rel target = $region3
  $region8: #{hog_forward.2} parent=0 // loop_exit
    _

</llo_original>
